<compile_context>
chip_gen: v7x
topology: tpu7x:2x2x1
jax: 0.10.0
libtpu: 0.0.40
codegen_flags: <defaults>
</compile_context>

<pallas_src>
import functools

import numpy as np
import jax
import jax.numpy as jnp
from jax.experimental import pallas as pl
from jax.experimental.pallas import tpu as pltpu

ALPHA = 0.2          # LeakyReLU negative slope
NEG_BIG = -9e15      # mask value used by the PyTorch module


def _gat_kernel(tq, m_valid, m_pad, concat,
                adj_ref, h_ref, f1_ref, f2_ref, bitsel_ref, o_ref):
    # Block shapes seen by the kernel:
    #   adj_ref : (1, tq//32, m_pad) int32  -- 1 bit/edge, 32 query rows per word
    #   h_ref   : (1, m_pad, E_pad)  bf16   -- projected nodes (whole batch element)
    #   f1_ref  : (1, tq, 1)         f32
    #   f2_ref  : (1, 1, m_pad)      f32
    #   bitsel  : (32, 1)            int32  -- 1 << sublane
    #   o_ref   : (1, tq, E_pad)

    # ---- attention logits for this (tq, m_pad) slab ----
    e = f1_ref[0] + f2_ref[0]                               # (tq, m_pad) f32
    e = jnp.where(e > 0, e, ALPHA * e)                      # LeakyReLU

    # ---- unpack 1-bit adjacency: word w covers query rows [w*32, w*32+32) ----
    words = adj_ref[0]                                      # (tq//32, m_pad) int32
    bitmask = bitsel_ref[...]                               # (32, 1) int32
    chunks = [words[w:w + 1, :] & bitmask for w in range(tq // 32)]   # each (32, m_pad)
    edge = chunks[0] if len(chunks) == 1 else jnp.concatenate(chunks, axis=0)

    att = jnp.where(edge != 0, e, jnp.float32(NEG_BIG))
    if m_valid != m_pad:
        # Exclude padded key columns exactly (matches the unpadded reference even
        # for rows whose only "edges" would otherwise be padding).
        col = jax.lax.broadcasted_iota(jnp.int32, (tq, m_pad), 1)
        att = jnp.where(col < m_valid, att, -jnp.inf)

    # ---- masked softmax, normalization deferred past the matmul ----
    m = jnp.max(att, axis=-1, keepdims=True)                # (tq, 1) f32
    p = jnp.exp((att - m).astype(jnp.bfloat16))             # bf16 EUP, p <= 1
    denom = jnp.sum(p.astype(jnp.float32), axis=-1, keepdims=True)   # f32 accumulation

    # h' = (unnormalized attention) @ h on the MXU, then scale the small slab.
    hp = jnp.dot(p, h_ref[0], preferred_element_type=jnp.float32)    # (tq, E_pad) f32
    hp = hp * pl.reciprocal(denom, approx=False)            # exact; (tq,1) cost is negligible

    if concat:
        # NOTE: jnp.expm1 would be marginally more accurate near 0; exp(x)-1 kept for
        # guaranteed Mosaic lowering (difference is far below the bf16 matmul noise).
        out = jnp.where(hp > 0, hp, jnp.exp(hp) - 1.0)      # ELU
    else:
        out = hp
    o_ref[0] = out.astype(o_ref.dtype)


def gat_layer(x, adj, W, a, *, concat=True, out_dtype=jnp.bfloat16):
    """GAT forward (eval mode).  x:(B,M,Fin)  adj:(B,M,M)  W:(Fin,E)  a:(2E,1)."""
    B, M, Fin = x.shape
    E = W.shape[1]
    f32 = jnp.float32

    # Lane-dense output: pad E up to a multiple of 128.  Zero padding is exact
    # (padded a/W entries contribute 0; padded output columns are sliced off).
    E_pad = ((E + 127) // 128) * 128

    # Query tiling: one full tile for small M, else 256-row tiles (fills the
    # 256-wide MXU on v6e/v7x and keeps the packed-adj block sublane-aligned).
    if M <= 256:
        M_pad = ((M + 31) // 32) * 32
        TQ = M_pad
    else:
        M_pad = ((M + 255) // 256) * 256
        TQ = 256
    n_q = M_pad // TQ
    nw = TQ // 32

    # ---------- prologue in plain XLA: h = x@W (bf16 MXU, f32 acc), f1, f2 ----------
    xb = x.astype(jnp.bfloat16)
    if M_pad != M:
        xb = jnp.pad(xb, ((0, 0), (0, M_pad - M), (0, 0)))
    Wb = jnp.zeros((Fin, E_pad), jnp.bfloat16).at[:, :E].set(W.astype(jnp.bfloat16))
    a1 = jnp.zeros((E_pad,), f32).at[:E].set(a[:E, 0].astype(f32))
    a2 = jnp.zeros((E_pad,), f32).at[:E].set(a[E:, 0].astype(f32))

    h32 = jnp.einsum("bmf,fe->bme", xb, Wb, preferred_element_type=f32)  # (B, M_pad, E_pad)
    f1 = jnp.einsum("bme,e->bm", h32, a1)[:, :, None]                    # (B, M_pad, 1)
    f2 = jnp.einsum("bme,e->bm", h32, a2)[:, None, :]                    # (B, 1, M_pad)
    h_bf = h32.astype(jnp.bfloat16)

    # ---------- bit-pack adjacency: 1 bit/edge, 32 query rows per int32 word ----------
    adj_b = adj > 0
    if M_pad != M:
        adj_b = jnp.pad(adj_b, ((0, 0), (0, M_pad - M), (0, M_pad - M)))
    au = adj_b.astype(jnp.uint32).reshape(B, M_pad // 32, 32, M_pad)
    shifts = jnp.arange(32, dtype=jnp.uint32).reshape(1, 1, 32, 1)
    packed_u = (au << shifts).sum(axis=2).astype(jnp.uint32)             # (B, M_pad//32, M_pad)
    adj_packed = jax.lax.bitcast_convert_type(packed_u, jnp.int32)

    # Per-sublane bit-select constants (1 << s), passed as a tiny input.
    bitsel_np = np.left_shift(np.uint32(1), np.arange(32, dtype=np.uint32)).view(np.int32)
    bitsel = jnp.asarray(bitsel_np.reshape(32, 1))

    # ---------- VMEM budget: blocks (double-buffered) + live (TQ, M_pad) temps ----------
    out_bytes = jnp.dtype(out_dtype).itemsize
    live = TQ * M_pad * (4 + 4 + 4 + 2 + 4)            # e, att, edge, p(bf16), p(f32)
    blocks = (2 * nw * M_pad * 4                       # packed adj tile
              + 2 * M_pad * E_pad * 2                  # h
              + 2 * TQ * 128 * 4                       # f1 (lane-padded)
              + 2 * 8 * M_pad * 4                      # f2 (sublane-padded)
              + 2 * 32 * 128 * 4                       # bitsel
              + 2 * TQ * E_pad * out_bytes)            # output tile
    # Headroom below v7x's 64 MiB physical VMEM (do NOT clamp to the full 64 MiB).
    vmem_limit = min(max(int((blocks + live) * 3 // 2), 16 << 20), 48 << 20)

    out = pl.pallas_call(
        functools.partial(_gat_kernel, TQ, M, M_pad, concat),
        out_shape=jax.ShapeDtypeStruct((B, M_pad, E_pad), out_dtype),
        grid_spec=pltpu.PrefetchScalarGridSpec(
            num_scalar_prefetch=0,
            grid=(B, n_q),
            in_specs=[
                pl.BlockSpec((1, nw, M_pad), lambda b, q: (b, q, 0)),      # packed adj tile
                pl.BlockSpec((1, M_pad, E_pad), lambda b, q: (b, 0, 0)),   # h (per batch elem)
                pl.BlockSpec((1, TQ, 1), lambda b, q: (b, q, 0)),          # f1 tile
                pl.BlockSpec((1, 1, M_pad), lambda b, q: (b, 0, 0)),       # f2 row
                pl.BlockSpec((32, 1), lambda b, q: (0, 0)),                # bit-select consts
            ],
            out_specs=pl.BlockSpec((1, TQ, E_pad), lambda b, q: (b, q, 0)),
        ),
        compiler_params=pltpu.CompilerParams(
            dimension_semantics=("parallel", "parallel"),   # no cross-q carry -> megacore-able
            vmem_limit_bytes=vmem_limit,
        ),
    )(adj_packed, h_bf, f1, f2, bitsel)

    return out[:, :M, :E]


def _xavier_uniform(key, shape, gain):
    fan_in, fan_out = shape
    bound = gain * jnp.sqrt(6.0 / (fan_in + fan_out))
    return jax.random.uniform(key, shape, jnp.float32, -bound, bound)


def _reference(x, adj, W, a, mxu_bf16=False):
    """Pure-JAX reference of the PyTorch forward (eval mode, concat=True).

    mxu_bf16=True mirrors the kernel's intentional precision choices (bf16 MXU
    operands, f32 accumulation) so the kernel logic can be checked tightly.
    """
    E = W.shape[1]

    def rd(v):  # bf16 operand rounding (what the MXU sees), accumulate in f32
        return v.astype(jnp.bfloat16).astype(jnp.float32) if mxu_bf16 else v

    h = jnp.einsum("bmf,fe->bme", rd(x), rd(W))
    f1 = jnp.einsum("bme,e->bm", h, a[:E, 0])
    f2 = jnp.einsum("bme,e->bm", h, a[E:, 0])
    e = f1[:, :, None] + f2[:, None, :]
    e = jnp.where(e > 0, e, ALPHA * e)
    att = jnp.where(adj > 0, e, NEG_BIG)
    att = jax.nn.softmax(att, axis=-1)
    hp = jnp.einsum("bmn,bne->bme", rd(att), rd(h))
    return jnp.where(hp > 0, hp, jnp.exp(hp) - 1.0)


if __name__ == "__main__":
    # Small but non-trivial: M=384 -> M_pad=512 exercises two 256-row query tiles,
    # padded key-column masking, bit-packed adjacency and the E=64 -> 128 padding.
    B, M, Fin, E = 2, 384, 32, 64
    key = jax.random.PRNGKey(0)
    k_x, k_adj, k_w, k_a = jax.random.split(key, 4)

    x = jax.random.normal(k_x, (B, M, Fin), jnp.float32)
    adj = (jax.random.uniform(k_adj, (B, M, M)) > 0.4).astype(jnp.float32)
    adj = jnp.maximum(adj, jnp.eye(M, dtype=jnp.float32)[None])   # self-loops

    W = _xavier_uniform(k_w, (Fin, E), gain=1.414)
    a = _xavier_uniform(k_a, (2 * E, 1), gain=1.414)

    out = jax.block_until_ready(gat_layer(x, adj, W, a))
    assert out.shape == (B, M, E)
    out32 = out.astype(jnp.float32)

    ref_bf16 = _reference(x, adj, W, a, mxu_bf16=True)    # mirrors kernel precision
    ref_f32 = _reference(x, adj, W, a, mxu_bf16=False)    # exact module math
    err16 = float(jnp.max(jnp.abs(out32 - ref_bf16)))
    err32 = float(jnp.max(jnp.abs(out32 - ref_f32)))
    mean32 = float(jnp.mean(jnp.abs(out32 - ref_f32)))
    assert err16 < 1e-1, f"mismatch vs bf16-matmul reference: {err16}"
    assert err32 < 2e-1, f"mismatch vs f32 reference: {err32}"
    assert mean32 < 2e-2, f"mean mismatch vs f32 reference: {mean32}"

    print("KERNEL_OK")
</pallas_src>

<mosaic_0001>
module attributes {stable_mosaic.version = 11 : i64} {
  func.func @_gat_kernel(%arg0: i32, %arg1: i32, %arg2: memref<1x8x512xi32, #tpu.memory_space<vmem>>, %arg3: memref<1x512x128xbf16, #tpu.memory_space<vmem>>, %arg4: memref<1x256x1xf32, #tpu.memory_space<vmem>>, %arg5: memref<1x1x512xf32, #tpu.memory_space<vmem>>, %arg6: memref<32x1xi32, #tpu.memory_space<vmem>>, %arg7: memref<1x256x128xbf16, #tpu.memory_space<vmem>>) attributes {dimension_semantics = [#tpu.dimension_semantics<parallel>, #tpu.dimension_semantics<parallel>], iteration_bounds = array<i64: 2, 2>, scalar_prefetch = 0 : i64, scratch_operands = 0 : i64, tpu.core_type = #tpu.core_type<tc>, window_params = [{transform_indices = @transform_0, window_bounds = array<i64: 1, 8, 512>}, {transform_indices = @transform_1, window_bounds = array<i64: 1, 512, 128>}, {transform_indices = @transform_2, window_bounds = array<i64: 1, 256, 1>}, {transform_indices = @transform_3, window_bounds = array<i64: 1, 1, 512>}, {pipeline_mode = #tpu.pipeline_mode<synchronous>, transform_indices = @transform_4, window_bounds = array<i64: 32, 1>}, {transform_indices = @transform_5, window_bounds = array<i64: 1, 256, 128>}]} {
    %c0 = arith.constant 0 : index
    %c0_0 = arith.constant 0 : index
    %c0_1 = arith.constant 0 : index
    %0 = vector.load %arg4[%c0, %c0_0, %c0_1] : memref<1x256x1xf32, #tpu.memory_space<vmem>>, vector<1x256x1xf32>
    %1 = vector.shape_cast %0 : vector<1x256x1xf32> to vector<256x1xf32>
    %c0_2 = arith.constant 0 : index
    %c0_3 = arith.constant 0 : index
    %c0_4 = arith.constant 0 : index
    %2 = vector.load %arg5[%c0_2, %c0_3, %c0_4] : memref<1x1x512xf32, #tpu.memory_space<vmem>>, vector<1x1x512xf32>
    %3 = vector.shape_cast %2 : vector<1x1x512xf32> to vector<1x512xf32>
    %4 = vector.broadcast %1 : vector<256x1xf32> to vector<256x512xf32>
    %5 = vector.broadcast %3 : vector<1x512xf32> to vector<256x512xf32>
    %6 = arith.addf %4, %5 : vector<256x512xf32>
    %cst = arith.constant 0.000000e+00 : f32
    %7 = vector.broadcast %cst : f32 to vector<256x512xf32>
    %8 = arith.cmpf ogt, %6, %7 : vector<256x512xf32>
    %cst_5 = arith.constant 2.000000e-01 : f32
    %9 = vector.broadcast %cst_5 : f32 to vector<256x512xf32>
    %10 = arith.mulf %9, %6 : vector<256x512xf32>
    %11 = arith.select %8, %6, %10 : vector<256x512xi1>, vector<256x512xf32>
    %c0_6 = arith.constant 0 : index
    %c0_7 = arith.constant 0 : index
    %c0_8 = arith.constant 0 : index
    %12 = vector.load %arg2[%c0_6, %c0_7, %c0_8] : memref<1x8x512xi32, #tpu.memory_space<vmem>>, vector<1x8x512xi32>
    %13 = vector.shape_cast %12 : vector<1x8x512xi32> to vector<8x512xi32>
    %c0_9 = arith.constant 0 : index
    %c0_10 = arith.constant 0 : index
    %14 = vector.load %arg6[%c0_9, %c0_10] : memref<32x1xi32, #tpu.memory_space<vmem>>, vector<32x1xi32>
    %15 = vector.extract_strided_slice %13 {offsets = [0, 0], sizes = [1, 512], strides = [1, 1]} : vector<8x512xi32> to vector<1x512xi32>
    %16 = vector.broadcast %15 : vector<1x512xi32> to vector<32x512xi32>
    %17 = vector.broadcast %14 : vector<32x1xi32> to vector<32x512xi32>
    %18 = arith.andi %16, %17 : vector<32x512xi32>
    %19 = vector.extract_strided_slice %13 {offsets = [1, 0], sizes = [1, 512], strides = [1, 1]} : vector<8x512xi32> to vector<1x512xi32>
    %20 = vector.broadcast %19 : vector<1x512xi32> to vector<32x512xi32>
    %21 = vector.broadcast %14 : vector<32x1xi32> to vector<32x512xi32>
    %22 = arith.andi %20, %21 : vector<32x512xi32>
    %23 = vector.extract_strided_slice %13 {offsets = [2, 0], sizes = [1, 512], strides = [1, 1]} : vector<8x512xi32> to vector<1x512xi32>
    %24 = vector.broadcast %23 : vector<1x512xi32> to vector<32x512xi32>
    %25 = vector.broadcast %14 : vector<32x1xi32> to vector<32x512xi32>
    %26 = arith.andi %24, %25 : vector<32x512xi32>
    %27 = vector.extract_strided_slice %13 {offsets = [3, 0], sizes = [1, 512], strides = [1, 1]} : vector<8x512xi32> to vector<1x512xi32>
    %28 = vector.broadcast %27 : vector<1x512xi32> to vector<32x512xi32>
    %29 = vector.broadcast %14 : vector<32x1xi32> to vector<32x512xi32>
    %30 = arith.andi %28, %29 : vector<32x512xi32>
    %31 = vector.extract_strided_slice %13 {offsets = [4, 0], sizes = [1, 512], strides = [1, 1]} : vector<8x512xi32> to vector<1x512xi32>
    %32 = vector.broadcast %31 : vector<1x512xi32> to vector<32x512xi32>
    %33 = vector.broadcast %14 : vector<32x1xi32> to vector<32x512xi32>
    %34 = arith.andi %32, %33 : vector<32x512xi32>
    %35 = vector.extract_strided_slice %13 {offsets = [5, 0], sizes = [1, 512], strides = [1, 1]} : vector<8x512xi32> to vector<1x512xi32>
    %36 = vector.broadcast %35 : vector<1x512xi32> to vector<32x512xi32>
    %37 = vector.broadcast %14 : vector<32x1xi32> to vector<32x512xi32>
    %38 = arith.andi %36, %37 : vector<32x512xi32>
    %39 = vector.extract_strided_slice %13 {offsets = [6, 0], sizes = [1, 512], strides = [1, 1]} : vector<8x512xi32> to vector<1x512xi32>
    %40 = vector.broadcast %39 : vector<1x512xi32> to vector<32x512xi32>
    %41 = vector.broadcast %14 : vector<32x1xi32> to vector<32x512xi32>
    %42 = arith.andi %40, %41 : vector<32x512xi32>
    %43 = vector.extract_strided_slice %13 {offsets = [7, 0], sizes = [1, 512], strides = [1, 1]} : vector<8x512xi32> to vector<1x512xi32>
    %44 = vector.broadcast %43 : vector<1x512xi32> to vector<32x512xi32>
    %45 = vector.broadcast %14 : vector<32x1xi32> to vector<32x512xi32>
    %46 = arith.andi %44, %45 : vector<32x512xi32>
    %47 = tpu.concatenate %18, %22, %26, %30, %34, %38, %42, %46 in 0 : vector<32x512xi32>, vector<32x512xi32>, vector<32x512xi32>, vector<32x512xi32>, vector<32x512xi32>, vector<32x512xi32>, vector<32x512xi32>, vector<32x512xi32> -> vector<256x512xi32>
    %c0_i32 = arith.constant 0 : i32
    %48 = vector.broadcast %c0_i32 : i32 to vector<256x512xi32>
    %49 = arith.cmpi ne, %47, %48 : vector<256x512xi32>
    %cst_11 = arith.constant -9.000000e+15 : f32
    %50 = vector.broadcast %cst_11 : f32 to vector<256x512xf32>
    %51 = arith.select %49, %11, %50 : vector<256x512xi1>, vector<256x512xf32>
    %52 = tpu.iota {dimensions = array<i32: 1>} : vector<256x512xi32>
    %c384_i32 = arith.constant 384 : i32
    %53 = vector.broadcast %c384_i32 : i32 to vector<256x512xi32>
    %54 = arith.cmpi slt, %52, %53 : vector<256x512xi32>
    %cst_12 = arith.constant 0xFF800000 : f32
    %55 = vector.broadcast %cst_12 : f32 to vector<256x512xf32>
    %56 = arith.select %54, %51, %55 : vector<256x512xi1>, vector<256x512xf32>
    %cst_13 = arith.constant dense<0xFF800000> : vector<256xf32>
    %57 = vector.multi_reduction <maximumf>, %56, %cst_13 [1] : vector<256x512xf32> to vector<256xf32>
    %58 = vector.shape_cast %57 : vector<256xf32> to vector<256x1xf32>
    %59 = vector.broadcast %58 : vector<256x1xf32> to vector<256x512xf32>
    %60 = arith.subf %56, %59 : vector<256x512xf32>
    %61 = arith.truncf %60 : vector<256x512xf32> to vector<256x512xbf16>
    %62 = math.exp %61 : vector<256x512xbf16>
    %63 = arith.extf %62 : vector<256x512xbf16> to vector<256x512xf32>
    %cst_14 = arith.constant dense<0.000000e+00> : vector<256xf32>
    %64 = vector.multi_reduction <add>, %63, %cst_14 [1] : vector<256x512xf32> to vector<256xf32>
    %65 = vector.shape_cast %64 : vector<256xf32> to vector<256x1xf32>
    %c0_15 = arith.constant 0 : index
    %c0_16 = arith.constant 0 : index
    %c0_17 = arith.constant 0 : index
    %66 = vector.load %arg3[%c0_15, %c0_16, %c0_17] : memref<1x512x128xbf16, #tpu.memory_space<vmem>>, vector<1x512x128xbf16>
    %67 = vector.shape_cast %66 : vector<1x512x128xbf16> to vector<512x128xbf16>
    %cst_18 = arith.constant dense<0.000000e+00> : vector<256x128xf32>
    %68 = tpu.matmul %62, %67, %cst_18 {dimension_numbers = #tpu.dot_dimension_numbers<[1], [0], [0], [1], [0, 0, 1, 1], [], []>} : vector<256x512xbf16>, vector<512x128xbf16>, vector<256x128xf32> -> vector<256x128xf32>
    %69 = tpu.reciprocal %65 : vector<256x1xf32> -> vector<256x1xf32>
    %70 = vector.broadcast %69 : vector<256x1xf32> to vector<256x128xf32>
    %71 = arith.mulf %68, %70 : vector<256x128xf32>
    %cst_19 = arith.constant 0.000000e+00 : f32
    %72 = vector.broadcast %cst_19 : f32 to vector<256x128xf32>
    %73 = arith.cmpf ogt, %71, %72 : vector<256x128xf32>
    %74 = math.exp %71 : vector<256x128xf32>
    %cst_20 = arith.constant 1.000000e+00 : f32
    %75 = vector.broadcast %cst_20 : f32 to vector<256x128xf32>
    %76 = arith.subf %74, %75 : vector<256x128xf32>
    %77 = arith.select %73, %71, %76 : vector<256x128xi1>, vector<256x128xf32>
    %78 = arith.truncf %77 : vector<256x128xf32> to vector<256x128xbf16>
    %c0_21 = arith.constant 0 : index
    %c0_22 = arith.constant 0 : index
    %c0_23 = arith.constant 0 : index
    %79 = vector.load %arg7[%c0_21, %c0_22, %c0_23] : memref<1x256x128xbf16, #tpu.memory_space<vmem>>, vector<1x256x128xbf16>
    %80 = vector.shape_cast %79 : vector<1x256x128xbf16> to vector<256x128xbf16>
    %81 = vector.shape_cast %78 : vector<256x128xbf16> to vector<1x256x128xbf16>
    tpu.vector_store %arg7[%c0_21, %c0_22, %c0_23], %81 {strides = array<i32>} : memref<1x256x128xbf16, #tpu.memory_space<vmem>>, vector<1x256x128xbf16>,
    return
  }
  func.func @transform_0(%arg0: i32, %arg1: i32) -> (i32, i32, i32) {
    %c0_i32 = arith.constant 0 : i32
    %c0_i32_0 = arith.constant 0 : i32
    return %arg0, %arg1, %c0_i32 : i32, i32, i32
  }
  func.func @transform_1(%arg0: i32, %arg1: i32) -> (i32, i32, i32) {
    %c0_i32 = arith.constant 0 : i32
    %c0_i32_0 = arith.constant 0 : i32
    %c0_i32_1 = arith.constant 0 : i32
    return %arg0, %c0_i32, %c0_i32_0 : i32, i32, i32
  }
  func.func @transform_2(%arg0: i32, %arg1: i32) -> (i32, i32, i32) {
    %c0_i32 = arith.constant 0 : i32
    %c0_i32_0 = arith.constant 0 : i32
    return %arg0, %arg1, %c0_i32 : i32, i32, i32
  }
  func.func @transform_3(%arg0: i32, %arg1: i32) -> (i32, i32, i32) {
    %c0_i32 = arith.constant 0 : i32
    %c0_i32_0 = arith.constant 0 : i32
    %c0_i32_1 = arith.constant 0 : i32
    return %arg0, %c0_i32, %c0_i32_0 : i32, i32, i32
  }
  func.func @transform_4(%arg0: i32, %arg1: i32) -> (i32, i32) {
    %c0_i32 = arith.constant 0 : i32
    %c0_i32_0 = arith.constant 0 : i32
    %c0_i32_1 = arith.constant 0 : i32
    return %c0_i32, %c0_i32_0 : i32, i32
  }
  func.func @transform_5(%arg0: i32, %arg1: i32) -> (i32, i32, i32) {
    %c0_i32 = arith.constant 0 : i32
    %c0_i32_0 = arith.constant 0 : i32
    return %arg0, %arg1, %c0_i32 : i32, i32, i32
  }
}

</mosaic_0001>

<llo_original>
// kernel: tpu_custom_call.1
$region0: #{tpu_custom_call.1}
  #allocation0 [shape = 'u32[]', space=smem, size = 0x4, offset = 0x4, fixed_abs, tag = 'smem constant byte address 0x4 - core index']
  #allocation1 [shape = 'u32[144,128]{1,0:T(1,128)}', space=vmem, size = 0x12000, scoped, tag = 'internal scratch']
  %s0 = inlined_call_operand.vmem [shape: s32[2,16,512], index: 0, kind: input, shape index: {}]
  %s1 = inlined_call_operand.vmem [shape: bf16[2,512,128], index: 1, kind: input, shape index: {}]
  %s2 = inlined_call_operand.vmem [shape: f32[2,512,1], index: 2, kind: input, shape index: {}]
  %s3 = inlined_call_operand.vmem [shape: f32[2,1,512], index: 3, kind: input, shape index: {}]
  %s4 = inlined_call_operand.vmem [shape: s32[32,1], index: 4, kind: input, shape index: {}]
  %s5 = inlined_call_operand.hbm [shape: bf16[2,512,128], index: 5, kind: output, shape index: {}]
  %s6 = sld [smem:[#allocation0]]
  $region53: #{tpu_custom_call.1} parent=0
    _
  %s8 = ssub.s32 1, %s6
  %s9 = scalar_select 0, %s8, %s6
  $region1: #{tpu_custom_call.1} parent=0
    #allocation2 [shape = 'u8[131072]{0}', space=vmem, size = 0x20000, scoped, tag = 'output window, operand 0']
    #allocation3 [shape = 's32[2]{0}', space=sflag, size = 0x8, scoped, tag = 'scoped memory for tpu_custom_call.1']
    %10 = vsyncpa [#allocation3], 0
    %s11 = scalar_lea.sflag [#allocation3], 1
    %12 = vsyncpa %s11, 0
    loop: start=0, step=1, limit=6
    $region2: #{tpu_custom_call.1} parent=1 // loop_pre_header
      _
    $region3: #{tpu_custom_call.1} parent=1 // loop_header
      %s14 = sphi 0, %s18
      %p15 = scmp.ge.s32.totalorder %s14, 6
      %s21 = sphi 0, %s33
      %s22 = sphi 0, %s29
      %s23 = sphi 0, %s21
      %s24 = sphi 0, %s22
      %s25 = sphi 0, %s23
      %s26 = sphi 0, %s24
      %s38 = sphi 0, %s40
      %s41 = sphi 0, %s38
      %s42 = sphi 0, %s41
      %s58 = sphi 0, %s42
      %s64 = sphi 0, %s66
      %s67 = sphi 0, %s64
      %s68 = sphi 0, %s67
      %s84 = sphi 0, %s68
      %s92 = sphi 0, %s94
      %s95 = sphi 0, %s92
      %s96 = sphi 0, %s95
      %s112 = sphi 0, %s96
      %s118 = sphi 0, %s120
      %s121 = sphi 0, %s118
      %s122 = sphi 0, %s121
      %s138 = sphi 0, %s122
      %s142 = sphi 0, %s142
      %s144 = sphi 0, %s142
      %s145 = sphi 0, %s144
      %s159 = sphi 0, %s145
      %s167 = sphi 0, %s169
      %s170 = sphi 0, %s167
      %s171 = sphi 0, %s170
      %s187 = sphi 0, %s171
    $region4: #{tpu_custom_call.1} parent=1 // loop_header_branch
      %17 = sbr.rel (%p15) target = $region8
    $region5: #{tpu_custom_call.1} parent=1 // loop_body
      %s19 = ssub.s32 %s14, 1
      %s20 = ssub.s32 %s14, 2
      %s27 = sadd.s32 1, %s22
      %p28 = scmp.ge.s32.totalorder %s27, 2
      %s29 = scalar_select %p28, 0, %s27
      %s30 = sadd.s32 1, %s21
      %s31 = scalar_select %p28, %s30, %s21
      %p32 = scmp.ge.s32.totalorder %s31, 2
      %s33 = scalar_select %p32, 0, %s31
      %s34 = ssub.s32 %s21, %s33
      %s35 = ssub.s32 %s22, %s29
      %s36 = sor.u32 %s34, %s35
      %p37 = scmp.eq.s32.totalorder %s36, 0
      %s39 = sadd.s32 %s38, 1
      %s40 = scalar_select %p37, %s38, %s39
      %p43 = pneg %p37
      %p44 = scmp.eq.s32.totalorder %s14, 3
      %p45 = por %p43, %p44
      %p46 = scmp.ne.s32.totalorder %s38, %s41
      %p47 = scmp.eq.s32.totalorder %s14, 0
      %p48 = por %p46, %p47
      %p49 = scmp.ne.s32.totalorder %s38, %s41
      %p50 = scmp.eq.s32.totalorder %s19, 3
      %p51 = por %p49, %p50
      %p52 = scmp.ne.s32.totalorder %s41, %s42
      %p53 = scmp.eq.s32.totalorder %s19, 0
      %p54 = por %p52, %p53
      %p55 = scmp.ne.s32.totalorder %s41, %s42
      %p56 = scmp.eq.s32.totalorder %s20, 3
      %p57 = por %p55, %p56
      %p59 = scmp.ne.s32.totalorder %s42, %s58
      %p60 = scmp.eq.s32.totalorder %s20, 0
      %p61 = por %p59, %p60
      %s62 = ssub.s32 %s21, %s33
      %p63 = scmp.eq.s32.totalorder %s62, 0
      %s65 = sadd.s32 %s64, 1
      %s66 = scalar_select %p63, %s64, %s65
      %p69 = pneg %p63
      %p70 = scmp.eq.s32.totalorder %s14, 3
      %p71 = por %p69, %p70
      %p72 = scmp.ne.s32.totalorder %s64, %s67
      %p73 = scmp.eq.s32.totalorder %s14, 0
      %p74 = por %p72, %p73
      %p75 = scmp.ne.s32.totalorder %s64, %s67
      %p76 = scmp.eq.s32.totalorder %s19, 3
      %p77 = por %p75, %p76
      %p78 = scmp.ne.s32.totalorder %s67, %s68
      %p79 = scmp.eq.s32.totalorder %s19, 0
      %p80 = por %p78, %p79
      %p81 = scmp.ne.s32.totalorder %s67, %s68
      %p82 = scmp.eq.s32.totalorder %s20, 3
      %p83 = por %p81, %p82
      %p85 = scmp.ne.s32.totalorder %s68, %s84
      %p86 = scmp.eq.s32.totalorder %s20, 0
      %p87 = por %p85, %p86
      %s88 = ssub.s32 %s21, %s33
      %s89 = ssub.s32 %s22, %s29
      %s90 = sor.u32 %s88, %s89
      %p91 = scmp.eq.s32.totalorder %s90, 0
      %s93 = sadd.s32 %s92, 1
      %s94 = scalar_select %p91, %s92, %s93
      %p97 = pneg %p91
      %p98 = scmp.eq.s32.totalorder %s14, 3
      %p99 = por %p97, %p98
      %p100 = scmp.ne.s32.totalorder %s92, %s95
      %p101 = scmp.eq.s32.totalorder %s14, 0
      %p102 = por %p100, %p101
      %p103 = scmp.ne.s32.totalorder %s92, %s95
      %p104 = scmp.eq.s32.totalorder %s19, 3
      %p105 = por %p103, %p104
      %p106 = scmp.ne.s32.totalorder %s95, %s96
      %p107 = scmp.eq.s32.totalorder %s19, 0
      %p108 = por %p106, %p107
      %p109 = scmp.ne.s32.totalorder %s95, %s96
      %p110 = scmp.eq.s32.totalorder %s20, 3
      %p111 = por %p109, %p110
      %p113 = scmp.ne.s32.totalorder %s96, %s112
      %p114 = scmp.eq.s32.totalorder %s20, 0
      %p115 = por %p113, %p114
      %s116 = ssub.s32 %s21, %s33
      %p117 = scmp.eq.s32.totalorder %s116, 0
      %s119 = sadd.s32 %s118, 1
      %s120 = scalar_select %p117, %s118, %s119
      %p123 = pneg %p117
      %p124 = scmp.eq.s32.totalorder %s14, 3
      %p125 = por %p123, %p124
      %p126 = scmp.ne.s32.totalorder %s118, %s121
      %p127 = scmp.eq.s32.totalorder %s14, 0
      %p128 = por %p126, %p127
      %p129 = scmp.ne.s32.totalorder %s118, %s121
      %p130 = scmp.eq.s32.totalorder %s19, 3
      %p131 = por %p129, %p130
      %p132 = scmp.ne.s32.totalorder %s121, %s122
      %p133 = scmp.eq.s32.totalorder %s19, 0
      %p134 = por %p132, %p133
      %p135 = scmp.ne.s32.totalorder %s121, %s122
      %p136 = scmp.eq.s32.totalorder %s20, 3
      %p137 = por %p135, %p136
      %p139 = scmp.ne.s32.totalorder %s122, %s138
      %p140 = scmp.eq.s32.totalorder %s20, 0
      %p141 = por %p139, %p140
      %s143 = sadd.s32 %s142, 1
      %p146 = scmp.eq.s32.totalorder %s14, 3
      %p147 = scmp.ne.s32.totalorder %s142, %s144
      %p148 = scmp.eq.s32.totalorder %s14, 0
      %p149 = por %p147, %p148
      %p150 = scmp.ne.s32.totalorder %s142, %s144
      %p151 = scmp.eq.s32.totalorder %s19, 3
      %p152 = por %p150, %p151
      %p153 = scmp.ne.s32.totalorder %s144, %s145
      %p154 = scmp.eq.s32.totalorder %s19, 0
      %p155 = por %p153, %p154
      %p156 = scmp.ne.s32.totalorder %s144, %s145
      %p157 = scmp.eq.s32.totalorder %s20, 3
      %p158 = por %p156, %p157
      %p160 = scmp.ne.s32.totalorder %s145, %s159
      %p161 = scmp.eq.s32.totalorder %s20, 0
      %p162 = por %p160, %p161
      %s163 = ssub.s32 %s21, %s33
      %s164 = ssub.s32 %s22, %s29
      %s165 = sor.u32 %s163, %s164
      %p166 = scmp.eq.s32.totalorder %s165, 0
      %s168 = sadd.s32 %s167, 1
      %s169 = scalar_select %p166, %s167, %s168
      %p172 = pneg %p166
      %p173 = scmp.eq.s32.totalorder %s14, 3
      %p174 = por %p172, %p173
      %p175 = scmp.ne.s32.totalorder %s167, %s170
      %p176 = scmp.eq.s32.totalorder %s14, 0
      %p177 = por %p175, %p176
      %p178 = scmp.ne.s32.totalorder %s167, %s170
      %p179 = scmp.eq.s32.totalorder %s19, 3
      %p180 = por %p178, %p179
      %p181 = scmp.ne.s32.totalorder %s170, %s171
      %p182 = scmp.eq.s32.totalorder %s19, 0
      %p183 = por %p181, %p182
      %p184 = scmp.ne.s32.totalorder %s170, %s171
      %p185 = scmp.eq.s32.totalorder %s20, 3
      %p186 = por %p184, %p185
      %p188 = scmp.ne.s32.totalorder %s171, %s187
      %p189 = scmp.eq.s32.totalorder %s20, 0
      %p190 = por %p188, %p189
      %p191 = scmp.le.s32.totalorder 1, %s14
      %p192 = scmp.lt.s32.totalorder %s14, 5
      %p193 = pnand %p191, %p192
      %p194 = pneg %p193
      // Predicated region
      $region9: #{tpu_custom_call.1} parent=5 // pred_check
        _
      $region10: #{tpu_custom_call.1} parent=5 // pred_check_branch
        %196 = sbr.rel (%p193) target = $region12
      $region11: #{tpu_custom_call.1} parent=5 // pred_region
        %s197 = ssub.s32 %s14, 1
        // Predicated region
        $region13: #{tpu_custom_call.1} parent=11 // pred_check
          %p198 = pneg %p155
        $region14: #{tpu_custom_call.1} parent=11 // pred_check_branch
          %200 = sbr.rel (%p198) target = $region16
        $region15: #{tpu_custom_call.1} parent=11 // pred_region
          _
        $region16: #{tpu_custom_call.1} parent=11 // pred_fallthru
          _
      $region12: #{tpu_custom_call.1} parent=5 // pred_fallthru
        _
      %p201 = scmp.lt.s32.totalorder %s14, 4
      // Predicated region
      $region17: #{tpu_custom_call.1} parent=5 // pred_check
        %p202 = pneg %p201
      $region18: #{tpu_custom_call.1} parent=5 // pred_check_branch
        %204 = sbr.rel (%p202) target = $region20
      $region19: #{tpu_custom_call.1} parent=5 // pred_region
        // Predicated region
        $region21: #{tpu_custom_call.1} parent=19 // pred_check
          %p205 = pneg %p48
        $region22: #{tpu_custom_call.1} parent=19 // pred_check_branch
          %207 = sbr.rel (%p205) target = $region24
        $region23: #{tpu_custom_call.1} parent=19 // pred_region
          %p208 = scmp.lt.s32.totalorder %s21, 1
          %s209 = scalar_select %p208, %s21, 1
          %p210 = scmp.lt.s32.totalorder %s22, 1
          %s211 = scalar_select %p210, %s22, 1
          %s212 = smul.addr %s211, 4
          %s213 = smul.addr %s209, 8
          %s214 = sadd.s32 %s212, %s213
          %s215 = smul.addr %s214, 8
          %s216 = scalar_lea.vmem %s0, %s215
        $region24: #{tpu_custom_call.1} parent=19 // pred_fallthru
          _
        // Predicated region
        $region25: #{tpu_custom_call.1} parent=19 // pred_check
          %p217 = pneg %p74
        $region26: #{tpu_custom_call.1} parent=19 // pred_check_branch
          %219 = sbr.rel (%p217) target = $region28
        $region27: #{tpu_custom_call.1} parent=19 // pred_region
          %p220 = scmp.lt.s32.totalorder %s21, 1
          %s221 = scalar_select %p220, %s21, 1
          %s222 = smul.addr %s221, 64
          %s223 = smul.addr %s222, 4
          %s224 = scalar_lea.vmem %s1, %s223
        $region28: #{tpu_custom_call.1} parent=19 // pred_fallthru
          _
        // Predicated region
        $region29: #{tpu_custom_call.1} parent=19 // pred_check
          %p225 = pneg %p102
        $region30: #{tpu_custom_call.1} parent=19 // pred_check_branch
          %227 = sbr.rel (%p225) target = $region32
        $region31: #{tpu_custom_call.1} parent=19 // pred_region
          %s228 = smul.u32 32, %s22
          %p229 = scmp.lt.s32.totalorder %s21, 1
          %s230 = scalar_select %p229, %s21, 1
          %p231 = scmp.lt.s32.totalorder %s228, 63
          %s232 = scalar_select %p231, %s228, 63
          %s233 = smul.addr %s230, 64
          %s234 = sadd.s32 %s232, %s233
          %s235 = smul.addr %s234, 8
          %s236 = scalar_lea.vmem %s2, %s235
          %s237 = smul.u32 32, %s22
        $region32: #{tpu_custom_call.1} parent=19 // pred_fallthru
          _
        // Predicated region
        $region33: #{tpu_custom_call.1} parent=19 // pred_check
          %p238 = pneg %p128
        $region34: #{tpu_custom_call.1} parent=19 // pred_check_branch
          %240 = sbr.rel (%p238) target = $region36
        $region35: #{tpu_custom_call.1} parent=19 // pred_region
          %p241 = scmp.lt.s32.totalorder %s21, 1
          %s242 = scalar_select %p241, %s21, 1
          %s243 = smul.addr %s242, 4
          %s244 = scalar_lea.vmem %s3, %s243
        $region36: #{tpu_custom_call.1} parent=19 // pred_fallthru
          _
      $region20: #{tpu_custom_call.1} parent=5 // pred_fallthru
        _
      %p245 = scmp.le.s32.totalorder 1, %s14
      %p246 = scmp.lt.s32.totalorder %s14, 5
      %p247 = pnand %p245, %p246
      %p248 = pneg %p247
      // Predicated region
      $region37: #{tpu_custom_call.1} parent=5 // pred_check
        _
      $region38: #{tpu_custom_call.1} parent=5 // pred_check_branch
        %250 = sbr.rel (%p247) target = $region40
      $region39: #{tpu_custom_call.1} parent=5 // pred_region
        %s251 = ssub.s32 %s14, 1
        %p252 = scmp.lt.s32.totalorder %s23, 1
        %s253 = scalar_select %p252, %s23, 1
        %p254 = scmp.lt.s32.totalorder %s24, 1
        %s255 = scalar_select %p254, %s24, 1
        %s256 = smul.addr %s255, 4
        %s257 = smul.addr %s253, 8
        %s258 = sadd.s32 %s256, %s257
        %s259 = smul.addr %s258, 8
        %s260 = scalar_lea.vmem %s0, %s259
        %p261 = pneg %p54
        %p262 = pneg %p51
        %p263 = scmp.lt.s32.totalorder %s23, 1
        %s264 = scalar_select %p263, %s23, 1
        %s265 = smul.addr %s264, 64
        %s266 = smul.addr %s265, 4
        %s267 = scalar_lea.vmem %s1, %s266
        %p268 = pneg %p80
        %p269 = pneg %p77
        %s270 = smul.u32 32, %s24
        %p271 = scmp.lt.s32.totalorder %s23, 1
        %s272 = scalar_select %p271, %s23, 1
        %p273 = scmp.lt.s32.totalorder %s270, 63
        %s274 = scalar_select %p273, %s270, 63
        %s275 = smul.addr %s272, 64
        %s276 = sadd.s32 %s274, %s275
        %s277 = smul.addr %s276, 8
        %s278 = scalar_lea.vmem %s2, %s277
        %p279 = pneg %p108
        %p280 = pneg %p105
        %p281 = scmp.lt.s32.totalorder %s23, 1
        %s282 = scalar_select %p281, %s23, 1
        %s283 = smul.addr %s282, 4
        %s284 = scalar_lea.vmem %s3, %s283
        %p285 = pneg %p134
        %p286 = pneg %p131
        %p287 = pneg %p155
        %p288 = pneg %p152
        %p289 = pneg %p183
        %p290 = pneg %p180
        %s291 = sand.u32 %s170, 1
        %s292 = scalar_lea.sflag [#allocation3], %s291
        %s293 = sand.u32 %s170, 1
        %s294 = smul.addr %s293, 128
        %s295 = scalar_lea.vmem [#allocation2], %s294
        %p296 = scmp.lt.s32.totalorder %s23, 1
        %s297 = scalar_select %p296, %s23, 1
        %p298 = scmp.lt.s32.totalorder %s24, 1
        %s299 = scalar_select %p298, %s24, 1
        %s300 = smul.addr %s299, 4
        %s301 = smul.addr %s297, 8
        %s302 = sadd.s32 %s300, %s301
        %s303 = smul.addr %s302, 8
        %s304 = scalar_lea.vmem %s0, %s303
        %p305 = scmp.lt.s32.totalorder %s23, 1
        %s306 = scalar_select %p305, %s23, 1
        %s307 = smul.addr %s306, 64
        %s308 = smul.addr %s307, 4
        %s309 = scalar_lea.vmem %s1, %s308
        %s310 = smul.u32 32, %s24
        %p311 = scmp.lt.s32.totalorder %s23, 1
        %s312 = scalar_select %p311, %s23, 1
        %p313 = scmp.lt.s32.totalorder %s310, 63
        %s314 = scalar_select %p313, %s310, 63
        %s315 = smul.addr %s312, 64
        %s316 = sadd.s32 %s314, %s315
        %s317 = smul.addr %s316, 8
        %s318 = scalar_lea.vmem %s2, %s317
        %s319 = smul.u32 32, %s24
        %p320 = scmp.lt.s32.totalorder %s23, 1
        %s321 = scalar_select %p320, %s23, 1
        %s322 = smul.addr %s321, 4
        %s323 = scalar_lea.vmem %s3, %s322
        %s324 = smul.u32 32, %s24
        %v326 = vld [vmem:[%s318] sm:$0xff]
        %v327 = vld [vmem:[%s318 + $0x8] sm:$0xff]
        %v328 = vld [vmem:[%s318 + $0x10] sm:$0xff]
        %v329 = vld [vmem:[%s318 + $0x18] sm:$0xff]
        %v330 = vld [vmem:[%s318 + $0x20] sm:$0xff]
        %v331 = vld [vmem:[%s318 + $0x28] sm:$0xff]
        %v332 = vld [vmem:[%s318 + $0x30] sm:$0xff]
        %v333 = vld [vmem:[%s318 + $0x38] sm:$0xff]
        %v334 = vld [vmem:[%s318 + $0x40] sm:$0xff]
        %v335 = vld [vmem:[%s318 + $0x48] sm:$0xff]
        %v336 = vld [vmem:[%s318 + $0x50] sm:$0xff]
        %v337 = vld [vmem:[%s318 + $0x58] sm:$0xff]
        %v338 = vld [vmem:[%s318 + $0x60] sm:$0xff]
        %v339 = vld [vmem:[%s318 + $0x68] sm:$0xff]
        %v340 = vld [vmem:[%s318 + $0x70] sm:$0xff]
        %v341 = vld [vmem:[%s318 + $0x78] sm:$0xff]
        %v342 = vld [vmem:[%s318 + $0x80] sm:$0xff]
        %v343 = vld [vmem:[%s318 + $0x88] sm:$0xff]
        %v344 = vld [vmem:[%s318 + $0x90] sm:$0xff]
        %v345 = vld [vmem:[%s318 + $0x98] sm:$0xff]
        %v346 = vld [vmem:[%s318 + $0xa0] sm:$0xff]
        %v347 = vld [vmem:[%s318 + $0xa8] sm:$0xff]
        %v348 = vld [vmem:[%s318 + $0xb0] sm:$0xff]
        %v349 = vld [vmem:[%s318 + $0xb8] sm:$0xff]
        %v350 = vld [vmem:[%s318 + $0xc0] sm:$0xff]
        %v351 = vld [vmem:[%s318 + $0xc8] sm:$0xff]
        %v352 = vld [vmem:[%s318 + $0xd0] sm:$0xff]
        %v353 = vld [vmem:[%s318 + $0xd8] sm:$0xff]
        %v354 = vld [vmem:[%s318 + $0xe0] sm:$0xff]
        %v355 = vld [vmem:[%s318 + $0xe8] sm:$0xff]
        %v356 = vld [vmem:[%s318 + $0xf0] sm:$0xff]
        %v357 = vld [vmem:[%s318 + $0xf8] sm:$0xff]
        %v358 = vld [vmem:[%s323] sm:$0xf]
        %360 = vset.pattern.permute.xlu0 0
        %361 = vperm.xlu0 %360, %v326
        %v362 = vpop.permute.xlu0 %361
        %365 = vset.pattern.permute.xlu0 0
        %366 = vperm.xlu0 %365, %v327
        %v367 = vpop.permute.xlu0 %366
        %370 = vset.pattern.permute.xlu0 0
        %371 = vperm.xlu0 %370, %v328
        %v372 = vpop.permute.xlu0 %371
        %375 = vset.pattern.permute.xlu0 0
        %376 = vperm.xlu0 %375, %v329
        %v377 = vpop.permute.xlu0 %376
        %380 = vset.pattern.permute.xlu0 0
        %381 = vperm.xlu0 %380, %v330
        %v382 = vpop.permute.xlu0 %381
        %385 = vset.pattern.permute.xlu0 0
        %386 = vperm.xlu0 %385, %v331
        %v387 = vpop.permute.xlu0 %386
        %390 = vset.pattern.permute.xlu0 0
        %391 = vperm.xlu0 %390, %v332
        %v392 = vpop.permute.xlu0 %391
        %395 = vset.pattern.permute.xlu0 0
        %396 = vperm.xlu0 %395, %v333
        %v397 = vpop.permute.xlu0 %396
        %400 = vset.pattern.permute.xlu0 0
        %401 = vperm.xlu0 %400, %v334
        %v402 = vpop.permute.xlu0 %401
        %405 = vset.pattern.permute.xlu0 0
        %406 = vperm.xlu0 %405, %v335
        %v407 = vpop.permute.xlu0 %406
        %410 = vset.pattern.permute.xlu0 0
        %411 = vperm.xlu0 %410, %v336
        %v412 = vpop.permute.xlu0 %411
        %415 = vset.pattern.permute.xlu0 0
        %416 = vperm.xlu0 %415, %v337
        %v417 = vpop.permute.xlu0 %416
        %420 = vset.pattern.permute.xlu0 0
        %421 = vperm.xlu0 %420, %v338
        %v422 = vpop.permute.xlu0 %421
        %425 = vset.pattern.permute.xlu0 0
        %426 = vperm.xlu0 %425, %v339
        %v427 = vpop.permute.xlu0 %426
        %430 = vset.pattern.permute.xlu0 0
        %431 = vperm.xlu0 %430, %v340
        %v432 = vpop.permute.xlu0 %431
        %435 = vset.pattern.permute.xlu0 0
        %436 = vperm.xlu0 %435, %v341
        %v437 = vpop.permute.xlu0 %436
        %440 = vset.pattern.permute.xlu0 0
        %441 = vperm.xlu0 %440, %v342
        %v442 = vpop.permute.xlu0 %441
        %445 = vset.pattern.permute.xlu0 0
        %446 = vperm.xlu0 %445, %v343
        %v447 = vpop.permute.xlu0 %446
        %450 = vset.pattern.permute.xlu0 0
        %451 = vperm.xlu0 %450, %v344
        %v452 = vpop.permute.xlu0 %451
        %455 = vset.pattern.permute.xlu0 0
        %456 = vperm.xlu0 %455, %v345
        %v457 = vpop.permute.xlu0 %456
        %460 = vset.pattern.permute.xlu0 0
        %461 = vperm.xlu0 %460, %v346
        %v462 = vpop.permute.xlu0 %461
        %465 = vset.pattern.permute.xlu0 0
        %466 = vperm.xlu0 %465, %v347
        %v467 = vpop.permute.xlu0 %466
        %470 = vset.pattern.permute.xlu0 0
        %471 = vperm.xlu0 %470, %v348
        %v472 = vpop.permute.xlu0 %471
        %475 = vset.pattern.permute.xlu0 0
        %476 = vperm.xlu0 %475, %v349
        %v477 = vpop.permute.xlu0 %476
        %480 = vset.pattern.permute.xlu0 0
        %481 = vperm.xlu0 %480, %v350
        %v482 = vpop.permute.xlu0 %481
        %485 = vset.pattern.permute.xlu0 0
        %486 = vperm.xlu0 %485, %v351
        %v487 = vpop.permute.xlu0 %486
        %490 = vset.pattern.permute.xlu0 0
        %491 = vperm.xlu0 %490, %v352
        %v492 = vpop.permute.xlu0 %491
        %495 = vset.pattern.permute.xlu0 0
        %496 = vperm.xlu0 %495, %v353
        %v497 = vpop.permute.xlu0 %496
        %500 = vset.pattern.permute.xlu0 0
        %501 = vperm.xlu0 %500, %v354
        %v502 = vpop.permute.xlu0 %501
        %505 = vset.pattern.permute.xlu0 0
        %506 = vperm.xlu0 %505, %v355
        %v507 = vpop.permute.xlu0 %506
        %510 = vset.pattern.permute.xlu0 0
        %511 = vperm.xlu0 %510, %v356
        %v512 = vpop.permute.xlu0 %511
        %515 = vset.pattern.permute.xlu0 0
        %516 = vperm.xlu0 %515, %v357
        %v517 = vpop.permute.xlu0 %516
        %v520 = vlaneseq
        %v521 = vshrl.u32 %v520, 7
        %v522 = vsub.s32 0, %v521
        %v523 = vrot.slane %v358, %v522
        %v524 = vlaneseq
        %v525 = vshrl.u32 %v524, 7
        %v526 = vsub.s32 1, %v525
        %v527 = vrot.slane %v358, %v526
        %v528 = vlaneseq
        %v529 = vshrl.u32 %v528, 7
        %v530 = vsub.s32 2, %v529
        %v531 = vrot.slane %v358, %v530
        %v532 = vlaneseq
        %v533 = vshrl.u32 %v532, 7
        %v534 = vsub.s32 3, %v533
        %v535 = vrot.slane %v358, %v534
        %v540 = vadd.f32 %v362, %v523
        %v541 = vadd.f32 %v362, %v527
        %v542 = vadd.f32 %v362, %v531
        %v543 = vadd.f32 %v362, %v535
        %v544 = vadd.f32 %v367, %v523
        %v545 = vadd.f32 %v367, %v527
        %v546 = vadd.f32 %v367, %v531
        %v547 = vadd.f32 %v367, %v535
        %v548 = vadd.f32 %v372, %v523
        %v549 = vadd.f32 %v372, %v527
        %v550 = vadd.f32 %v372, %v531
        %v551 = vadd.f32 %v372, %v535
        %v552 = vadd.f32 %v377, %v523
        %v553 = vadd.f32 %v377, %v527
        %v554 = vadd.f32 %v377, %v531
        %v555 = vadd.f32 %v377, %v535
        %v556 = vadd.f32 %v382, %v523
        %v557 = vadd.f32 %v382, %v527
        %v558 = vadd.f32 %v382, %v531
        %v559 = vadd.f32 %v382, %v535
        %v560 = vadd.f32 %v387, %v523
        %v561 = vadd.f32 %v387, %v527
        %v562 = vadd.f32 %v387, %v531
        %v563 = vadd.f32 %v387, %v535
        %v564 = vadd.f32 %v392, %v523
        %v565 = vadd.f32 %v392, %v527
        %v566 = vadd.f32 %v392, %v531
        %v567 = vadd.f32 %v392, %v535
        %v568 = vadd.f32 %v397, %v523
        %v569 = vadd.f32 %v397, %v527
        %v570 = vadd.f32 %v397, %v531
        %v571 = vadd.f32 %v397, %v535
        %v572 = vadd.f32 %v402, %v523
        %v573 = vadd.f32 %v402, %v527
        %v574 = vadd.f32 %v402, %v531
        %v575 = vadd.f32 %v402, %v535
        %v576 = vadd.f32 %v407, %v523
        %v577 = vadd.f32 %v407, %v527
        %v578 = vadd.f32 %v407, %v531
        %v579 = vadd.f32 %v407, %v535
        %v580 = vadd.f32 %v412, %v523
        %v581 = vadd.f32 %v412, %v527
        %v582 = vadd.f32 %v412, %v531
        %v583 = vadd.f32 %v412, %v535
        %v584 = vadd.f32 %v417, %v523
        %v585 = vadd.f32 %v417, %v527
        %v586 = vadd.f32 %v417, %v531
        %v587 = vadd.f32 %v417, %v535
        %v588 = vadd.f32 %v422, %v523
        %v589 = vadd.f32 %v422, %v527
        %v590 = vadd.f32 %v422, %v531
        %v591 = vadd.f32 %v422, %v535
        %v592 = vadd.f32 %v427, %v523
        %v593 = vadd.f32 %v427, %v527
        %v594 = vadd.f32 %v427, %v531
        %v595 = vadd.f32 %v427, %v535
        %v596 = vadd.f32 %v432, %v523
        %v597 = vadd.f32 %v432, %v527
        %v598 = vadd.f32 %v432, %v531
        %v599 = vadd.f32 %v432, %v535
        %v600 = vadd.f32 %v437, %v523
        %v601 = vadd.f32 %v437, %v527
        %v602 = vadd.f32 %v437, %v531
        %v603 = vadd.f32 %v437, %v535
        %v604 = vadd.f32 %v442, %v523
        %v605 = vadd.f32 %v442, %v527
        %v606 = vadd.f32 %v442, %v531
        %v607 = vadd.f32 %v442, %v535
        %v608 = vadd.f32 %v447, %v523
        %v609 = vadd.f32 %v447, %v527
        %v610 = vadd.f32 %v447, %v531
        %v611 = vadd.f32 %v447, %v535
        %v612 = vadd.f32 %v452, %v523
        %v613 = vadd.f32 %v452, %v527
        %v614 = vadd.f32 %v452, %v531
        %v615 = vadd.f32 %v452, %v535
        %v616 = vadd.f32 %v457, %v523
        %v617 = vadd.f32 %v457, %v527
        %v618 = vadd.f32 %v457, %v531
        %v619 = vadd.f32 %v457, %v535
        %v620 = vadd.f32 %v462, %v523
        %v621 = vadd.f32 %v462, %v527
        %v622 = vadd.f32 %v462, %v531
        %v623 = vadd.f32 %v462, %v535
        %v624 = vadd.f32 %v467, %v523
        %v625 = vadd.f32 %v467, %v527
        %v626 = vadd.f32 %v467, %v531
        %v627 = vadd.f32 %v467, %v535
        %v628 = vadd.f32 %v472, %v523
        %v629 = vadd.f32 %v472, %v527
        %v630 = vadd.f32 %v472, %v531
        %v631 = vadd.f32 %v472, %v535
        %v632 = vadd.f32 %v477, %v523
        %v633 = vadd.f32 %v477, %v527
        %v634 = vadd.f32 %v477, %v531
        %v635 = vadd.f32 %v477, %v535
        %v636 = vadd.f32 %v482, %v523
        %v637 = vadd.f32 %v482, %v527
        %v638 = vadd.f32 %v482, %v531
        %v639 = vadd.f32 %v482, %v535
        %v640 = vadd.f32 %v487, %v523
        %v641 = vadd.f32 %v487, %v527
        %v642 = vadd.f32 %v487, %v531
        %v643 = vadd.f32 %v487, %v535
        %v644 = vadd.f32 %v492, %v523
        %v645 = vadd.f32 %v492, %v527
        %v646 = vadd.f32 %v492, %v531
        %v647 = vadd.f32 %v492, %v535
        %v648 = vadd.f32 %v497, %v523
        %v649 = vadd.f32 %v497, %v527
        %v650 = vadd.f32 %v497, %v531
        %v651 = vadd.f32 %v497, %v535
        %v652 = vadd.f32 %v502, %v523
        %v653 = vadd.f32 %v502, %v527
        %v654 = vadd.f32 %v502, %v531
        %v655 = vadd.f32 %v502, %v535
        %v656 = vadd.f32 %v507, %v523
        %v657 = vadd.f32 %v507, %v527
        %v658 = vadd.f32 %v507, %v531
        %v659 = vadd.f32 %v507, %v535
        %v660 = vadd.f32 %v512, %v523
        %v661 = vadd.f32 %v512, %v527
        %v662 = vadd.f32 %v512, %v531
        %v663 = vadd.f32 %v512, %v535
        %v664 = vadd.f32 %v517, %v523
        %v665 = vadd.f32 %v517, %v527
        %v666 = vadd.f32 %v517, %v531
        %v667 = vadd.f32 %v517, %v535
        %vm668 = vcmp.gt.f32.partialorder %v540, 0.0
        %vm669 = vcmp.gt.f32.partialorder %v541, 0.0
        %vm670 = vcmp.gt.f32.partialorder %v542, 0.0
        %vm671 = vcmp.gt.f32.partialorder %v543, 0.0
        %vm672 = vcmp.gt.f32.partialorder %v544, 0.0
        %vm673 = vcmp.gt.f32.partialorder %v545, 0.0
        %vm674 = vcmp.gt.f32.partialorder %v546, 0.0
        %vm675 = vcmp.gt.f32.partialorder %v547, 0.0
        %vm676 = vcmp.gt.f32.partialorder %v548, 0.0
        %vm677 = vcmp.gt.f32.partialorder %v549, 0.0
        %vm678 = vcmp.gt.f32.partialorder %v550, 0.0
        %vm679 = vcmp.gt.f32.partialorder %v551, 0.0
        %vm680 = vcmp.gt.f32.partialorder %v552, 0.0
        %vm681 = vcmp.gt.f32.partialorder %v553, 0.0
        %vm682 = vcmp.gt.f32.partialorder %v554, 0.0
        %vm683 = vcmp.gt.f32.partialorder %v555, 0.0
        %vm684 = vcmp.gt.f32.partialorder %v556, 0.0
        %vm685 = vcmp.gt.f32.partialorder %v557, 0.0
        %vm686 = vcmp.gt.f32.partialorder %v558, 0.0
        %vm687 = vcmp.gt.f32.partialorder %v559, 0.0
        %vm688 = vcmp.gt.f32.partialorder %v560, 0.0
        %vm689 = vcmp.gt.f32.partialorder %v561, 0.0
        %vm690 = vcmp.gt.f32.partialorder %v562, 0.0
        %vm691 = vcmp.gt.f32.partialorder %v563, 0.0
        %vm692 = vcmp.gt.f32.partialorder %v564, 0.0
        %vm693 = vcmp.gt.f32.partialorder %v565, 0.0
        %vm694 = vcmp.gt.f32.partialorder %v566, 0.0
        %vm695 = vcmp.gt.f32.partialorder %v567, 0.0
        %vm696 = vcmp.gt.f32.partialorder %v568, 0.0
        %vm697 = vcmp.gt.f32.partialorder %v569, 0.0
        %vm698 = vcmp.gt.f32.partialorder %v570, 0.0
        %vm699 = vcmp.gt.f32.partialorder %v571, 0.0
        %vm700 = vcmp.gt.f32.partialorder %v572, 0.0
        %vm701 = vcmp.gt.f32.partialorder %v573, 0.0
        %vm702 = vcmp.gt.f32.partialorder %v574, 0.0
        %vm703 = vcmp.gt.f32.partialorder %v575, 0.0
        %vm704 = vcmp.gt.f32.partialorder %v576, 0.0
        %vm705 = vcmp.gt.f32.partialorder %v577, 0.0
        %vm706 = vcmp.gt.f32.partialorder %v578, 0.0
        %vm707 = vcmp.gt.f32.partialorder %v579, 0.0
        %vm708 = vcmp.gt.f32.partialorder %v580, 0.0
        %vm709 = vcmp.gt.f32.partialorder %v581, 0.0
        %vm710 = vcmp.gt.f32.partialorder %v582, 0.0
        %vm711 = vcmp.gt.f32.partialorder %v583, 0.0
        %vm712 = vcmp.gt.f32.partialorder %v584, 0.0
        %vm713 = vcmp.gt.f32.partialorder %v585, 0.0
        %vm714 = vcmp.gt.f32.partialorder %v586, 0.0
        %vm715 = vcmp.gt.f32.partialorder %v587, 0.0
        %vm716 = vcmp.gt.f32.partialorder %v588, 0.0
        %vm717 = vcmp.gt.f32.partialorder %v589, 0.0
        %vm718 = vcmp.gt.f32.partialorder %v590, 0.0
        %vm719 = vcmp.gt.f32.partialorder %v591, 0.0
        %vm720 = vcmp.gt.f32.partialorder %v592, 0.0
        %vm721 = vcmp.gt.f32.partialorder %v593, 0.0
        %vm722 = vcmp.gt.f32.partialorder %v594, 0.0
        %vm723 = vcmp.gt.f32.partialorder %v595, 0.0
        %vm724 = vcmp.gt.f32.partialorder %v596, 0.0
        %vm725 = vcmp.gt.f32.partialorder %v597, 0.0
        %vm726 = vcmp.gt.f32.partialorder %v598, 0.0
        %vm727 = vcmp.gt.f32.partialorder %v599, 0.0
        %vm728 = vcmp.gt.f32.partialorder %v600, 0.0
        %vm729 = vcmp.gt.f32.partialorder %v601, 0.0
        %vm730 = vcmp.gt.f32.partialorder %v602, 0.0
        %vm731 = vcmp.gt.f32.partialorder %v603, 0.0
        %vm732 = vcmp.gt.f32.partialorder %v604, 0.0
        %vm733 = vcmp.gt.f32.partialorder %v605, 0.0
        %vm734 = vcmp.gt.f32.partialorder %v606, 0.0
        %vm735 = vcmp.gt.f32.partialorder %v607, 0.0
        %vm736 = vcmp.gt.f32.partialorder %v608, 0.0
        %vm737 = vcmp.gt.f32.partialorder %v609, 0.0
        %vm738 = vcmp.gt.f32.partialorder %v610, 0.0
        %vm739 = vcmp.gt.f32.partialorder %v611, 0.0
        %vm740 = vcmp.gt.f32.partialorder %v612, 0.0
        %vm741 = vcmp.gt.f32.partialorder %v613, 0.0
        %vm742 = vcmp.gt.f32.partialorder %v614, 0.0
        %vm743 = vcmp.gt.f32.partialorder %v615, 0.0
        %vm744 = vcmp.gt.f32.partialorder %v616, 0.0
        %vm745 = vcmp.gt.f32.partialorder %v617, 0.0
        %vm746 = vcmp.gt.f32.partialorder %v618, 0.0
        %vm747 = vcmp.gt.f32.partialorder %v619, 0.0
        %vm748 = vcmp.gt.f32.partialorder %v620, 0.0
        %vm749 = vcmp.gt.f32.partialorder %v621, 0.0
        %vm750 = vcmp.gt.f32.partialorder %v622, 0.0
        %vm751 = vcmp.gt.f32.partialorder %v623, 0.0
        %vm752 = vcmp.gt.f32.partialorder %v624, 0.0
        %vm753 = vcmp.gt.f32.partialorder %v625, 0.0
        %vm754 = vcmp.gt.f32.partialorder %v626, 0.0
        %vm755 = vcmp.gt.f32.partialorder %v627, 0.0
        %vm756 = vcmp.gt.f32.partialorder %v628, 0.0
        %vm757 = vcmp.gt.f32.partialorder %v629, 0.0
        %vm758 = vcmp.gt.f32.partialorder %v630, 0.0
        %vm759 = vcmp.gt.f32.partialorder %v631, 0.0
        %vm760 = vcmp.gt.f32.partialorder %v632, 0.0
        %vm761 = vcmp.gt.f32.partialorder %v633, 0.0
        %vm762 = vcmp.gt.f32.partialorder %v634, 0.0
        %vm763 = vcmp.gt.f32.partialorder %v635, 0.0
        %vm764 = vcmp.gt.f32.partialorder %v636, 0.0
        %vm765 = vcmp.gt.f32.partialorder %v637, 0.0
        %vm766 = vcmp.gt.f32.partialorder %v638, 0.0
        %vm767 = vcmp.gt.f32.partialorder %v639, 0.0
        %vm768 = vcmp.gt.f32.partialorder %v640, 0.0
        %vm769 = vcmp.gt.f32.partialorder %v641, 0.0
        %vm770 = vcmp.gt.f32.partialorder %v642, 0.0
        %vm771 = vcmp.gt.f32.partialorder %v643, 0.0
        %vm772 = vcmp.gt.f32.partialorder %v644, 0.0
        %vm773 = vcmp.gt.f32.partialorder %v645, 0.0
        %vm774 = vcmp.gt.f32.partialorder %v646, 0.0
        %vm775 = vcmp.gt.f32.partialorder %v647, 0.0
        %vm776 = vcmp.gt.f32.partialorder %v648, 0.0
        %vm777 = vcmp.gt.f32.partialorder %v649, 0.0
        %vm778 = vcmp.gt.f32.partialorder %v650, 0.0
        %vm779 = vcmp.gt.f32.partialorder %v651, 0.0
        %vm780 = vcmp.gt.f32.partialorder %v652, 0.0
        %vm781 = vcmp.gt.f32.partialorder %v653, 0.0
        %vm782 = vcmp.gt.f32.partialorder %v654, 0.0
        %vm783 = vcmp.gt.f32.partialorder %v655, 0.0
        %vm784 = vcmp.gt.f32.partialorder %v656, 0.0
        %vm785 = vcmp.gt.f32.partialorder %v657, 0.0
        %vm786 = vcmp.gt.f32.partialorder %v658, 0.0
        %vm787 = vcmp.gt.f32.partialorder %v659, 0.0
        %vm788 = vcmp.gt.f32.partialorder %v660, 0.0
        %vm789 = vcmp.gt.f32.partialorder %v661, 0.0
        %vm790 = vcmp.gt.f32.partialorder %v662, 0.0
        %vm791 = vcmp.gt.f32.partialorder %v663, 0.0
        %vm792 = vcmp.gt.f32.partialorder %v664, 0.0
        %vm793 = vcmp.gt.f32.partialorder %v665, 0.0
        %vm794 = vcmp.gt.f32.partialorder %v666, 0.0
        %vm795 = vcmp.gt.f32.partialorder %v667, 0.0
        %v796 = vmul.f32 %v540, 0.2
        %v797 = vmul.f32 %v541, 0.2
        %v798 = vmul.f32 %v542, 0.2
        %v799 = vmul.f32 %v543, 0.2
        %v800 = vmul.f32 %v544, 0.2
        %v801 = vmul.f32 %v545, 0.2
        %v802 = vmul.f32 %v546, 0.2
        %v803 = vmul.f32 %v547, 0.2
        %v804 = vmul.f32 %v548, 0.2
        %v805 = vmul.f32 %v549, 0.2
        %v806 = vmul.f32 %v550, 0.2
        %v807 = vmul.f32 %v551, 0.2
        %v808 = vmul.f32 %v552, 0.2
        %v809 = vmul.f32 %v553, 0.2
        %v810 = vmul.f32 %v554, 0.2
        %v811 = vmul.f32 %v555, 0.2
        %v812 = vmul.f32 %v556, 0.2
        %v813 = vmul.f32 %v557, 0.2
        %v814 = vmul.f32 %v558, 0.2
        %v815 = vmul.f32 %v559, 0.2
        %v816 = vmul.f32 %v560, 0.2
        %v817 = vmul.f32 %v561, 0.2
        %v818 = vmul.f32 %v562, 0.2
        %v819 = vmul.f32 %v563, 0.2
        %v820 = vmul.f32 %v564, 0.2
        %v821 = vmul.f32 %v565, 0.2
        %v822 = vmul.f32 %v566, 0.2
        %v823 = vmul.f32 %v567, 0.2
        %v824 = vmul.f32 %v568, 0.2
        %v825 = vmul.f32 %v569, 0.2
        %v826 = vmul.f32 %v570, 0.2
        %v827 = vmul.f32 %v571, 0.2
        %v828 = vmul.f32 %v572, 0.2
        %v829 = vmul.f32 %v573, 0.2
        %v830 = vmul.f32 %v574, 0.2
        %v831 = vmul.f32 %v575, 0.2
        %v832 = vmul.f32 %v576, 0.2
        %v833 = vmul.f32 %v577, 0.2
        %v834 = vmul.f32 %v578, 0.2
        %v835 = vmul.f32 %v579, 0.2
        %v836 = vmul.f32 %v580, 0.2
        %v837 = vmul.f32 %v581, 0.2
        %v838 = vmul.f32 %v582, 0.2
        %v839 = vmul.f32 %v583, 0.2
        %v840 = vmul.f32 %v584, 0.2
        %v841 = vmul.f32 %v585, 0.2
        %v842 = vmul.f32 %v586, 0.2
        %v843 = vmul.f32 %v587, 0.2
        %v844 = vmul.f32 %v588, 0.2
        %v845 = vmul.f32 %v589, 0.2
        %v846 = vmul.f32 %v590, 0.2
        %v847 = vmul.f32 %v591, 0.2
        %v848 = vmul.f32 %v592, 0.2
        %v849 = vmul.f32 %v593, 0.2
        %v850 = vmul.f32 %v594, 0.2
        %v851 = vmul.f32 %v595, 0.2
        %v852 = vmul.f32 %v596, 0.2
        %v853 = vmul.f32 %v597, 0.2
        %v854 = vmul.f32 %v598, 0.2
        %v855 = vmul.f32 %v599, 0.2
        %v856 = vmul.f32 %v600, 0.2
        %v857 = vmul.f32 %v601, 0.2
        %v858 = vmul.f32 %v602, 0.2
        %v859 = vmul.f32 %v603, 0.2
        %v860 = vmul.f32 %v604, 0.2
        %v861 = vmul.f32 %v605, 0.2
        %v862 = vmul.f32 %v606, 0.2
        %v863 = vmul.f32 %v607, 0.2
        %v864 = vmul.f32 %v608, 0.2
        %v865 = vmul.f32 %v609, 0.2
        %v866 = vmul.f32 %v610, 0.2
        %v867 = vmul.f32 %v611, 0.2
        %v868 = vmul.f32 %v612, 0.2
        %v869 = vmul.f32 %v613, 0.2
        %v870 = vmul.f32 %v614, 0.2
        %v871 = vmul.f32 %v615, 0.2
        %v872 = vmul.f32 %v616, 0.2
        %v873 = vmul.f32 %v617, 0.2
        %v874 = vmul.f32 %v618, 0.2
        %v875 = vmul.f32 %v619, 0.2
        %v876 = vmul.f32 %v620, 0.2
        %v877 = vmul.f32 %v621, 0.2
        %v878 = vmul.f32 %v622, 0.2
        %v879 = vmul.f32 %v623, 0.2
        %v880 = vmul.f32 %v624, 0.2
        %v881 = vmul.f32 %v625, 0.2
        %v882 = vmul.f32 %v626, 0.2
        %v883 = vmul.f32 %v627, 0.2
        %v884 = vmul.f32 %v628, 0.2
        %v885 = vmul.f32 %v629, 0.2
        %v886 = vmul.f32 %v630, 0.2
        %v887 = vmul.f32 %v631, 0.2
        %v888 = vmul.f32 %v632, 0.2
        %v889 = vmul.f32 %v633, 0.2
        %v890 = vmul.f32 %v634, 0.2
        %v891 = vmul.f32 %v635, 0.2
        %v892 = vmul.f32 %v636, 0.2
        %v893 = vmul.f32 %v637, 0.2
        %v894 = vmul.f32 %v638, 0.2
        %v895 = vmul.f32 %v639, 0.2
        %v896 = vmul.f32 %v640, 0.2
        %v897 = vmul.f32 %v641, 0.2
        %v898 = vmul.f32 %v642, 0.2
        %v899 = vmul.f32 %v643, 0.2
        %v900 = vmul.f32 %v644, 0.2
        %v901 = vmul.f32 %v645, 0.2
        %v902 = vmul.f32 %v646, 0.2
        %v903 = vmul.f32 %v647, 0.2
        %v904 = vmul.f32 %v648, 0.2
        %v905 = vmul.f32 %v649, 0.2
        %v906 = vmul.f32 %v650, 0.2
        %v907 = vmul.f32 %v651, 0.2
        %v908 = vmul.f32 %v652, 0.2
        %v909 = vmul.f32 %v653, 0.2
        %v910 = vmul.f32 %v654, 0.2
        %v911 = vmul.f32 %v655, 0.2
        %v912 = vmul.f32 %v656, 0.2
        %v913 = vmul.f32 %v657, 0.2
        %v914 = vmul.f32 %v658, 0.2
        %v915 = vmul.f32 %v659, 0.2
        %v916 = vmul.f32 %v660, 0.2
        %v917 = vmul.f32 %v661, 0.2
        %v918 = vmul.f32 %v662, 0.2
        %v919 = vmul.f32 %v663, 0.2
        %v920 = vmul.f32 %v664, 0.2
        %v921 = vmul.f32 %v665, 0.2
        %v922 = vmul.f32 %v666, 0.2
        %v923 = vmul.f32 %v667, 0.2
        %v924 = vsel %vm668, %v540, %v796
        %v925 = vsel %vm669, %v541, %v797
        %v926 = vsel %vm670, %v542, %v798
        %v927 = vsel %vm671, %v543, %v799
        %v928 = vsel %vm672, %v544, %v800
        %v929 = vsel %vm673, %v545, %v801
        %v930 = vsel %vm674, %v546, %v802
        %v931 = vsel %vm675, %v547, %v803
        %v932 = vsel %vm676, %v548, %v804
        %v933 = vsel %vm677, %v549, %v805
        %v934 = vsel %vm678, %v550, %v806
        %v935 = vsel %vm679, %v551, %v807
        %v936 = vsel %vm680, %v552, %v808
        %v937 = vsel %vm681, %v553, %v809
        %v938 = vsel %vm682, %v554, %v810
        %v939 = vsel %vm683, %v555, %v811
        %v940 = vsel %vm684, %v556, %v812
        %v941 = vsel %vm685, %v557, %v813
        %v942 = vsel %vm686, %v558, %v814
        %v943 = vsel %vm687, %v559, %v815
        %v944 = vsel %vm688, %v560, %v816
        %v945 = vsel %vm689, %v561, %v817
        %v946 = vsel %vm690, %v562, %v818
        %v947 = vsel %vm691, %v563, %v819
        %v948 = vsel %vm692, %v564, %v820
        %v949 = vsel %vm693, %v565, %v821
        %v950 = vsel %vm694, %v566, %v822
        %v951 = vsel %vm695, %v567, %v823
        %v952 = vsel %vm696, %v568, %v824
        %v953 = vsel %vm697, %v569, %v825
        %v954 = vsel %vm698, %v570, %v826
        %v955 = vsel %vm699, %v571, %v827
        %v956 = vsel %vm700, %v572, %v828
        %v957 = vsel %vm701, %v573, %v829
        %v958 = vsel %vm702, %v574, %v830
        %v959 = vsel %vm703, %v575, %v831
        %v960 = vsel %vm704, %v576, %v832
        %v961 = vsel %vm705, %v577, %v833
        %v962 = vsel %vm706, %v578, %v834
        %v963 = vsel %vm707, %v579, %v835
        %v964 = vsel %vm708, %v580, %v836
        %v965 = vsel %vm709, %v581, %v837
        %v966 = vsel %vm710, %v582, %v838
        %v967 = vsel %vm711, %v583, %v839
        %v968 = vsel %vm712, %v584, %v840
        %v969 = vsel %vm713, %v585, %v841
        %v970 = vsel %vm714, %v586, %v842
        %v971 = vsel %vm715, %v587, %v843
        %v972 = vsel %vm716, %v588, %v844
        %v973 = vsel %vm717, %v589, %v845
        %v974 = vsel %vm718, %v590, %v846
        %v975 = vsel %vm719, %v591, %v847
        %v976 = vsel %vm720, %v592, %v848
        %v977 = vsel %vm721, %v593, %v849
        %v978 = vsel %vm722, %v594, %v850
        %v979 = vsel %vm723, %v595, %v851
        %v980 = vsel %vm724, %v596, %v852
        %v981 = vsel %vm725, %v597, %v853
        %v982 = vsel %vm726, %v598, %v854
        %v983 = vsel %vm727, %v599, %v855
        %v984 = vsel %vm728, %v600, %v856
        %v985 = vsel %vm729, %v601, %v857
        %v986 = vsel %vm730, %v602, %v858
        %v987 = vsel %vm731, %v603, %v859
        %v988 = vsel %vm732, %v604, %v860
        %v989 = vsel %vm733, %v605, %v861
        %v990 = vsel %vm734, %v606, %v862
        %v991 = vsel %vm735, %v607, %v863
        %v992 = vsel %vm736, %v608, %v864
        %v993 = vsel %vm737, %v609, %v865
        %v994 = vsel %vm738, %v610, %v866
        %v995 = vsel %vm739, %v611, %v867
        %v996 = vsel %vm740, %v612, %v868
        %v997 = vsel %vm741, %v613, %v869
        %v998 = vsel %vm742, %v614, %v870
        %v999 = vsel %vm743, %v615, %v871
        %v1000 = vsel %vm744, %v616, %v872
        %v1001 = vsel %vm745, %v617, %v873
        %v1002 = vsel %vm746, %v618, %v874
        %v1003 = vsel %vm747, %v619, %v875
        %v1004 = vsel %vm748, %v620, %v876
        %v1005 = vsel %vm749, %v621, %v877
        %v1006 = vsel %vm750, %v622, %v878
        %v1007 = vsel %vm751, %v623, %v879
        %v1008 = vsel %vm752, %v624, %v880
        %v1009 = vsel %vm753, %v625, %v881
        %v1010 = vsel %vm754, %v626, %v882
        %v1011 = vsel %vm755, %v627, %v883
        %v1012 = vsel %vm756, %v628, %v884
        %v1013 = vsel %vm757, %v629, %v885
        %v1014 = vsel %vm758, %v630, %v886
        %v1015 = vsel %vm759, %v631, %v887
        %v1016 = vsel %vm760, %v632, %v888
        %v1017 = vsel %vm761, %v633, %v889
        %v1018 = vsel %vm762, %v634, %v890
        %v1019 = vsel %vm763, %v635, %v891
        %v1020 = vsel %vm764, %v636, %v892
        %v1021 = vsel %vm765, %v637, %v893
        %v1022 = vsel %vm766, %v638, %v894
        %v1023 = vsel %vm767, %v639, %v895
        %v1024 = vsel %vm768, %v640, %v896
        %v1025 = vsel %vm769, %v641, %v897
        %v1026 = vsel %vm770, %v642, %v898
        %v1027 = vsel %vm771, %v643, %v899
        %v1028 = vsel %vm772, %v644, %v900
        %v1029 = vsel %vm773, %v645, %v901
        %v1030 = vsel %vm774, %v646, %v902
        %v1031 = vsel %vm775, %v647, %v903
        %v1032 = vsel %vm776, %v648, %v904
        %v1033 = vsel %vm777, %v649, %v905
        %v1034 = vsel %vm778, %v650, %v906
        %v1035 = vsel %vm779, %v651, %v907
        %v1036 = vsel %vm780, %v652, %v908
        %v1037 = vsel %vm781, %v653, %v909
        %v1038 = vsel %vm782, %v654, %v910
        %v1039 = vsel %vm783, %v655, %v911
        %v1040 = vsel %vm784, %v656, %v912
        %v1041 = vsel %vm785, %v657, %v913
        %v1042 = vsel %vm786, %v658, %v914
        %v1043 = vsel %vm787, %v659, %v915
        %v1044 = vsel %vm788, %v660, %v916
        %v1045 = vsel %vm789, %v661, %v917
        %v1046 = vsel %vm790, %v662, %v918
        %v1047 = vsel %vm791, %v663, %v919
        %v1048 = vsel %vm792, %v664, %v920
        %v1049 = vsel %vm793, %v665, %v921
        %v1050 = vsel %vm794, %v666, %v922
        %v1051 = vsel %vm795, %v667, %v923
        %v1052 = vld [vmem:[%s304] sm:$0xff]
        %v1053 = vld [vmem:[%s304 + $0x8] sm:$0xff]
        %v1054 = vld [vmem:[%s304 + $0x10] sm:$0xff]
        %v1055 = vld [vmem:[%s304 + $0x18] sm:$0xff]
        %v1056 = vld [vmem:[%s4] sm:$0xff]
        %v1057 = vld [vmem:[%s4 + $0x8] sm:$0xff]
        %v1058 = vld [vmem:[%s4 + $0x10] sm:$0xff]
        %v1059 = vld [vmem:[%s4 + $0x18] sm:$0xff]
        %v1060 = vlaneseq
        %v1061 = vshrl.u32 %v1060, 7
        %v1062 = vsub.s32 0, %v1061
        %v1063 = vrot.slane %v1052, %v1062
        %v1064 = vlaneseq
        %v1065 = vshrl.u32 %v1064, 7
        %v1066 = vsub.s32 0, %v1065
        %v1067 = vrot.slane %v1053, %v1066
        %v1068 = vlaneseq
        %v1069 = vshrl.u32 %v1068, 7
        %v1070 = vsub.s32 0, %v1069
        %v1071 = vrot.slane %v1054, %v1070
        %v1072 = vlaneseq
        %v1073 = vshrl.u32 %v1072, 7
        %v1074 = vsub.s32 0, %v1073
        %v1075 = vrot.slane %v1055, %v1074
        %1076 = vset.pattern.permute.xlu0 0
        %1077 = vperm.xlu0 %1076, %v1056
        %v1078 = vpop.permute.xlu0 %1077
        %1079 = vset.pattern.permute.xlu0 0
        %1080 = vperm.xlu0 %1079, %v1057
        %v1081 = vpop.permute.xlu0 %1080
        %1082 = vset.pattern.permute.xlu0 0
        %1083 = vperm.xlu0 %1082, %v1058
        %v1084 = vpop.permute.xlu0 %1083
        %1085 = vset.pattern.permute.xlu0 0
        %1086 = vperm.xlu0 %1085, %v1059
        %v1087 = vpop.permute.xlu0 %1086
        %v1088 = vand.u32 %v1063, %v1078
        %v1089 = vand.u32 %v1067, %v1078
        %v1090 = vand.u32 %v1071, %v1078
        %v1091 = vand.u32 %v1075, %v1078
        %v1092 = vand.u32 %v1063, %v1081
        %v1093 = vand.u32 %v1067, %v1081
        %v1094 = vand.u32 %v1071, %v1081
        %v1095 = vand.u32 %v1075, %v1081
        %v1096 = vand.u32 %v1063, %v1084
        %v1097 = vand.u32 %v1067, %v1084
        %v1098 = vand.u32 %v1071, %v1084
        %v1099 = vand.u32 %v1075, %v1084
        %v1100 = vand.u32 %v1063, %v1087
        %v1101 = vand.u32 %v1067, %v1087
        %v1102 = vand.u32 %v1071, %v1087
        %v1103 = vand.u32 %v1075, %v1087
        %v1104 = vlaneseq
        %v1105 = vshrl.u32 %v1104, 7
        %v1106 = vsub.s32 1, %v1105
        %v1107 = vrot.slane %v1052, %v1106
        %v1108 = vlaneseq
        %v1109 = vshrl.u32 %v1108, 7
        %v1110 = vsub.s32 1, %v1109
        %v1111 = vrot.slane %v1053, %v1110
        %v1112 = vlaneseq
        %v1113 = vshrl.u32 %v1112, 7
        %v1114 = vsub.s32 1, %v1113
        %v1115 = vrot.slane %v1054, %v1114
        %v1116 = vlaneseq
        %v1117 = vshrl.u32 %v1116, 7
        %v1118 = vsub.s32 1, %v1117
        %v1119 = vrot.slane %v1055, %v1118
        %v1120 = vand.u32 %v1107, %v1078
        %v1121 = vand.u32 %v1111, %v1078
        %v1122 = vand.u32 %v1115, %v1078
        %v1123 = vand.u32 %v1119, %v1078
        %v1124 = vand.u32 %v1107, %v1081
        %v1125 = vand.u32 %v1111, %v1081
        %v1126 = vand.u32 %v1115, %v1081
        %v1127 = vand.u32 %v1119, %v1081
        %v1128 = vand.u32 %v1107, %v1084
        %v1129 = vand.u32 %v1111, %v1084
        %v1130 = vand.u32 %v1115, %v1084
        %v1131 = vand.u32 %v1119, %v1084
        %v1132 = vand.u32 %v1107, %v1087
        %v1133 = vand.u32 %v1111, %v1087
        %v1134 = vand.u32 %v1115, %v1087
        %v1135 = vand.u32 %v1119, %v1087
        %v1136 = vlaneseq
        %v1137 = vshrl.u32 %v1136, 7
        %v1138 = vsub.s32 2, %v1137
        %v1139 = vrot.slane %v1052, %v1138
        %v1140 = vlaneseq
        %v1141 = vshrl.u32 %v1140, 7
        %v1142 = vsub.s32 2, %v1141
        %v1143 = vrot.slane %v1053, %v1142
        %v1144 = vlaneseq
        %v1145 = vshrl.u32 %v1144, 7
        %v1146 = vsub.s32 2, %v1145
        %v1147 = vrot.slane %v1054, %v1146
        %v1148 = vlaneseq
        %v1149 = vshrl.u32 %v1148, 7
        %v1150 = vsub.s32 2, %v1149
        %v1151 = vrot.slane %v1055, %v1150
        %v1152 = vand.u32 %v1139, %v1078
        %v1153 = vand.u32 %v1143, %v1078
        %v1154 = vand.u32 %v1147, %v1078
        %v1155 = vand.u32 %v1151, %v1078
        %v1156 = vand.u32 %v1139, %v1081
        %v1157 = vand.u32 %v1143, %v1081
        %v1158 = vand.u32 %v1147, %v1081
        %v1159 = vand.u32 %v1151, %v1081
        %v1160 = vand.u32 %v1139, %v1084
        %v1161 = vand.u32 %v1143, %v1084
        %v1162 = vand.u32 %v1147, %v1084
        %v1163 = vand.u32 %v1151, %v1084
        %v1164 = vand.u32 %v1139, %v1087
        %v1165 = vand.u32 %v1143, %v1087
        %v1166 = vand.u32 %v1147, %v1087
        %v1167 = vand.u32 %v1151, %v1087
        %v1168 = vlaneseq
        %v1169 = vshrl.u32 %v1168, 7
        %v1170 = vsub.s32 3, %v1169
        %v1171 = vrot.slane %v1052, %v1170
        %v1172 = vlaneseq
        %v1173 = vshrl.u32 %v1172, 7
        %v1174 = vsub.s32 3, %v1173
        %v1175 = vrot.slane %v1053, %v1174
        %v1176 = vlaneseq
        %v1177 = vshrl.u32 %v1176, 7
        %v1178 = vsub.s32 3, %v1177
        %v1179 = vrot.slane %v1054, %v1178
        %v1180 = vlaneseq
        %v1181 = vshrl.u32 %v1180, 7
        %v1182 = vsub.s32 3, %v1181
        %v1183 = vrot.slane %v1055, %v1182
        %v1184 = vand.u32 %v1171, %v1078
        %v1185 = vand.u32 %v1175, %v1078
        %v1186 = vand.u32 %v1179, %v1078
        %v1187 = vand.u32 %v1183, %v1078
        %v1188 = vand.u32 %v1171, %v1081
        %v1189 = vand.u32 %v1175, %v1081
        %v1190 = vand.u32 %v1179, %v1081
        %v1191 = vand.u32 %v1183, %v1081
        %v1192 = vand.u32 %v1171, %v1084
        %v1193 = vand.u32 %v1175, %v1084
        %v1194 = vand.u32 %v1179, %v1084
        %v1195 = vand.u32 %v1183, %v1084
        %v1196 = vand.u32 %v1171, %v1087
        %v1197 = vand.u32 %v1175, %v1087
        %v1198 = vand.u32 %v1179, %v1087
        %v1199 = vand.u32 %v1183, %v1087
        %v1200 = vlaneseq
        %v1201 = vshrl.u32 %v1200, 7
        %v1202 = vsub.s32 4, %v1201
        %v1203 = vrot.slane %v1052, %v1202
        %v1204 = vlaneseq
        %v1205 = vshrl.u32 %v1204, 7
        %v1206 = vsub.s32 4, %v1205
        %v1207 = vrot.slane %v1053, %v1206
        %v1208 = vlaneseq
        %v1209 = vshrl.u32 %v1208, 7
        %v1210 = vsub.s32 4, %v1209
        %v1211 = vrot.slane %v1054, %v1210
        %v1212 = vlaneseq
        %v1213 = vshrl.u32 %v1212, 7
        %v1214 = vsub.s32 4, %v1213
        %v1215 = vrot.slane %v1055, %v1214
        %v1216 = vand.u32 %v1203, %v1078
        %v1217 = vand.u32 %v1207, %v1078
        %v1218 = vand.u32 %v1211, %v1078
        %v1219 = vand.u32 %v1215, %v1078
        %v1220 = vand.u32 %v1203, %v1081
        %v1221 = vand.u32 %v1207, %v1081
        %v1222 = vand.u32 %v1211, %v1081
        %v1223 = vand.u32 %v1215, %v1081
        %v1224 = vand.u32 %v1203, %v1084
        %v1225 = vand.u32 %v1207, %v1084
        %v1226 = vand.u32 %v1211, %v1084
        %v1227 = vand.u32 %v1215, %v1084
        %v1228 = vand.u32 %v1203, %v1087
        %v1229 = vand.u32 %v1207, %v1087
        %v1230 = vand.u32 %v1211, %v1087
        %v1231 = vand.u32 %v1215, %v1087
        %v1232 = vlaneseq
        %v1233 = vshrl.u32 %v1232, 7
        %v1234 = vsub.s32 5, %v1233
        %v1235 = vrot.slane %v1052, %v1234
        %v1236 = vlaneseq
        %v1237 = vshrl.u32 %v1236, 7
        %v1238 = vsub.s32 5, %v1237
        %v1239 = vrot.slane %v1053, %v1238
        %v1240 = vlaneseq
        %v1241 = vshrl.u32 %v1240, 7
        %v1242 = vsub.s32 5, %v1241
        %v1243 = vrot.slane %v1054, %v1242
        %v1244 = vlaneseq
        %v1245 = vshrl.u32 %v1244, 7
        %v1246 = vsub.s32 5, %v1245
        %v1247 = vrot.slane %v1055, %v1246
        %v1248 = vand.u32 %v1235, %v1078
        %v1249 = vand.u32 %v1239, %v1078
        %v1250 = vand.u32 %v1243, %v1078
        %v1251 = vand.u32 %v1247, %v1078
        %v1252 = vand.u32 %v1235, %v1081
        %v1253 = vand.u32 %v1239, %v1081
        %v1254 = vand.u32 %v1243, %v1081
        %v1255 = vand.u32 %v1247, %v1081
        %v1256 = vand.u32 %v1235, %v1084
        %v1257 = vand.u32 %v1239, %v1084
        %v1258 = vand.u32 %v1243, %v1084
        %v1259 = vand.u32 %v1247, %v1084
        %v1260 = vand.u32 %v1235, %v1087
        %v1261 = vand.u32 %v1239, %v1087
        %v1262 = vand.u32 %v1243, %v1087
        %v1263 = vand.u32 %v1247, %v1087
        %v1264 = vlaneseq
        %v1265 = vshrl.u32 %v1264, 7
        %v1266 = vsub.s32 6, %v1265
        %v1267 = vrot.slane %v1052, %v1266
        %v1268 = vlaneseq
        %v1269 = vshrl.u32 %v1268, 7
        %v1270 = vsub.s32 6, %v1269
        %v1271 = vrot.slane %v1053, %v1270
        %v1272 = vlaneseq
        %v1273 = vshrl.u32 %v1272, 7
        %v1274 = vsub.s32 6, %v1273
        %v1275 = vrot.slane %v1054, %v1274
        %v1276 = vlaneseq
        %v1277 = vshrl.u32 %v1276, 7
        %v1278 = vsub.s32 6, %v1277
        %v1279 = vrot.slane %v1055, %v1278
        %v1280 = vand.u32 %v1267, %v1078
        %v1281 = vand.u32 %v1271, %v1078
        %v1282 = vand.u32 %v1275, %v1078
        %v1283 = vand.u32 %v1279, %v1078
        %v1284 = vand.u32 %v1267, %v1081
        %v1285 = vand.u32 %v1271, %v1081
        %v1286 = vand.u32 %v1275, %v1081
        %v1287 = vand.u32 %v1279, %v1081
        %v1288 = vand.u32 %v1267, %v1084
        %v1289 = vand.u32 %v1271, %v1084
        %v1290 = vand.u32 %v1275, %v1084
        %v1291 = vand.u32 %v1279, %v1084
        %v1292 = vand.u32 %v1267, %v1087
        %v1293 = vand.u32 %v1271, %v1087
        %v1294 = vand.u32 %v1275, %v1087
        %v1295 = vand.u32 %v1279, %v1087
        %v1296 = vlaneseq
        %v1297 = vshrl.u32 %v1296, 7
        %v1298 = vsub.s32 7, %v1297
        %v1299 = vrot.slane %v1052, %v1298
        %v1300 = vlaneseq
        %v1301 = vshrl.u32 %v1300, 7
        %v1302 = vsub.s32 7, %v1301
        %v1303 = vrot.slane %v1053, %v1302
        %v1304 = vlaneseq
        %v1305 = vshrl.u32 %v1304, 7
        %v1306 = vsub.s32 7, %v1305
        %v1307 = vrot.slane %v1054, %v1306
        %v1308 = vlaneseq
        %v1309 = vshrl.u32 %v1308, 7
        %v1310 = vsub.s32 7, %v1309
        %v1311 = vrot.slane %v1055, %v1310
        %v1312 = vand.u32 %v1299, %v1078
        %v1313 = vand.u32 %v1303, %v1078
        %v1314 = vand.u32 %v1307, %v1078
        %v1315 = vand.u32 %v1311, %v1078
        %v1316 = vand.u32 %v1299, %v1081
        %v1317 = vand.u32 %v1303, %v1081
        %v1318 = vand.u32 %v1307, %v1081
        %v1319 = vand.u32 %v1311, %v1081
        %v1320 = vand.u32 %v1299, %v1084
        %v1321 = vand.u32 %v1303, %v1084
        %v1322 = vand.u32 %v1307, %v1084
        %v1323 = vand.u32 %v1311, %v1084
        %v1324 = vand.u32 %v1299, %v1087
        %v1325 = vand.u32 %v1303, %v1087
        %v1326 = vand.u32 %v1307, %v1087
        %v1327 = vand.u32 %v1311, %v1087
        %vm1328 = vcmp.ne.s32.totalorder %v1088, 0
        %vm1329 = vcmp.ne.s32.totalorder %v1089, 0
        %vm1330 = vcmp.ne.s32.totalorder %v1090, 0
        %vm1331 = vcmp.ne.s32.totalorder %v1091, 0
        %vm1332 = vcmp.ne.s32.totalorder %v1092, 0
        %vm1333 = vcmp.ne.s32.totalorder %v1093, 0
        %vm1334 = vcmp.ne.s32.totalorder %v1094, 0
        %vm1335 = vcmp.ne.s32.totalorder %v1095, 0
        %vm1336 = vcmp.ne.s32.totalorder %v1096, 0
        %vm1337 = vcmp.ne.s32.totalorder %v1097, 0
        %vm1338 = vcmp.ne.s32.totalorder %v1098, 0
        %vm1339 = vcmp.ne.s32.totalorder %v1099, 0
        %vm1340 = vcmp.ne.s32.totalorder %v1100, 0
        %vm1341 = vcmp.ne.s32.totalorder %v1101, 0
        %vm1342 = vcmp.ne.s32.totalorder %v1102, 0
        %vm1343 = vcmp.ne.s32.totalorder %v1103, 0
        %vm1344 = vcmp.ne.s32.totalorder %v1120, 0
        %vm1345 = vcmp.ne.s32.totalorder %v1121, 0
        %vm1346 = vcmp.ne.s32.totalorder %v1122, 0
        %vm1347 = vcmp.ne.s32.totalorder %v1123, 0
        %vm1348 = vcmp.ne.s32.totalorder %v1124, 0
        %vm1349 = vcmp.ne.s32.totalorder %v1125, 0
        %vm1350 = vcmp.ne.s32.totalorder %v1126, 0
        %vm1351 = vcmp.ne.s32.totalorder %v1127, 0
        %vm1352 = vcmp.ne.s32.totalorder %v1128, 0
        %vm1353 = vcmp.ne.s32.totalorder %v1129, 0
        %vm1354 = vcmp.ne.s32.totalorder %v1130, 0
        %vm1355 = vcmp.ne.s32.totalorder %v1131, 0
        %vm1356 = vcmp.ne.s32.totalorder %v1132, 0
        %vm1357 = vcmp.ne.s32.totalorder %v1133, 0
        %vm1358 = vcmp.ne.s32.totalorder %v1134, 0
        %vm1359 = vcmp.ne.s32.totalorder %v1135, 0
        %vm1360 = vcmp.ne.s32.totalorder %v1152, 0
        %vm1361 = vcmp.ne.s32.totalorder %v1153, 0
        %vm1362 = vcmp.ne.s32.totalorder %v1154, 0
        %vm1363 = vcmp.ne.s32.totalorder %v1155, 0
        %vm1364 = vcmp.ne.s32.totalorder %v1156, 0
        %vm1365 = vcmp.ne.s32.totalorder %v1157, 0
        %vm1366 = vcmp.ne.s32.totalorder %v1158, 0
        %vm1367 = vcmp.ne.s32.totalorder %v1159, 0
        %vm1368 = vcmp.ne.s32.totalorder %v1160, 0
        %vm1369 = vcmp.ne.s32.totalorder %v1161, 0
        %vm1370 = vcmp.ne.s32.totalorder %v1162, 0
        %vm1371 = vcmp.ne.s32.totalorder %v1163, 0
        %vm1372 = vcmp.ne.s32.totalorder %v1164, 0
        %vm1373 = vcmp.ne.s32.totalorder %v1165, 0
        %vm1374 = vcmp.ne.s32.totalorder %v1166, 0
        %vm1375 = vcmp.ne.s32.totalorder %v1167, 0
        %vm1376 = vcmp.ne.s32.totalorder %v1184, 0
        %vm1377 = vcmp.ne.s32.totalorder %v1185, 0
        %vm1378 = vcmp.ne.s32.totalorder %v1186, 0
        %vm1379 = vcmp.ne.s32.totalorder %v1187, 0
        %vm1380 = vcmp.ne.s32.totalorder %v1188, 0
        %vm1381 = vcmp.ne.s32.totalorder %v1189, 0
        %vm1382 = vcmp.ne.s32.totalorder %v1190, 0
        %vm1383 = vcmp.ne.s32.totalorder %v1191, 0
        %vm1384 = vcmp.ne.s32.totalorder %v1192, 0
        %vm1385 = vcmp.ne.s32.totalorder %v1193, 0
        %vm1386 = vcmp.ne.s32.totalorder %v1194, 0
        %vm1387 = vcmp.ne.s32.totalorder %v1195, 0
        %vm1388 = vcmp.ne.s32.totalorder %v1196, 0
        %vm1389 = vcmp.ne.s32.totalorder %v1197, 0
        %vm1390 = vcmp.ne.s32.totalorder %v1198, 0
        %vm1391 = vcmp.ne.s32.totalorder %v1199, 0
        %vm1392 = vcmp.ne.s32.totalorder %v1216, 0
        %vm1393 = vcmp.ne.s32.totalorder %v1217, 0
        %vm1394 = vcmp.ne.s32.totalorder %v1218, 0
        %vm1395 = vcmp.ne.s32.totalorder %v1219, 0
        %vm1396 = vcmp.ne.s32.totalorder %v1220, 0
        %vm1397 = vcmp.ne.s32.totalorder %v1221, 0
        %vm1398 = vcmp.ne.s32.totalorder %v1222, 0
        %vm1399 = vcmp.ne.s32.totalorder %v1223, 0
        %vm1400 = vcmp.ne.s32.totalorder %v1224, 0
        %vm1401 = vcmp.ne.s32.totalorder %v1225, 0
        %vm1402 = vcmp.ne.s32.totalorder %v1226, 0
        %vm1403 = vcmp.ne.s32.totalorder %v1227, 0
        %vm1404 = vcmp.ne.s32.totalorder %v1228, 0
        %vm1405 = vcmp.ne.s32.totalorder %v1229, 0
        %vm1406 = vcmp.ne.s32.totalorder %v1230, 0
        %vm1407 = vcmp.ne.s32.totalorder %v1231, 0
        %vm1408 = vcmp.ne.s32.totalorder %v1248, 0
        %vm1409 = vcmp.ne.s32.totalorder %v1249, 0
        %vm1410 = vcmp.ne.s32.totalorder %v1250, 0
        %vm1411 = vcmp.ne.s32.totalorder %v1251, 0
        %vm1412 = vcmp.ne.s32.totalorder %v1252, 0
        %vm1413 = vcmp.ne.s32.totalorder %v1253, 0
        %vm1414 = vcmp.ne.s32.totalorder %v1254, 0
        %vm1415 = vcmp.ne.s32.totalorder %v1255, 0
        %vm1416 = vcmp.ne.s32.totalorder %v1256, 0
        %vm1417 = vcmp.ne.s32.totalorder %v1257, 0
        %vm1418 = vcmp.ne.s32.totalorder %v1258, 0
        %vm1419 = vcmp.ne.s32.totalorder %v1259, 0
        %vm1420 = vcmp.ne.s32.totalorder %v1260, 0
        %vm1421 = vcmp.ne.s32.totalorder %v1261, 0
        %vm1422 = vcmp.ne.s32.totalorder %v1262, 0
        %vm1423 = vcmp.ne.s32.totalorder %v1263, 0
        %vm1424 = vcmp.ne.s32.totalorder %v1280, 0
        %vm1425 = vcmp.ne.s32.totalorder %v1281, 0
        %vm1426 = vcmp.ne.s32.totalorder %v1282, 0
        %vm1427 = vcmp.ne.s32.totalorder %v1283, 0
        %vm1428 = vcmp.ne.s32.totalorder %v1284, 0
        %vm1429 = vcmp.ne.s32.totalorder %v1285, 0
        %vm1430 = vcmp.ne.s32.totalorder %v1286, 0
        %vm1431 = vcmp.ne.s32.totalorder %v1287, 0
        %vm1432 = vcmp.ne.s32.totalorder %v1288, 0
        %vm1433 = vcmp.ne.s32.totalorder %v1289, 0
        %vm1434 = vcmp.ne.s32.totalorder %v1290, 0
        %vm1435 = vcmp.ne.s32.totalorder %v1291, 0
        %vm1436 = vcmp.ne.s32.totalorder %v1292, 0
        %vm1437 = vcmp.ne.s32.totalorder %v1293, 0
        %vm1438 = vcmp.ne.s32.totalorder %v1294, 0
        %vm1439 = vcmp.ne.s32.totalorder %v1295, 0
        %vm1440 = vcmp.ne.s32.totalorder %v1312, 0
        %vm1441 = vcmp.ne.s32.totalorder %v1313, 0
        %vm1442 = vcmp.ne.s32.totalorder %v1314, 0
        %vm1443 = vcmp.ne.s32.totalorder %v1315, 0
        %vm1444 = vcmp.ne.s32.totalorder %v1316, 0
        %vm1445 = vcmp.ne.s32.totalorder %v1317, 0
        %vm1446 = vcmp.ne.s32.totalorder %v1318, 0
        %vm1447 = vcmp.ne.s32.totalorder %v1319, 0
        %vm1448 = vcmp.ne.s32.totalorder %v1320, 0
        %vm1449 = vcmp.ne.s32.totalorder %v1321, 0
        %vm1450 = vcmp.ne.s32.totalorder %v1322, 0
        %vm1451 = vcmp.ne.s32.totalorder %v1323, 0
        %vm1452 = vcmp.ne.s32.totalorder %v1324, 0
        %vm1453 = vcmp.ne.s32.totalorder %v1325, 0
        %vm1454 = vcmp.ne.s32.totalorder %v1326, 0
        %vm1455 = vcmp.ne.s32.totalorder %v1327, 0
        %v1456 = vsel %vm1328, %v924, -9e+15
        %v1457 = vsel %vm1329, %v925, -9e+15
        %v1458 = vsel %vm1330, %v926, -9e+15
        %v1459 = vsel %vm1331, %v927, -9e+15
        %v1460 = vsel %vm1332, %v928, -9e+15
        %v1461 = vsel %vm1333, %v929, -9e+15
        %v1462 = vsel %vm1334, %v930, -9e+15
        %v1463 = vsel %vm1335, %v931, -9e+15
        %v1464 = vsel %vm1336, %v932, -9e+15
        %v1465 = vsel %vm1337, %v933, -9e+15
        %v1466 = vsel %vm1338, %v934, -9e+15
        %v1467 = vsel %vm1339, %v935, -9e+15
        %v1468 = vsel %vm1340, %v936, -9e+15
        %v1469 = vsel %vm1341, %v937, -9e+15
        %v1470 = vsel %vm1342, %v938, -9e+15
        %v1471 = vsel %vm1343, %v939, -9e+15
        %v1472 = vsel %vm1344, %v940, -9e+15
        %v1473 = vsel %vm1345, %v941, -9e+15
        %v1474 = vsel %vm1346, %v942, -9e+15
        %v1475 = vsel %vm1347, %v943, -9e+15
        %v1476 = vsel %vm1348, %v944, -9e+15
        %v1477 = vsel %vm1349, %v945, -9e+15
        %v1478 = vsel %vm1350, %v946, -9e+15
        %v1479 = vsel %vm1351, %v947, -9e+15
        %v1480 = vsel %vm1352, %v948, -9e+15
        %v1481 = vsel %vm1353, %v949, -9e+15
        %v1482 = vsel %vm1354, %v950, -9e+15
        %v1483 = vsel %vm1355, %v951, -9e+15
        %v1484 = vsel %vm1356, %v952, -9e+15
        %v1485 = vsel %vm1357, %v953, -9e+15
        %v1486 = vsel %vm1358, %v954, -9e+15
        %v1487 = vsel %vm1359, %v955, -9e+15
        %v1488 = vsel %vm1360, %v956, -9e+15
        %v1489 = vsel %vm1361, %v957, -9e+15
        %v1490 = vsel %vm1362, %v958, -9e+15
        %v1491 = vsel %vm1363, %v959, -9e+15
        %v1492 = vsel %vm1364, %v960, -9e+15
        %v1493 = vsel %vm1365, %v961, -9e+15
        %v1494 = vsel %vm1366, %v962, -9e+15
        %v1495 = vsel %vm1367, %v963, -9e+15
        %v1496 = vsel %vm1368, %v964, -9e+15
        %v1497 = vsel %vm1369, %v965, -9e+15
        %v1498 = vsel %vm1370, %v966, -9e+15
        %v1499 = vsel %vm1371, %v967, -9e+15
        %v1500 = vsel %vm1372, %v968, -9e+15
        %v1501 = vsel %vm1373, %v969, -9e+15
        %v1502 = vsel %vm1374, %v970, -9e+15
        %v1503 = vsel %vm1375, %v971, -9e+15
        %v1504 = vsel %vm1376, %v972, -9e+15
        %v1505 = vsel %vm1377, %v973, -9e+15
        %v1506 = vsel %vm1378, %v974, -9e+15
        %v1507 = vsel %vm1379, %v975, -9e+15
        %v1508 = vsel %vm1380, %v976, -9e+15
        %v1509 = vsel %vm1381, %v977, -9e+15
        %v1510 = vsel %vm1382, %v978, -9e+15
        %v1511 = vsel %vm1383, %v979, -9e+15
        %v1512 = vsel %vm1384, %v980, -9e+15
        %v1513 = vsel %vm1385, %v981, -9e+15
        %v1514 = vsel %vm1386, %v982, -9e+15
        %v1515 = vsel %vm1387, %v983, -9e+15
        %v1516 = vsel %vm1388, %v984, -9e+15
        %v1517 = vsel %vm1389, %v985, -9e+15
        %v1518 = vsel %vm1390, %v986, -9e+15
        %v1519 = vsel %vm1391, %v987, -9e+15
        %v1520 = vsel %vm1392, %v988, -9e+15
        %v1521 = vsel %vm1393, %v989, -9e+15
        %v1522 = vsel %vm1394, %v990, -9e+15
        %v1523 = vsel %vm1395, %v991, -9e+15
        %v1524 = vsel %vm1396, %v992, -9e+15
        %v1525 = vsel %vm1397, %v993, -9e+15
        %v1526 = vsel %vm1398, %v994, -9e+15
        %v1527 = vsel %vm1399, %v995, -9e+15
        %v1528 = vsel %vm1400, %v996, -9e+15
        %v1529 = vsel %vm1401, %v997, -9e+15
        %v1530 = vsel %vm1402, %v998, -9e+15
        %v1531 = vsel %vm1403, %v999, -9e+15
        %v1532 = vsel %vm1404, %v1000, -9e+15
        %v1533 = vsel %vm1405, %v1001, -9e+15
        %v1534 = vsel %vm1406, %v1002, -9e+15
        %v1535 = vsel %vm1407, %v1003, -9e+15
        %v1536 = vsel %vm1408, %v1004, -9e+15
        %v1537 = vsel %vm1409, %v1005, -9e+15
        %v1538 = vsel %vm1410, %v1006, -9e+15
        %v1539 = vsel %vm1411, %v1007, -9e+15
        %v1540 = vsel %vm1412, %v1008, -9e+15
        %v1541 = vsel %vm1413, %v1009, -9e+15
        %v1542 = vsel %vm1414, %v1010, -9e+15
        %v1543 = vsel %vm1415, %v1011, -9e+15
        %v1544 = vsel %vm1416, %v1012, -9e+15
        %v1545 = vsel %vm1417, %v1013, -9e+15
        %v1546 = vsel %vm1418, %v1014, -9e+15
        %v1547 = vsel %vm1419, %v1015, -9e+15
        %v1548 = vsel %vm1420, %v1016, -9e+15
        %v1549 = vsel %vm1421, %v1017, -9e+15
        %v1550 = vsel %vm1422, %v1018, -9e+15
        %v1551 = vsel %vm1423, %v1019, -9e+15
        %v1552 = vsel %vm1424, %v1020, -9e+15
        %v1553 = vsel %vm1425, %v1021, -9e+15
        %v1554 = vsel %vm1426, %v1022, -9e+15
        %v1555 = vsel %vm1427, %v1023, -9e+15
        %v1556 = vsel %vm1428, %v1024, -9e+15
        %v1557 = vsel %vm1429, %v1025, -9e+15
        %v1558 = vsel %vm1430, %v1026, -9e+15
        %v1559 = vsel %vm1431, %v1027, -9e+15
        %v1560 = vsel %vm1432, %v1028, -9e+15
        %v1561 = vsel %vm1433, %v1029, -9e+15
        %v1562 = vsel %vm1434, %v1030, -9e+15
        %v1563 = vsel %vm1435, %v1031, -9e+15
        %v1564 = vsel %vm1436, %v1032, -9e+15
        %v1565 = vsel %vm1437, %v1033, -9e+15
        %v1566 = vsel %vm1438, %v1034, -9e+15
        %v1567 = vsel %vm1439, %v1035, -9e+15
        %v1568 = vsel %vm1440, %v1036, -9e+15
        %v1569 = vsel %vm1441, %v1037, -9e+15
        %v1570 = vsel %vm1442, %v1038, -9e+15
        %v1571 = vsel %vm1443, %v1039, -9e+15
        %v1572 = vsel %vm1444, %v1040, -9e+15
        %v1573 = vsel %vm1445, %v1041, -9e+15
        %v1574 = vsel %vm1446, %v1042, -9e+15
        %v1575 = vsel %vm1447, %v1043, -9e+15
        %v1576 = vsel %vm1448, %v1044, -9e+15
        %v1577 = vsel %vm1449, %v1045, -9e+15
        %v1578 = vsel %vm1450, %v1046, -9e+15
        %v1579 = vsel %vm1451, %v1047, -9e+15
        %v1580 = vsel %vm1452, %v1048, -9e+15
        %v1581 = vsel %vm1453, %v1049, -9e+15
        %v1582 = vsel %vm1454, %v1050, -9e+15
        %v1583 = vsel %vm1455, %v1051, -9e+15
        %v1584 = vlaneseq
        %v1585 = vand.u32 %v1584, 127
        %v1586 = vadd.s32 %v1585, 128
        %v1587 = vadd.s32 %v1585, 256
        %v1588 = vadd.s32 %v1585, 384
        %vm1589 = vcmp.lt.s32.totalorder %v1585, 384
        %vm1590 = vcmp.lt.s32.totalorder %v1586, 384
        %vm1591 = vcmp.lt.s32.totalorder %v1587, 384
        %vm1592 = vcmp.lt.s32.totalorder %v1588, 384
        %v1593 = vsel %vm1589, %v1456, -inf
        %v1594 = vsel %vm1590, %v1457, -inf
        %v1595 = vsel %vm1591, %v1458, -inf
        %v1596 = vsel %vm1592, %v1459, -inf
        %v1597 = vsel %vm1589, %v1460, -inf
        %v1598 = vsel %vm1590, %v1461, -inf
        %v1599 = vsel %vm1591, %v1462, -inf
        %v1600 = vsel %vm1592, %v1463, -inf
        %v1601 = vsel %vm1589, %v1464, -inf
        %v1602 = vsel %vm1590, %v1465, -inf
        %v1603 = vsel %vm1591, %v1466, -inf
        %v1604 = vsel %vm1592, %v1467, -inf
        %v1605 = vsel %vm1589, %v1468, -inf
        %v1606 = vsel %vm1590, %v1469, -inf
        %v1607 = vsel %vm1591, %v1470, -inf
        %v1608 = vsel %vm1592, %v1471, -inf
        %v1609 = vsel %vm1589, %v1472, -inf
        %v1610 = vsel %vm1590, %v1473, -inf
        %v1611 = vsel %vm1591, %v1474, -inf
        %v1612 = vsel %vm1592, %v1475, -inf
        %v1613 = vsel %vm1589, %v1476, -inf
        %v1614 = vsel %vm1590, %v1477, -inf
        %v1615 = vsel %vm1591, %v1478, -inf
        %v1616 = vsel %vm1592, %v1479, -inf
        %v1617 = vsel %vm1589, %v1480, -inf
        %v1618 = vsel %vm1590, %v1481, -inf
        %v1619 = vsel %vm1591, %v1482, -inf
        %v1620 = vsel %vm1592, %v1483, -inf
        %v1621 = vsel %vm1589, %v1484, -inf
        %v1622 = vsel %vm1590, %v1485, -inf
        %v1623 = vsel %vm1591, %v1486, -inf
        %v1624 = vsel %vm1592, %v1487, -inf
        %v1625 = vsel %vm1589, %v1488, -inf
        %v1626 = vsel %vm1590, %v1489, -inf
        %v1627 = vsel %vm1591, %v1490, -inf
        %v1628 = vsel %vm1592, %v1491, -inf
        %v1629 = vsel %vm1589, %v1492, -inf
        %v1630 = vsel %vm1590, %v1493, -inf
        %v1631 = vsel %vm1591, %v1494, -inf
        %v1632 = vsel %vm1592, %v1495, -inf
        %v1633 = vsel %vm1589, %v1496, -inf
        %v1634 = vsel %vm1590, %v1497, -inf
        %v1635 = vsel %vm1591, %v1498, -inf
        %v1636 = vsel %vm1592, %v1499, -inf
        %v1637 = vsel %vm1589, %v1500, -inf
        %v1638 = vsel %vm1590, %v1501, -inf
        %v1639 = vsel %vm1591, %v1502, -inf
        %v1640 = vsel %vm1592, %v1503, -inf
        %v1641 = vsel %vm1589, %v1504, -inf
        %v1642 = vsel %vm1590, %v1505, -inf
        %v1643 = vsel %vm1591, %v1506, -inf
        %v1644 = vsel %vm1592, %v1507, -inf
        %v1645 = vsel %vm1589, %v1508, -inf
        %v1646 = vsel %vm1590, %v1509, -inf
        %v1647 = vsel %vm1591, %v1510, -inf
        %v1648 = vsel %vm1592, %v1511, -inf
        %v1649 = vsel %vm1589, %v1512, -inf
        %v1650 = vsel %vm1590, %v1513, -inf
        %v1651 = vsel %vm1591, %v1514, -inf
        %v1652 = vsel %vm1592, %v1515, -inf
        %v1653 = vsel %vm1589, %v1516, -inf
        %v1654 = vsel %vm1590, %v1517, -inf
        %v1655 = vsel %vm1591, %v1518, -inf
        %v1656 = vsel %vm1592, %v1519, -inf
        %v1657 = vsel %vm1589, %v1520, -inf
        %v1658 = vsel %vm1590, %v1521, -inf
        %v1659 = vsel %vm1591, %v1522, -inf
        %v1660 = vsel %vm1592, %v1523, -inf
        %v1661 = vsel %vm1589, %v1524, -inf
        %v1662 = vsel %vm1590, %v1525, -inf
        %v1663 = vsel %vm1591, %v1526, -inf
        %v1664 = vsel %vm1592, %v1527, -inf
        %v1665 = vsel %vm1589, %v1528, -inf
        %v1666 = vsel %vm1590, %v1529, -inf
        %v1667 = vsel %vm1591, %v1530, -inf
        %v1668 = vsel %vm1592, %v1531, -inf
        %v1669 = vsel %vm1589, %v1532, -inf
        %v1670 = vsel %vm1590, %v1533, -inf
        %v1671 = vsel %vm1591, %v1534, -inf
        %v1672 = vsel %vm1592, %v1535, -inf
        %v1673 = vsel %vm1589, %v1536, -inf
        %v1674 = vsel %vm1590, %v1537, -inf
        %v1675 = vsel %vm1591, %v1538, -inf
        %v1676 = vsel %vm1592, %v1539, -inf
        %v1677 = vsel %vm1589, %v1540, -inf
        %v1678 = vsel %vm1590, %v1541, -inf
        %v1679 = vsel %vm1591, %v1542, -inf
        %v1680 = vsel %vm1592, %v1543, -inf
        %v1681 = vsel %vm1589, %v1544, -inf
        %v1682 = vsel %vm1590, %v1545, -inf
        %v1683 = vsel %vm1591, %v1546, -inf
        %v1684 = vsel %vm1592, %v1547, -inf
        %v1685 = vsel %vm1589, %v1548, -inf
        %v1686 = vsel %vm1590, %v1549, -inf
        %v1687 = vsel %vm1591, %v1550, -inf
        %v1688 = vsel %vm1592, %v1551, -inf
        %v1689 = vsel %vm1589, %v1552, -inf
        %v1690 = vsel %vm1590, %v1553, -inf
        %v1691 = vsel %vm1591, %v1554, -inf
        %v1692 = vsel %vm1592, %v1555, -inf
        %v1693 = vsel %vm1589, %v1556, -inf
        %v1694 = vsel %vm1590, %v1557, -inf
        %v1695 = vsel %vm1591, %v1558, -inf
        %v1696 = vsel %vm1592, %v1559, -inf
        %v1697 = vsel %vm1589, %v1560, -inf
        %v1698 = vsel %vm1590, %v1561, -inf
        %v1699 = vsel %vm1591, %v1562, -inf
        %v1700 = vsel %vm1592, %v1563, -inf
        %v1701 = vsel %vm1589, %v1564, -inf
        %v1702 = vsel %vm1590, %v1565, -inf
        %v1703 = vsel %vm1591, %v1566, -inf
        %v1704 = vsel %vm1592, %v1567, -inf
        %v1705 = vsel %vm1589, %v1568, -inf
        %v1706 = vsel %vm1590, %v1569, -inf
        %v1707 = vsel %vm1591, %v1570, -inf
        %v1708 = vsel %vm1592, %v1571, -inf
        %v1709 = vsel %vm1589, %v1572, -inf
        %v1710 = vsel %vm1590, %v1573, -inf
        %v1711 = vsel %vm1591, %v1574, -inf
        %v1712 = vsel %vm1592, %v1575, -inf
        %v1713 = vsel %vm1589, %v1576, -inf
        %v1714 = vsel %vm1590, %v1577, -inf
        %v1715 = vsel %vm1591, %v1578, -inf
        %v1716 = vsel %vm1592, %v1579, -inf
        %v1717 = vsel %vm1589, %v1580, -inf
        %v1718 = vsel %vm1590, %v1581, -inf
        %v1719 = vsel %vm1591, %v1582, -inf
        %v1720 = vsel %vm1592, %v1583, -inf
        %v1721 = vmax.f32 %v1593, %v1594
        %v1722 = vmax.f32 %v1721, %v1595
        %v1723 = vmax.f32 %v1722, %v1596
        %1724 = vmax.xlane.f32.xlu0 %v1723
        %v1725 = vpop.xlane.xlu0 %1724
        %v1726 = vmax.f32 %v1597, %v1598
        %v1727 = vmax.f32 %v1726, %v1599
        %v1728 = vmax.f32 %v1727, %v1600
        %1729 = vmax.xlane.f32.xlu0 %v1728
        %v1730 = vpop.xlane.xlu0 %1729
        %v1731 = vmax.f32 %v1601, %v1602
        %v1732 = vmax.f32 %v1731, %v1603
        %v1733 = vmax.f32 %v1732, %v1604
        %1734 = vmax.xlane.f32.xlu0 %v1733
        %v1735 = vpop.xlane.xlu0 %1734
        %v1736 = vmax.f32 %v1605, %v1606
        %v1737 = vmax.f32 %v1736, %v1607
        %v1738 = vmax.f32 %v1737, %v1608
        %1739 = vmax.xlane.f32.xlu0 %v1738
        %v1740 = vpop.xlane.xlu0 %1739
        %v1741 = vmax.f32 %v1609, %v1610
        %v1742 = vmax.f32 %v1741, %v1611
        %v1743 = vmax.f32 %v1742, %v1612
        %1744 = vmax.xlane.f32.xlu0 %v1743
        %v1745 = vpop.xlane.xlu0 %1744
        %v1746 = vmax.f32 %v1613, %v1614
        %v1747 = vmax.f32 %v1746, %v1615
        %v1748 = vmax.f32 %v1747, %v1616
        %1749 = vmax.xlane.f32.xlu0 %v1748
        %v1750 = vpop.xlane.xlu0 %1749
        %v1751 = vmax.f32 %v1617, %v1618
        %v1752 = vmax.f32 %v1751, %v1619
        %v1753 = vmax.f32 %v1752, %v1620
        %1754 = vmax.xlane.f32.xlu0 %v1753
        %v1755 = vpop.xlane.xlu0 %1754
        %v1756 = vmax.f32 %v1621, %v1622
        %v1757 = vmax.f32 %v1756, %v1623
        %v1758 = vmax.f32 %v1757, %v1624
        %1759 = vmax.xlane.f32.xlu0 %v1758
        %v1760 = vpop.xlane.xlu0 %1759
        %v1761 = vmax.f32 %v1625, %v1626
        %v1762 = vmax.f32 %v1761, %v1627
        %v1763 = vmax.f32 %v1762, %v1628
        %1764 = vmax.xlane.f32.xlu0 %v1763
        %v1765 = vpop.xlane.xlu0 %1764
        %v1766 = vmax.f32 %v1629, %v1630
        %v1767 = vmax.f32 %v1766, %v1631
        %v1768 = vmax.f32 %v1767, %v1632
        %1769 = vmax.xlane.f32.xlu0 %v1768
        %v1770 = vpop.xlane.xlu0 %1769
        %v1771 = vmax.f32 %v1633, %v1634
        %v1772 = vmax.f32 %v1771, %v1635
        %v1773 = vmax.f32 %v1772, %v1636
        %1774 = vmax.xlane.f32.xlu0 %v1773
        %v1775 = vpop.xlane.xlu0 %1774
        %v1776 = vmax.f32 %v1637, %v1638
        %v1777 = vmax.f32 %v1776, %v1639
        %v1778 = vmax.f32 %v1777, %v1640
        %1779 = vmax.xlane.f32.xlu0 %v1778
        %v1780 = vpop.xlane.xlu0 %1779
        %v1781 = vmax.f32 %v1641, %v1642
        %v1782 = vmax.f32 %v1781, %v1643
        %v1783 = vmax.f32 %v1782, %v1644
        %1784 = vmax.xlane.f32.xlu0 %v1783
        %v1785 = vpop.xlane.xlu0 %1784
        %v1786 = vmax.f32 %v1645, %v1646
        %v1787 = vmax.f32 %v1786, %v1647
        %v1788 = vmax.f32 %v1787, %v1648
        %1789 = vmax.xlane.f32.xlu0 %v1788
        %v1790 = vpop.xlane.xlu0 %1789
        %v1791 = vmax.f32 %v1649, %v1650
        %v1792 = vmax.f32 %v1791, %v1651
        %v1793 = vmax.f32 %v1792, %v1652
        %1794 = vmax.xlane.f32.xlu0 %v1793
        %v1795 = vpop.xlane.xlu0 %1794
        %v1796 = vmax.f32 %v1653, %v1654
        %v1797 = vmax.f32 %v1796, %v1655
        %v1798 = vmax.f32 %v1797, %v1656
        %1799 = vmax.xlane.f32.xlu0 %v1798
        %v1800 = vpop.xlane.xlu0 %1799
        %v1801 = vmax.f32 %v1657, %v1658
        %v1802 = vmax.f32 %v1801, %v1659
        %v1803 = vmax.f32 %v1802, %v1660
        %1804 = vmax.xlane.f32.xlu0 %v1803
        %v1805 = vpop.xlane.xlu0 %1804
        %v1806 = vmax.f32 %v1661, %v1662
        %v1807 = vmax.f32 %v1806, %v1663
        %v1808 = vmax.f32 %v1807, %v1664
        %1809 = vmax.xlane.f32.xlu0 %v1808
        %v1810 = vpop.xlane.xlu0 %1809
        %v1811 = vmax.f32 %v1665, %v1666
        %v1812 = vmax.f32 %v1811, %v1667
        %v1813 = vmax.f32 %v1812, %v1668
        %1814 = vmax.xlane.f32.xlu0 %v1813
        %v1815 = vpop.xlane.xlu0 %1814
        %v1816 = vmax.f32 %v1669, %v1670
        %v1817 = vmax.f32 %v1816, %v1671
        %v1818 = vmax.f32 %v1817, %v1672
        %1819 = vmax.xlane.f32.xlu0 %v1818
        %v1820 = vpop.xlane.xlu0 %1819
        %v1821 = vmax.f32 %v1673, %v1674
        %v1822 = vmax.f32 %v1821, %v1675
        %v1823 = vmax.f32 %v1822, %v1676
        %1824 = vmax.xlane.f32.xlu0 %v1823
        %v1825 = vpop.xlane.xlu0 %1824
        %v1826 = vmax.f32 %v1677, %v1678
        %v1827 = vmax.f32 %v1826, %v1679
        %v1828 = vmax.f32 %v1827, %v1680
        %1829 = vmax.xlane.f32.xlu0 %v1828
        %v1830 = vpop.xlane.xlu0 %1829
        %v1831 = vmax.f32 %v1681, %v1682
        %v1832 = vmax.f32 %v1831, %v1683
        %v1833 = vmax.f32 %v1832, %v1684
        %1834 = vmax.xlane.f32.xlu0 %v1833
        %v1835 = vpop.xlane.xlu0 %1834
        %v1836 = vmax.f32 %v1685, %v1686
        %v1837 = vmax.f32 %v1836, %v1687
        %v1838 = vmax.f32 %v1837, %v1688
        %1839 = vmax.xlane.f32.xlu0 %v1838
        %v1840 = vpop.xlane.xlu0 %1839
        %v1841 = vmax.f32 %v1689, %v1690
        %v1842 = vmax.f32 %v1841, %v1691
        %v1843 = vmax.f32 %v1842, %v1692
        %1844 = vmax.xlane.f32.xlu0 %v1843
        %v1845 = vpop.xlane.xlu0 %1844
        %v1846 = vmax.f32 %v1693, %v1694
        %v1847 = vmax.f32 %v1846, %v1695
        %v1848 = vmax.f32 %v1847, %v1696
        %1849 = vmax.xlane.f32.xlu0 %v1848
        %v1850 = vpop.xlane.xlu0 %1849
        %v1851 = vmax.f32 %v1697, %v1698
        %v1852 = vmax.f32 %v1851, %v1699
        %v1853 = vmax.f32 %v1852, %v1700
        %1854 = vmax.xlane.f32.xlu0 %v1853
        %v1855 = vpop.xlane.xlu0 %1854
        %v1856 = vmax.f32 %v1701, %v1702
        %v1857 = vmax.f32 %v1856, %v1703
        %v1858 = vmax.f32 %v1857, %v1704
        %1859 = vmax.xlane.f32.xlu0 %v1858
        %v1860 = vpop.xlane.xlu0 %1859
        %v1861 = vmax.f32 %v1705, %v1706
        %v1862 = vmax.f32 %v1861, %v1707
        %v1863 = vmax.f32 %v1862, %v1708
        %1864 = vmax.xlane.f32.xlu0 %v1863
        %v1865 = vpop.xlane.xlu0 %1864
        %v1866 = vmax.f32 %v1709, %v1710
        %v1867 = vmax.f32 %v1866, %v1711
        %v1868 = vmax.f32 %v1867, %v1712
        %1869 = vmax.xlane.f32.xlu0 %v1868
        %v1870 = vpop.xlane.xlu0 %1869
        %v1871 = vmax.f32 %v1713, %v1714
        %v1872 = vmax.f32 %v1871, %v1715
        %v1873 = vmax.f32 %v1872, %v1716
        %1874 = vmax.xlane.f32.xlu0 %v1873
        %v1875 = vpop.xlane.xlu0 %1874
        %v1876 = vmax.f32 %v1717, %v1718
        %v1877 = vmax.f32 %v1876, %v1719
        %v1878 = vmax.f32 %v1877, %v1720
        %1879 = vmax.xlane.f32.xlu0 %v1878
        %v1880 = vpop.xlane.xlu0 %1879
        %v1881 = vsub.f32 %v1593, %v1725
        %v1882 = vsub.f32 %v1594, %v1725
        %v1883 = vsub.f32 %v1595, %v1725
        %v1884 = vsub.f32 %v1596, %v1725
        %v1885 = vsub.f32 %v1597, %v1730
        %v1886 = vsub.f32 %v1598, %v1730
        %v1887 = vsub.f32 %v1599, %v1730
        %v1888 = vsub.f32 %v1600, %v1730
        %v1889 = vsub.f32 %v1601, %v1735
        %v1890 = vsub.f32 %v1602, %v1735
        %v1891 = vsub.f32 %v1603, %v1735
        %v1892 = vsub.f32 %v1604, %v1735
        %v1893 = vsub.f32 %v1605, %v1740
        %v1894 = vsub.f32 %v1606, %v1740
        %v1895 = vsub.f32 %v1607, %v1740
        %v1896 = vsub.f32 %v1608, %v1740
        %v1897 = vsub.f32 %v1609, %v1745
        %v1898 = vsub.f32 %v1610, %v1745
        %v1899 = vsub.f32 %v1611, %v1745
        %v1900 = vsub.f32 %v1612, %v1745
        %v1901 = vsub.f32 %v1613, %v1750
        %v1902 = vsub.f32 %v1614, %v1750
        %v1903 = vsub.f32 %v1615, %v1750
        %v1904 = vsub.f32 %v1616, %v1750
        %v1905 = vsub.f32 %v1617, %v1755
        %v1906 = vsub.f32 %v1618, %v1755
        %v1907 = vsub.f32 %v1619, %v1755
        %v1908 = vsub.f32 %v1620, %v1755
        %v1909 = vsub.f32 %v1621, %v1760
        %v1910 = vsub.f32 %v1622, %v1760
        %v1911 = vsub.f32 %v1623, %v1760
        %v1912 = vsub.f32 %v1624, %v1760
        %v1913 = vsub.f32 %v1625, %v1765
        %v1914 = vsub.f32 %v1626, %v1765
        %v1915 = vsub.f32 %v1627, %v1765
        %v1916 = vsub.f32 %v1628, %v1765
        %v1917 = vsub.f32 %v1629, %v1770
        %v1918 = vsub.f32 %v1630, %v1770
        %v1919 = vsub.f32 %v1631, %v1770
        %v1920 = vsub.f32 %v1632, %v1770
        %v1921 = vsub.f32 %v1633, %v1775
        %v1922 = vsub.f32 %v1634, %v1775
        %v1923 = vsub.f32 %v1635, %v1775
        %v1924 = vsub.f32 %v1636, %v1775
        %v1925 = vsub.f32 %v1637, %v1780
        %v1926 = vsub.f32 %v1638, %v1780
        %v1927 = vsub.f32 %v1639, %v1780
        %v1928 = vsub.f32 %v1640, %v1780
        %v1929 = vsub.f32 %v1641, %v1785
        %v1930 = vsub.f32 %v1642, %v1785
        %v1931 = vsub.f32 %v1643, %v1785
        %v1932 = vsub.f32 %v1644, %v1785
        %v1933 = vsub.f32 %v1645, %v1790
        %v1934 = vsub.f32 %v1646, %v1790
        %v1935 = vsub.f32 %v1647, %v1790
        %v1936 = vsub.f32 %v1648, %v1790
        %v1937 = vsub.f32 %v1649, %v1795
        %v1938 = vsub.f32 %v1650, %v1795
        %v1939 = vsub.f32 %v1651, %v1795
        %v1940 = vsub.f32 %v1652, %v1795
        %v1941 = vsub.f32 %v1653, %v1800
        %v1942 = vsub.f32 %v1654, %v1800
        %v1943 = vsub.f32 %v1655, %v1800
        %v1944 = vsub.f32 %v1656, %v1800
        %v1945 = vsub.f32 %v1657, %v1805
        %v1946 = vsub.f32 %v1658, %v1805
        %v1947 = vsub.f32 %v1659, %v1805
        %v1948 = vsub.f32 %v1660, %v1805
        %v1949 = vsub.f32 %v1661, %v1810
        %v1950 = vsub.f32 %v1662, %v1810
        %v1951 = vsub.f32 %v1663, %v1810
        %v1952 = vsub.f32 %v1664, %v1810
        %v1953 = vsub.f32 %v1665, %v1815
        %v1954 = vsub.f32 %v1666, %v1815
        %v1955 = vsub.f32 %v1667, %v1815
        %v1956 = vsub.f32 %v1668, %v1815
        %v1957 = vsub.f32 %v1669, %v1820
        %v1958 = vsub.f32 %v1670, %v1820
        %v1959 = vsub.f32 %v1671, %v1820
        %v1960 = vsub.f32 %v1672, %v1820
        %v1961 = vsub.f32 %v1673, %v1825
        %v1962 = vsub.f32 %v1674, %v1825
        %v1963 = vsub.f32 %v1675, %v1825
        %v1964 = vsub.f32 %v1676, %v1825
        %v1965 = vsub.f32 %v1677, %v1830
        %v1966 = vsub.f32 %v1678, %v1830
        %v1967 = vsub.f32 %v1679, %v1830
        %v1968 = vsub.f32 %v1680, %v1830
        %v1969 = vsub.f32 %v1681, %v1835
        %v1970 = vsub.f32 %v1682, %v1835
        %v1971 = vsub.f32 %v1683, %v1835
        %v1972 = vsub.f32 %v1684, %v1835
        %v1973 = vsub.f32 %v1685, %v1840
        %v1974 = vsub.f32 %v1686, %v1840
        %v1975 = vsub.f32 %v1687, %v1840
        %v1976 = vsub.f32 %v1688, %v1840
        %v1977 = vsub.f32 %v1689, %v1845
        %v1978 = vsub.f32 %v1690, %v1845
        %v1979 = vsub.f32 %v1691, %v1845
        %v1980 = vsub.f32 %v1692, %v1845
        %v1981 = vsub.f32 %v1693, %v1850
        %v1982 = vsub.f32 %v1694, %v1850
        %v1983 = vsub.f32 %v1695, %v1850
        %v1984 = vsub.f32 %v1696, %v1850
        %v1985 = vsub.f32 %v1697, %v1855
        %v1986 = vsub.f32 %v1698, %v1855
        %v1987 = vsub.f32 %v1699, %v1855
        %v1988 = vsub.f32 %v1700, %v1855
        %v1989 = vsub.f32 %v1701, %v1860
        %v1990 = vsub.f32 %v1702, %v1860
        %v1991 = vsub.f32 %v1703, %v1860
        %v1992 = vsub.f32 %v1704, %v1860
        %v1993 = vsub.f32 %v1705, %v1865
        %v1994 = vsub.f32 %v1706, %v1865
        %v1995 = vsub.f32 %v1707, %v1865
        %v1996 = vsub.f32 %v1708, %v1865
        %v1997 = vsub.f32 %v1709, %v1870
        %v1998 = vsub.f32 %v1710, %v1870
        %v1999 = vsub.f32 %v1711, %v1870
        %v2000 = vsub.f32 %v1712, %v1870
        %v2001 = vsub.f32 %v1713, %v1875
        %v2002 = vsub.f32 %v1714, %v1875
        %v2003 = vsub.f32 %v1715, %v1875
        %v2004 = vsub.f32 %v1716, %v1875
        %v2005 = vsub.f32 %v1717, %v1880
        %v2006 = vsub.f32 %v1718, %v1880
        %v2007 = vsub.f32 %v1719, %v1880
        %v2008 = vsub.f32 %v1720, %v1880
        %v2009 = vpack.c.bf16 %v1885, %v1881
        %v2010 = vpack.c.bf16 %v1886, %v1882
        %v2011 = vpack.c.bf16 %v1887, %v1883
        %v2012 = vpack.c.bf16 %v1888, %v1884
        %v2013 = vpack.c.bf16 %v1893, %v1889
        %v2014 = vpack.c.bf16 %v1894, %v1890
        %v2015 = vpack.c.bf16 %v1895, %v1891
        %v2016 = vpack.c.bf16 %v1896, %v1892
        %v2017 = vpack.c.bf16 %v1901, %v1897
        %v2018 = vpack.c.bf16 %v1902, %v1898
        %v2019 = vpack.c.bf16 %v1903, %v1899
        %v2020 = vpack.c.bf16 %v1904, %v1900
        %v2021 = vpack.c.bf16 %v1909, %v1905
        %v2022 = vpack.c.bf16 %v1910, %v1906
        %v2023 = vpack.c.bf16 %v1911, %v1907
        %v2024 = vpack.c.bf16 %v1912, %v1908
        %v2025 = vpack.c.bf16 %v1917, %v1913
        %v2026 = vpack.c.bf16 %v1918, %v1914
        %v2027 = vpack.c.bf16 %v1919, %v1915
        %v2028 = vpack.c.bf16 %v1920, %v1916
        %v2029 = vpack.c.bf16 %v1925, %v1921
        %v2030 = vpack.c.bf16 %v1926, %v1922
        %v2031 = vpack.c.bf16 %v1927, %v1923
        %v2032 = vpack.c.bf16 %v1928, %v1924
        %v2033 = vpack.c.bf16 %v1933, %v1929
        %v2034 = vpack.c.bf16 %v1934, %v1930
        %v2035 = vpack.c.bf16 %v1935, %v1931
        %v2036 = vpack.c.bf16 %v1936, %v1932
        %v2037 = vpack.c.bf16 %v1941, %v1937
        %v2038 = vpack.c.bf16 %v1942, %v1938
        %v2039 = vpack.c.bf16 %v1943, %v1939
        %v2040 = vpack.c.bf16 %v1944, %v1940
        %v2041 = vpack.c.bf16 %v1949, %v1945
        %v2042 = vpack.c.bf16 %v1950, %v1946
        %v2043 = vpack.c.bf16 %v1951, %v1947
        %v2044 = vpack.c.bf16 %v1952, %v1948
        %v2045 = vpack.c.bf16 %v1957, %v1953
        %v2046 = vpack.c.bf16 %v1958, %v1954
        %v2047 = vpack.c.bf16 %v1959, %v1955
        %v2048 = vpack.c.bf16 %v1960, %v1956
        %v2049 = vpack.c.bf16 %v1965, %v1961
        %v2050 = vpack.c.bf16 %v1966, %v1962
        %v2051 = vpack.c.bf16 %v1967, %v1963
        %v2052 = vpack.c.bf16 %v1968, %v1964
        %v2053 = vpack.c.bf16 %v1973, %v1969
        %v2054 = vpack.c.bf16 %v1974, %v1970
        %v2055 = vpack.c.bf16 %v1975, %v1971
        %v2056 = vpack.c.bf16 %v1976, %v1972
        %v2057 = vpack.c.bf16 %v1981, %v1977
        %v2058 = vpack.c.bf16 %v1982, %v1978
        %v2059 = vpack.c.bf16 %v1983, %v1979
        %v2060 = vpack.c.bf16 %v1984, %v1980
        %v2061 = vpack.c.bf16 %v1989, %v1985
        %v2062 = vpack.c.bf16 %v1990, %v1986
        %v2063 = vpack.c.bf16 %v1991, %v1987
        %v2064 = vpack.c.bf16 %v1992, %v1988
        %v2065 = vpack.c.bf16 %v1997, %v1993
        %v2066 = vpack.c.bf16 %v1998, %v1994
        %v2067 = vpack.c.bf16 %v1999, %v1995
        %v2068 = vpack.c.bf16 %v2000, %v1996
        %v2069 = vpack.c.bf16 %v2005, %v2001
        %v2070 = vpack.c.bf16 %v2006, %v2002
        %v2071 = vpack.c.bf16 %v2007, %v2003
        %v2072 = vpack.c.bf16 %v2008, %v2004
        %v2074 = vmul.bf16 %v2009, 1069105081
        %v2075 = vpow.bf16.pop %v2074
        %v2077 = vmul.bf16 %v2010, 1069105081
        %v2078 = vpow.bf16.pop %v2077
        %v2080 = vmul.bf16 %v2011, 1069105081
        %v2081 = vpow.bf16.pop %v2080
        %v2083 = vmul.bf16 %v2012, 1069105081
        %v2084 = vpow.bf16.pop %v2083
        %v2086 = vmul.bf16 %v2013, 1069105081
        %v2087 = vpow.bf16.pop %v2086
        %v2089 = vmul.bf16 %v2014, 1069105081
        %v2090 = vpow.bf16.pop %v2089
        %v2092 = vmul.bf16 %v2015, 1069105081
        %v2093 = vpow.bf16.pop %v2092
        %v2095 = vmul.bf16 %v2016, 1069105081
        %v2096 = vpow.bf16.pop %v2095
        %v2098 = vmul.bf16 %v2017, 1069105081
        %v2099 = vpow.bf16.pop %v2098
        %v2101 = vmul.bf16 %v2018, 1069105081
        %v2102 = vpow.bf16.pop %v2101
        %v2104 = vmul.bf16 %v2019, 1069105081
        %v2105 = vpow.bf16.pop %v2104
        %v2107 = vmul.bf16 %v2020, 1069105081
        %v2108 = vpow.bf16.pop %v2107
        %v2110 = vmul.bf16 %v2021, 1069105081
        %v2111 = vpow.bf16.pop %v2110
        %v2113 = vmul.bf16 %v2022, 1069105081
        %v2114 = vpow.bf16.pop %v2113
        %v2116 = vmul.bf16 %v2023, 1069105081
        %v2117 = vpow.bf16.pop %v2116
        %v2119 = vmul.bf16 %v2024, 1069105081
        %v2120 = vpow.bf16.pop %v2119
        %v2122 = vmul.bf16 %v2025, 1069105081
        %v2123 = vpow.bf16.pop %v2122
        %v2125 = vmul.bf16 %v2026, 1069105081
        %v2126 = vpow.bf16.pop %v2125
        %v2128 = vmul.bf16 %v2027, 1069105081
        %v2129 = vpow.bf16.pop %v2128
        %v2131 = vmul.bf16 %v2028, 1069105081
        %v2132 = vpow.bf16.pop %v2131
        %v2134 = vmul.bf16 %v2029, 1069105081
        %v2135 = vpow.bf16.pop %v2134
        %v2137 = vmul.bf16 %v2030, 1069105081
        %v2138 = vpow.bf16.pop %v2137
        %v2140 = vmul.bf16 %v2031, 1069105081
        %v2141 = vpow.bf16.pop %v2140
        %v2143 = vmul.bf16 %v2032, 1069105081
        %v2144 = vpow.bf16.pop %v2143
        %v2146 = vmul.bf16 %v2033, 1069105081
        %v2147 = vpow.bf16.pop %v2146
        %v2149 = vmul.bf16 %v2034, 1069105081
        %v2150 = vpow.bf16.pop %v2149
        %v2152 = vmul.bf16 %v2035, 1069105081
        %v2153 = vpow.bf16.pop %v2152
        %v2155 = vmul.bf16 %v2036, 1069105081
        %v2156 = vpow.bf16.pop %v2155
        %v2158 = vmul.bf16 %v2037, 1069105081
        %v2159 = vpow.bf16.pop %v2158
        %v2161 = vmul.bf16 %v2038, 1069105081
        %v2162 = vpow.bf16.pop %v2161
        %v2164 = vmul.bf16 %v2039, 1069105081
        %v2165 = vpow.bf16.pop %v2164
        %v2167 = vmul.bf16 %v2040, 1069105081
        %v2168 = vpow.bf16.pop %v2167
        %v2170 = vmul.bf16 %v2041, 1069105081
        %v2171 = vpow.bf16.pop %v2170
        %v2173 = vmul.bf16 %v2042, 1069105081
        %v2174 = vpow.bf16.pop %v2173
        %v2176 = vmul.bf16 %v2043, 1069105081
        %v2177 = vpow.bf16.pop %v2176
        %v2179 = vmul.bf16 %v2044, 1069105081
        %v2180 = vpow.bf16.pop %v2179
        %v2182 = vmul.bf16 %v2045, 1069105081
        %v2183 = vpow.bf16.pop %v2182
        %v2185 = vmul.bf16 %v2046, 1069105081
        %v2186 = vpow.bf16.pop %v2185
        %v2188 = vmul.bf16 %v2047, 1069105081
        %v2189 = vpow.bf16.pop %v2188
        %v2191 = vmul.bf16 %v2048, 1069105081
        %v2192 = vpow.bf16.pop %v2191
        %v2194 = vmul.bf16 %v2049, 1069105081
        %v2195 = vpow.bf16.pop %v2194
        %v2197 = vmul.bf16 %v2050, 1069105081
        %v2198 = vpow.bf16.pop %v2197
        %v2200 = vmul.bf16 %v2051, 1069105081
        %v2201 = vpow.bf16.pop %v2200
        %v2203 = vmul.bf16 %v2052, 1069105081
        %v2204 = vpow.bf16.pop %v2203
        %v2206 = vmul.bf16 %v2053, 1069105081
        %v2207 = vpow.bf16.pop %v2206
        %v2209 = vmul.bf16 %v2054, 1069105081
        %v2210 = vpow.bf16.pop %v2209
        %v2212 = vmul.bf16 %v2055, 1069105081
        %v2213 = vpow.bf16.pop %v2212
        %v2215 = vmul.bf16 %v2056, 1069105081
        %v2216 = vpow.bf16.pop %v2215
        %v2218 = vmul.bf16 %v2057, 1069105081
        %v2219 = vpow.bf16.pop %v2218
        %v2221 = vmul.bf16 %v2058, 1069105081
        %v2222 = vpow.bf16.pop %v2221
        %v2224 = vmul.bf16 %v2059, 1069105081
        %v2225 = vpow.bf16.pop %v2224
        %v2227 = vmul.bf16 %v2060, 1069105081
        %v2228 = vpow.bf16.pop %v2227
        %v2230 = vmul.bf16 %v2061, 1069105081
        %v2231 = vpow.bf16.pop %v2230
        %v2233 = vmul.bf16 %v2062, 1069105081
        %v2234 = vpow.bf16.pop %v2233
        %v2236 = vmul.bf16 %v2063, 1069105081
        %v2237 = vpow.bf16.pop %v2236
        %v2239 = vmul.bf16 %v2064, 1069105081
        %v2240 = vpow.bf16.pop %v2239
        %v2242 = vmul.bf16 %v2065, 1069105081
        %v2243 = vpow.bf16.pop %v2242
        %v2245 = vmul.bf16 %v2066, 1069105081
        %v2246 = vpow.bf16.pop %v2245
        %v2248 = vmul.bf16 %v2067, 1069105081
        %v2249 = vpow.bf16.pop %v2248
        %v2251 = vmul.bf16 %v2068, 1069105081
        %v2252 = vpow.bf16.pop %v2251
        %v2254 = vmul.bf16 %v2069, 1069105081
        %v2255 = vpow.bf16.pop %v2254
        %v2257 = vmul.bf16 %v2070, 1069105081
        %v2258 = vpow.bf16.pop %v2257
        %v2260 = vmul.bf16 %v2071, 1069105081
        %v2261 = vpow.bf16.pop %v2260
        %v2263 = vmul.bf16 %v2072, 1069105081
        %v2264 = vpow.bf16.pop %v2263
        %v2265 = vunpack.c.l.bf16 %v2075
        %v2266 = vunpack.c.l.bf16 %v2078
        %v2267 = vunpack.c.l.bf16 %v2081
        %v2268 = vunpack.c.l.bf16 %v2084
        %v2269 = vunpack.c.h.bf16 %v2075
        %v2270 = vunpack.c.h.bf16 %v2078
        %v2271 = vunpack.c.h.bf16 %v2081
        %v2272 = vunpack.c.h.bf16 %v2084
        %v2273 = vunpack.c.l.bf16 %v2087
        %v2274 = vunpack.c.l.bf16 %v2090
        %v2275 = vunpack.c.l.bf16 %v2093
        %v2276 = vunpack.c.l.bf16 %v2096
        %v2277 = vunpack.c.h.bf16 %v2087
        %v2278 = vunpack.c.h.bf16 %v2090
        %v2279 = vunpack.c.h.bf16 %v2093
        %v2280 = vunpack.c.h.bf16 %v2096
        %v2281 = vunpack.c.l.bf16 %v2099
        %v2282 = vunpack.c.l.bf16 %v2102
        %v2283 = vunpack.c.l.bf16 %v2105
        %v2284 = vunpack.c.l.bf16 %v2108
        %v2285 = vunpack.c.h.bf16 %v2099
        %v2286 = vunpack.c.h.bf16 %v2102
        %v2287 = vunpack.c.h.bf16 %v2105
        %v2288 = vunpack.c.h.bf16 %v2108
        %v2289 = vunpack.c.l.bf16 %v2111
        %v2290 = vunpack.c.l.bf16 %v2114
        %v2291 = vunpack.c.l.bf16 %v2117
        %v2292 = vunpack.c.l.bf16 %v2120
        %v2293 = vunpack.c.h.bf16 %v2111
        %v2294 = vunpack.c.h.bf16 %v2114
        %v2295 = vunpack.c.h.bf16 %v2117
        %v2296 = vunpack.c.h.bf16 %v2120
        %v2297 = vunpack.c.l.bf16 %v2123
        %v2298 = vunpack.c.l.bf16 %v2126
        %v2299 = vunpack.c.l.bf16 %v2129
        %v2300 = vunpack.c.l.bf16 %v2132
        %v2301 = vunpack.c.h.bf16 %v2123
        %v2302 = vunpack.c.h.bf16 %v2126
        %v2303 = vunpack.c.h.bf16 %v2129
        %v2304 = vunpack.c.h.bf16 %v2132
        %v2305 = vunpack.c.l.bf16 %v2135
        %v2306 = vunpack.c.l.bf16 %v2138
        %v2307 = vunpack.c.l.bf16 %v2141
        %v2308 = vunpack.c.l.bf16 %v2144
        %v2309 = vunpack.c.h.bf16 %v2135
        %v2310 = vunpack.c.h.bf16 %v2138
        %v2311 = vunpack.c.h.bf16 %v2141
        %v2312 = vunpack.c.h.bf16 %v2144
        %v2313 = vunpack.c.l.bf16 %v2147
        %v2314 = vunpack.c.l.bf16 %v2150
        %v2315 = vunpack.c.l.bf16 %v2153
        %v2316 = vunpack.c.l.bf16 %v2156
        %v2317 = vunpack.c.h.bf16 %v2147
        %v2318 = vunpack.c.h.bf16 %v2150
        %v2319 = vunpack.c.h.bf16 %v2153
        %v2320 = vunpack.c.h.bf16 %v2156
        %v2321 = vunpack.c.l.bf16 %v2159
        %v2322 = vunpack.c.l.bf16 %v2162
        %v2323 = vunpack.c.l.bf16 %v2165
        %v2324 = vunpack.c.l.bf16 %v2168
        %v2325 = vunpack.c.h.bf16 %v2159
        %v2326 = vunpack.c.h.bf16 %v2162
        %v2327 = vunpack.c.h.bf16 %v2165
        %v2328 = vunpack.c.h.bf16 %v2168
        %v2329 = vunpack.c.l.bf16 %v2171
        %v2330 = vunpack.c.l.bf16 %v2174
        %v2331 = vunpack.c.l.bf16 %v2177
        %v2332 = vunpack.c.l.bf16 %v2180
        %v2333 = vunpack.c.h.bf16 %v2171
        %v2334 = vunpack.c.h.bf16 %v2174
        %v2335 = vunpack.c.h.bf16 %v2177
        %v2336 = vunpack.c.h.bf16 %v2180
        %v2337 = vunpack.c.l.bf16 %v2183
        %v2338 = vunpack.c.l.bf16 %v2186
        %v2339 = vunpack.c.l.bf16 %v2189
        %v2340 = vunpack.c.l.bf16 %v2192
        %v2341 = vunpack.c.h.bf16 %v2183
        %v2342 = vunpack.c.h.bf16 %v2186
        %v2343 = vunpack.c.h.bf16 %v2189
        %v2344 = vunpack.c.h.bf16 %v2192
        %v2345 = vunpack.c.l.bf16 %v2195
        %v2346 = vunpack.c.l.bf16 %v2198
        %v2347 = vunpack.c.l.bf16 %v2201
        %v2348 = vunpack.c.l.bf16 %v2204
        %v2349 = vunpack.c.h.bf16 %v2195
        %v2350 = vunpack.c.h.bf16 %v2198
        %v2351 = vunpack.c.h.bf16 %v2201
        %v2352 = vunpack.c.h.bf16 %v2204
        %v2353 = vunpack.c.l.bf16 %v2207
        %v2354 = vunpack.c.l.bf16 %v2210
        %v2355 = vunpack.c.l.bf16 %v2213
        %v2356 = vunpack.c.l.bf16 %v2216
        %v2357 = vunpack.c.h.bf16 %v2207
        %v2358 = vunpack.c.h.bf16 %v2210
        %v2359 = vunpack.c.h.bf16 %v2213
        %v2360 = vunpack.c.h.bf16 %v2216
        %v2361 = vunpack.c.l.bf16 %v2219
        %v2362 = vunpack.c.l.bf16 %v2222
        %v2363 = vunpack.c.l.bf16 %v2225
        %v2364 = vunpack.c.l.bf16 %v2228
        %v2365 = vunpack.c.h.bf16 %v2219
        %v2366 = vunpack.c.h.bf16 %v2222
        %v2367 = vunpack.c.h.bf16 %v2225
        %v2368 = vunpack.c.h.bf16 %v2228
        %v2369 = vunpack.c.l.bf16 %v2231
        %v2370 = vunpack.c.l.bf16 %v2234
        %v2371 = vunpack.c.l.bf16 %v2237
        %v2372 = vunpack.c.l.bf16 %v2240
        %v2373 = vunpack.c.h.bf16 %v2231
        %v2374 = vunpack.c.h.bf16 %v2234
        %v2375 = vunpack.c.h.bf16 %v2237
        %v2376 = vunpack.c.h.bf16 %v2240
        %v2377 = vunpack.c.l.bf16 %v2243
        %v2378 = vunpack.c.l.bf16 %v2246
        %v2379 = vunpack.c.l.bf16 %v2249
        %v2380 = vunpack.c.l.bf16 %v2252
        %v2381 = vunpack.c.h.bf16 %v2243
        %v2382 = vunpack.c.h.bf16 %v2246
        %v2383 = vunpack.c.h.bf16 %v2249
        %v2384 = vunpack.c.h.bf16 %v2252
        %v2385 = vunpack.c.l.bf16 %v2255
        %v2386 = vunpack.c.l.bf16 %v2258
        %v2387 = vunpack.c.l.bf16 %v2261
        %v2388 = vunpack.c.l.bf16 %v2264
        %v2389 = vunpack.c.h.bf16 %v2255
        %v2390 = vunpack.c.h.bf16 %v2258
        %v2391 = vunpack.c.h.bf16 %v2261
        %v2392 = vunpack.c.h.bf16 %v2264
        %v2393 = vadd.f32 %v2265, %v2266
        %v2394 = vadd.f32 %v2393, %v2267
        %v2395 = vadd.f32 %v2394, %v2268
        %2396 = vadd.xlane.f32.xlu0 %v2395
        %v2397 = vpop.xlane.xlu0 %2396
        %v2398 = vadd.f32 %v2269, %v2270
        %v2399 = vadd.f32 %v2398, %v2271
        %v2400 = vadd.f32 %v2399, %v2272
        %2401 = vadd.xlane.f32.xlu0 %v2400
        %v2402 = vpop.xlane.xlu0 %2401
        %v2403 = vadd.f32 %v2273, %v2274
        %v2404 = vadd.f32 %v2403, %v2275
        %v2405 = vadd.f32 %v2404, %v2276
        %2406 = vadd.xlane.f32.xlu0 %v2405
        %v2407 = vpop.xlane.xlu0 %2406
        %v2408 = vadd.f32 %v2277, %v2278
        %v2409 = vadd.f32 %v2408, %v2279
        %v2410 = vadd.f32 %v2409, %v2280
        %2411 = vadd.xlane.f32.xlu0 %v2410
        %v2412 = vpop.xlane.xlu0 %2411
        %v2413 = vadd.f32 %v2281, %v2282
        %v2414 = vadd.f32 %v2413, %v2283
        %v2415 = vadd.f32 %v2414, %v2284
        %2416 = vadd.xlane.f32.xlu0 %v2415
        %v2417 = vpop.xlane.xlu0 %2416
        %v2418 = vadd.f32 %v2285, %v2286
        %v2419 = vadd.f32 %v2418, %v2287
        %v2420 = vadd.f32 %v2419, %v2288
        %2421 = vadd.xlane.f32.xlu0 %v2420
        %v2422 = vpop.xlane.xlu0 %2421
        %v2423 = vadd.f32 %v2289, %v2290
        %v2424 = vadd.f32 %v2423, %v2291
        %v2425 = vadd.f32 %v2424, %v2292
        %2426 = vadd.xlane.f32.xlu0 %v2425
        %v2427 = vpop.xlane.xlu0 %2426
        %v2428 = vadd.f32 %v2293, %v2294
        %v2429 = vadd.f32 %v2428, %v2295
        %v2430 = vadd.f32 %v2429, %v2296
        %2431 = vadd.xlane.f32.xlu0 %v2430
        %v2432 = vpop.xlane.xlu0 %2431
        %v2433 = vadd.f32 %v2297, %v2298
        %v2434 = vadd.f32 %v2433, %v2299
        %v2435 = vadd.f32 %v2434, %v2300
        %2436 = vadd.xlane.f32.xlu0 %v2435
        %v2437 = vpop.xlane.xlu0 %2436
        %v2438 = vadd.f32 %v2301, %v2302
        %v2439 = vadd.f32 %v2438, %v2303
        %v2440 = vadd.f32 %v2439, %v2304
        %2441 = vadd.xlane.f32.xlu0 %v2440
        %v2442 = vpop.xlane.xlu0 %2441
        %v2443 = vadd.f32 %v2305, %v2306
        %v2444 = vadd.f32 %v2443, %v2307
        %v2445 = vadd.f32 %v2444, %v2308
        %2446 = vadd.xlane.f32.xlu0 %v2445
        %v2447 = vpop.xlane.xlu0 %2446
        %v2448 = vadd.f32 %v2309, %v2310
        %v2449 = vadd.f32 %v2448, %v2311
        %v2450 = vadd.f32 %v2449, %v2312
        %2451 = vadd.xlane.f32.xlu0 %v2450
        %v2452 = vpop.xlane.xlu0 %2451
        %v2453 = vadd.f32 %v2313, %v2314
        %v2454 = vadd.f32 %v2453, %v2315
        %v2455 = vadd.f32 %v2454, %v2316
        %2456 = vadd.xlane.f32.xlu0 %v2455
        %v2457 = vpop.xlane.xlu0 %2456
        %v2458 = vadd.f32 %v2317, %v2318
        %v2459 = vadd.f32 %v2458, %v2319
        %v2460 = vadd.f32 %v2459, %v2320
        %2461 = vadd.xlane.f32.xlu0 %v2460
        %v2462 = vpop.xlane.xlu0 %2461
        %v2463 = vadd.f32 %v2321, %v2322
        %v2464 = vadd.f32 %v2463, %v2323
        %v2465 = vadd.f32 %v2464, %v2324
        %2466 = vadd.xlane.f32.xlu0 %v2465
        %v2467 = vpop.xlane.xlu0 %2466
        %v2468 = vadd.f32 %v2325, %v2326
        %v2469 = vadd.f32 %v2468, %v2327
        %v2470 = vadd.f32 %v2469, %v2328
        %2471 = vadd.xlane.f32.xlu0 %v2470
        %v2472 = vpop.xlane.xlu0 %2471
        %v2473 = vadd.f32 %v2329, %v2330
        %v2474 = vadd.f32 %v2473, %v2331
        %v2475 = vadd.f32 %v2474, %v2332
        %2476 = vadd.xlane.f32.xlu0 %v2475
        %v2477 = vpop.xlane.xlu0 %2476
        %v2478 = vadd.f32 %v2333, %v2334
        %v2479 = vadd.f32 %v2478, %v2335
        %v2480 = vadd.f32 %v2479, %v2336
        %2481 = vadd.xlane.f32.xlu0 %v2480
        %v2482 = vpop.xlane.xlu0 %2481
        %v2483 = vadd.f32 %v2337, %v2338
        %v2484 = vadd.f32 %v2483, %v2339
        %v2485 = vadd.f32 %v2484, %v2340
        %2486 = vadd.xlane.f32.xlu0 %v2485
        %v2487 = vpop.xlane.xlu0 %2486
        %v2488 = vadd.f32 %v2341, %v2342
        %v2489 = vadd.f32 %v2488, %v2343
        %v2490 = vadd.f32 %v2489, %v2344
        %2491 = vadd.xlane.f32.xlu0 %v2490
        %v2492 = vpop.xlane.xlu0 %2491
        %v2493 = vadd.f32 %v2345, %v2346
        %v2494 = vadd.f32 %v2493, %v2347
        %v2495 = vadd.f32 %v2494, %v2348
        %2496 = vadd.xlane.f32.xlu0 %v2495
        %v2497 = vpop.xlane.xlu0 %2496
        %v2498 = vadd.f32 %v2349, %v2350
        %v2499 = vadd.f32 %v2498, %v2351
        %v2500 = vadd.f32 %v2499, %v2352
        %2501 = vadd.xlane.f32.xlu0 %v2500
        %v2502 = vpop.xlane.xlu0 %2501
        %v2503 = vadd.f32 %v2353, %v2354
        %v2504 = vadd.f32 %v2503, %v2355
        %v2505 = vadd.f32 %v2504, %v2356
        %2506 = vadd.xlane.f32.xlu0 %v2505
        %v2507 = vpop.xlane.xlu0 %2506
        %v2508 = vadd.f32 %v2357, %v2358
        %v2509 = vadd.f32 %v2508, %v2359
        %v2510 = vadd.f32 %v2509, %v2360
        %2511 = vadd.xlane.f32.xlu0 %v2510
        %v2512 = vpop.xlane.xlu0 %2511
        %v2513 = vadd.f32 %v2361, %v2362
        %v2514 = vadd.f32 %v2513, %v2363
        %v2515 = vadd.f32 %v2514, %v2364
        %2516 = vadd.xlane.f32.xlu0 %v2515
        %v2517 = vpop.xlane.xlu0 %2516
        %v2518 = vadd.f32 %v2365, %v2366
        %v2519 = vadd.f32 %v2518, %v2367
        %v2520 = vadd.f32 %v2519, %v2368
        %2521 = vadd.xlane.f32.xlu0 %v2520
        %v2522 = vpop.xlane.xlu0 %2521
        %v2523 = vadd.f32 %v2369, %v2370
        %v2524 = vadd.f32 %v2523, %v2371
        %v2525 = vadd.f32 %v2524, %v2372
        %2526 = vadd.xlane.f32.xlu0 %v2525
        %v2527 = vpop.xlane.xlu0 %2526
        %v2528 = vadd.f32 %v2373, %v2374
        %v2529 = vadd.f32 %v2528, %v2375
        %v2530 = vadd.f32 %v2529, %v2376
        %2531 = vadd.xlane.f32.xlu0 %v2530
        %v2532 = vpop.xlane.xlu0 %2531
        %v2533 = vadd.f32 %v2377, %v2378
        %v2534 = vadd.f32 %v2533, %v2379
        %v2535 = vadd.f32 %v2534, %v2380
        %2536 = vadd.xlane.f32.xlu0 %v2535
        %v2537 = vpop.xlane.xlu0 %2536
        %v2538 = vadd.f32 %v2381, %v2382
        %v2539 = vadd.f32 %v2538, %v2383
        %v2540 = vadd.f32 %v2539, %v2384
        %2541 = vadd.xlane.f32.xlu0 %v2540
        %v2542 = vpop.xlane.xlu0 %2541
        %v2543 = vadd.f32 %v2385, %v2386
        %v2544 = vadd.f32 %v2543, %v2387
        %v2545 = vadd.f32 %v2544, %v2388
        %2546 = vadd.xlane.f32.xlu0 %v2545
        %v2547 = vpop.xlane.xlu0 %2546
        %v2548 = vadd.f32 %v2389, %v2390
        %v2549 = vadd.f32 %v2548, %v2391
        %v2550 = vadd.f32 %v2549, %v2392
        %2551 = vadd.xlane.f32.xlu0 %v2550
        %v2552 = vpop.xlane.xlu0 %2551
        %v2553 = vld [vmem:[%s309] sm:$0xf]
        %v2554 = vld [vmem:[%s309 + $0x4] sm:$0xf]
        %v2555 = vld [vmem:[%s309 + $0x8] sm:$0xf]
        %v2556 = vld [vmem:[%s309 + $0xc] sm:$0xf]
        %v2557 = vld [vmem:[%s309 + $0x10] sm:$0xf]
        %v2558 = vld [vmem:[%s309 + $0x14] sm:$0xf]
        %v2559 = vld [vmem:[%s309 + $0x18] sm:$0xf]
        %v2560 = vld [vmem:[%s309 + $0x1c] sm:$0xf]
        %v2561 = vld [vmem:[%s309 + $0x20] sm:$0xf]
        %v2562 = vld [vmem:[%s309 + $0x24] sm:$0xf]
        %v2563 = vld [vmem:[%s309 + $0x28] sm:$0xf]
        %v2564 = vld [vmem:[%s309 + $0x2c] sm:$0xf]
        %v2565 = vld [vmem:[%s309 + $0x30] sm:$0xf]
        %v2566 = vld [vmem:[%s309 + $0x34] sm:$0xf]
        %v2567 = vld [vmem:[%s309 + $0x38] sm:$0xf]
        %v2568 = vld [vmem:[%s309 + $0x3c] sm:$0xf]
        %v2569 = vld [vmem:[%s309 + $0x40] sm:$0xf]
        %v2570 = vld [vmem:[%s309 + $0x44] sm:$0xf]
        %v2571 = vld [vmem:[%s309 + $0x48] sm:$0xf]
        %v2572 = vld [vmem:[%s309 + $0x4c] sm:$0xf]
        %v2573 = vld [vmem:[%s309 + $0x50] sm:$0xf]
        %v2574 = vld [vmem:[%s309 + $0x54] sm:$0xf]
        %v2575 = vld [vmem:[%s309 + $0x58] sm:$0xf]
        %v2576 = vld [vmem:[%s309 + $0x5c] sm:$0xf]
        %v2577 = vld [vmem:[%s309 + $0x60] sm:$0xf]
        %v2578 = vld [vmem:[%s309 + $0x64] sm:$0xf]
        %v2579 = vld [vmem:[%s309 + $0x68] sm:$0xf]
        %v2580 = vld [vmem:[%s309 + $0x6c] sm:$0xf]
        %v2581 = vld [vmem:[%s309 + $0x70] sm:$0xf]
        %v2582 = vld [vmem:[%s309 + $0x74] sm:$0xf]
        %v2583 = vld [vmem:[%s309 + $0x78] sm:$0xf]
        %v2584 = vld [vmem:[%s309 + $0x7c] sm:$0xf]
        %v2585 = vld [vmem:[%s309 + $0x80] sm:$0xf]
        %v2586 = vld [vmem:[%s309 + $0x84] sm:$0xf]
        %v2587 = vld [vmem:[%s309 + $0x88] sm:$0xf]
        %v2588 = vld [vmem:[%s309 + $0x8c] sm:$0xf]
        %v2589 = vld [vmem:[%s309 + $0x90] sm:$0xf]
        %v2590 = vld [vmem:[%s309 + $0x94] sm:$0xf]
        %v2591 = vld [vmem:[%s309 + $0x98] sm:$0xf]
        %v2592 = vld [vmem:[%s309 + $0x9c] sm:$0xf]
        %v2593 = vld [vmem:[%s309 + $0xa0] sm:$0xf]
        %v2594 = vld [vmem:[%s309 + $0xa4] sm:$0xf]
        %v2595 = vld [vmem:[%s309 + $0xa8] sm:$0xf]
        %v2596 = vld [vmem:[%s309 + $0xac] sm:$0xf]
        %v2597 = vld [vmem:[%s309 + $0xb0] sm:$0xf]
        %v2598 = vld [vmem:[%s309 + $0xb4] sm:$0xf]
        %v2599 = vld [vmem:[%s309 + $0xb8] sm:$0xf]
        %v2600 = vld [vmem:[%s309 + $0xbc] sm:$0xf]
        %v2601 = vld [vmem:[%s309 + $0xc0] sm:$0xf]
        %v2602 = vld [vmem:[%s309 + $0xc4] sm:$0xf]
        %v2603 = vld [vmem:[%s309 + $0xc8] sm:$0xf]
        %v2604 = vld [vmem:[%s309 + $0xcc] sm:$0xf]
        %v2605 = vld [vmem:[%s309 + $0xd0] sm:$0xf]
        %v2606 = vld [vmem:[%s309 + $0xd4] sm:$0xf]
        %v2607 = vld [vmem:[%s309 + $0xd8] sm:$0xf]
        %v2608 = vld [vmem:[%s309 + $0xdc] sm:$0xf]
        %v2609 = vld [vmem:[%s309 + $0xe0] sm:$0xf]
        %v2610 = vld [vmem:[%s309 + $0xe4] sm:$0xf]
        %v2611 = vld [vmem:[%s309 + $0xe8] sm:$0xf]
        %v2612 = vld [vmem:[%s309 + $0xec] sm:$0xf]
        %v2613 = vld [vmem:[%s309 + $0xf0] sm:$0xf]
        %v2614 = vld [vmem:[%s309 + $0xf4] sm:$0xf]
        %v2615 = vld [vmem:[%s309 + $0xf8] sm:$0xf]
        %v2616 = vld [vmem:[%s309 + $0xfc] sm:$0xf]
        %v2681 = vunpack.c.l.b16 %v2553
        %v2682 = vunpack.c.l.b16 %v2554
        %v2683 = vunpack.c.l.b16 %v2555
        %v2684 = vunpack.c.l.b16 %v2556
        %v2685 = vunpack.c.l.b16 %v2557
        %v2686 = vunpack.c.l.b16 %v2558
        %v2687 = vunpack.c.l.b16 %v2559
        %v2688 = vunpack.c.l.b16 %v2560
        %v2689 = vunpack.c.l.b16 %v2561
        %v2690 = vunpack.c.l.b16 %v2562
        %v2691 = vunpack.c.l.b16 %v2563
        %v2692 = vunpack.c.l.b16 %v2564
        %v2693 = vunpack.c.l.b16 %v2565
        %v2694 = vunpack.c.l.b16 %v2566
        %v2695 = vunpack.c.l.b16 %v2567
        %v2696 = vunpack.c.l.b16 %v2568
        %v2697 = vunpack.c.l.b16 %v2569
        %v2698 = vunpack.c.l.b16 %v2570
        %v2699 = vunpack.c.l.b16 %v2571
        %v2700 = vunpack.c.l.b16 %v2572
        %v2701 = vunpack.c.l.b16 %v2573
        %v2702 = vunpack.c.l.b16 %v2574
        %v2703 = vunpack.c.l.b16 %v2575
        %v2704 = vunpack.c.l.b16 %v2576
        %v2705 = vunpack.c.l.b16 %v2577
        %v2706 = vunpack.c.l.b16 %v2578
        %v2707 = vunpack.c.l.b16 %v2579
        %v2708 = vunpack.c.l.b16 %v2580
        %v2709 = vunpack.c.l.b16 %v2581
        %v2710 = vunpack.c.l.b16 %v2582
        %v2711 = vunpack.c.l.b16 %v2583
        %v2712 = vunpack.c.l.b16 %v2584
        %v2713 = vunpack.c.l.b16 %v2585
        %v2714 = vunpack.c.l.b16 %v2586
        %v2715 = vunpack.c.l.b16 %v2587
        %v2716 = vunpack.c.l.b16 %v2588
        %v2717 = vunpack.c.l.b16 %v2589
        %v2718 = vunpack.c.l.b16 %v2590
        %v2719 = vunpack.c.l.b16 %v2591
        %v2720 = vunpack.c.l.b16 %v2592
        %v2721 = vunpack.c.l.b16 %v2593
        %v2722 = vunpack.c.l.b16 %v2594
        %v2723 = vunpack.c.l.b16 %v2595
        %v2724 = vunpack.c.l.b16 %v2596
        %v2725 = vunpack.c.l.b16 %v2597
        %v2726 = vunpack.c.l.b16 %v2598
        %v2727 = vunpack.c.l.b16 %v2599
        %v2728 = vunpack.c.l.b16 %v2600
        %v2729 = vunpack.c.l.b16 %v2601
        %v2730 = vunpack.c.l.b16 %v2602
        %v2731 = vunpack.c.l.b16 %v2603
        %v2732 = vunpack.c.l.b16 %v2604
        %v2733 = vunpack.c.l.b16 %v2605
        %v2734 = vunpack.c.l.b16 %v2606
        %v2735 = vunpack.c.l.b16 %v2607
        %v2736 = vunpack.c.l.b16 %v2608
        %v2737 = vunpack.c.l.b16 %v2609
        %v2738 = vunpack.c.l.b16 %v2610
        %v2739 = vunpack.c.l.b16 %v2611
        %v2740 = vunpack.c.l.b16 %v2612
        %v2741 = vunpack.c.l.b16 %v2613
        %v2742 = vunpack.c.l.b16 %v2614
        %v2743 = vunpack.c.l.b16 %v2615
        %v2744 = vunpack.c.l.b16 %v2616
        %v2745 = vpack.c.b16 %v2682, %v2681
        %v2746 = vpack.c.b16 %v2684, %v2683
        %v2747 = vpack.c.b16 %v2686, %v2685
        %v2748 = vpack.c.b16 %v2688, %v2687
        %v2749 = vpack.c.b16 %v2690, %v2689
        %v2750 = vpack.c.b16 %v2692, %v2691
        %v2751 = vpack.c.b16 %v2694, %v2693
        %v2752 = vpack.c.b16 %v2696, %v2695
        %v2753 = vpack.c.b16 %v2698, %v2697
        %v2754 = vpack.c.b16 %v2700, %v2699
        %v2755 = vpack.c.b16 %v2702, %v2701
        %v2756 = vpack.c.b16 %v2704, %v2703
        %v2757 = vpack.c.b16 %v2706, %v2705
        %v2758 = vpack.c.b16 %v2708, %v2707
        %v2759 = vpack.c.b16 %v2710, %v2709
        %v2760 = vpack.c.b16 %v2712, %v2711
        %v2761 = vpack.c.b16 %v2714, %v2713
        %v2762 = vpack.c.b16 %v2716, %v2715
        %v2763 = vpack.c.b16 %v2718, %v2717
        %v2764 = vpack.c.b16 %v2720, %v2719
        %v2765 = vpack.c.b16 %v2722, %v2721
        %v2766 = vpack.c.b16 %v2724, %v2723
        %v2767 = vpack.c.b16 %v2726, %v2725
        %v2768 = vpack.c.b16 %v2728, %v2727
        %v2769 = vpack.c.b16 %v2730, %v2729
        %v2770 = vpack.c.b16 %v2732, %v2731
        %v2771 = vpack.c.b16 %v2734, %v2733
        %v2772 = vpack.c.b16 %v2736, %v2735
        %v2773 = vpack.c.b16 %v2738, %v2737
        %v2774 = vpack.c.b16 %v2740, %v2739
        %v2775 = vpack.c.b16 %v2742, %v2741
        %v2776 = vpack.c.b16 %v2744, %v2743
        %2809 = vmatprep.subr.bf16.mxu0 0
        %2810 = vmatpush1.bf16.msra.mxu0 %v2745
        %2811 = vmatprep.subr.bf16.mxu0 0
        %2812 = vmatpush1.bf16.msra.mxu0 %v2746
        %2813 = vmatprep.subr.bf16.mxu0 0
        %2814 = vmatpush1.bf16.msra.mxu0 %v2747
        %2815 = vmatprep.subr.bf16.mxu0 0
        %2816 = vmatpush1.bf16.msra.mxu0 %v2748
        %2817 = vmatprep.subr.bf16.mxu0 0
        %2818 = vmatpush1.bf16.msra.mxu0 %v2749
        %2819 = vmatprep.subr.bf16.mxu0 0
        %2820 = vmatpush1.bf16.msra.mxu0 %v2750
        %2821 = vmatprep.subr.bf16.mxu0 0
        %2822 = vmatpush1.bf16.msra.mxu0 %v2751
        %2823 = vmatprep.subr.bf16.mxu0 0
        %2824 = vmatpush1.bf16.msra.mxu0 %v2752
        %2825 = vmatprep.subr.bf16.mxu0 0
        %2826 = vmatpush1.bf16.msra.mxu0 %v2753
        %2827 = vmatprep.subr.bf16.mxu0 0
        %2828 = vmatpush1.bf16.msra.mxu0 %v2754
        %2829 = vmatprep.subr.bf16.mxu0 0
        %2830 = vmatpush1.bf16.msra.mxu0 %v2755
        %2831 = vmatprep.subr.bf16.mxu0 0
        %2832 = vmatpush1.bf16.msra.mxu0 %v2756
        %2833 = vmatprep.subr.bf16.mxu0 0
        %2834 = vmatpush1.bf16.msra.mxu0 %v2757
        %2835 = vmatprep.subr.bf16.mxu0 0
        %2836 = vmatpush1.bf16.msra.mxu0 %v2758
        %2837 = vmatprep.subr.bf16.mxu0 0
        %2838 = vmatpush1.bf16.msra.mxu0 %v2759
        %2839 = vmatprep.subr.bf16.mxu0 0
        %2840 = vmatpush1.bf16.msra.mxu0 %v2760
        %2841 = vmatprep.mubr.bf16.mxu0 %v2078
        %2842 = vmatmul.mubr.bf16.gmra.mrb[0].mxu0 %v2075
        %v2843 = vpop.f32.mrb[0].mxu0
        %v2844 = vadd.f32 0.0, %v2843
        %v2845 = vpop.f32.mrb[0].mxu0
        %v2846 = vpop.f32.mrb[0].mxu0
        %v2847 = vadd.f32 0.0, %v2846
        %v2848 = vpop.f32.mrb[0].mxu0
        %2849 = vmatprep.mubr.bf16.mxu0 %v2090
        %2850 = vmatmul.mubr.bf16.gmra.mrb[0].mxu0 %v2087
        %v2851 = vpop.f32.mrb[0].mxu0
        %v2852 = vadd.f32 0.0, %v2851
        %v2853 = vpop.f32.mrb[0].mxu0
        %v2854 = vpop.f32.mrb[0].mxu0
        %v2855 = vadd.f32 0.0, %v2854
        %v2856 = vpop.f32.mrb[0].mxu0
        %2857 = vmatprep.mubr.bf16.mxu0 %v2102
        %2858 = vmatmul.mubr.bf16.gmra.mrb[0].mxu0 %v2099
        %v2859 = vpop.f32.mrb[0].mxu0
        %v2860 = vadd.f32 0.0, %v2859
        %v2861 = vpop.f32.mrb[0].mxu0
        %v2862 = vpop.f32.mrb[0].mxu0
        %v2863 = vadd.f32 0.0, %v2862
        %v2864 = vpop.f32.mrb[0].mxu0
        %2865 = vmatprep.mubr.bf16.mxu0 %v2114
        %2866 = vmatmul.mubr.bf16.gmra.mrb[0].mxu0 %v2111
        %v2867 = vpop.f32.mrb[0].mxu0
        %v2868 = vadd.f32 0.0, %v2867
        %v2869 = vpop.f32.mrb[0].mxu0
        %v2870 = vpop.f32.mrb[0].mxu0
        %v2871 = vadd.f32 0.0, %v2870
        %v2872 = vpop.f32.mrb[0].mxu0
        %2873 = vmatprep.mubr.bf16.mxu0 %v2126
        %2874 = vmatmul.mubr.bf16.gmra.mrb[0].mxu0 %v2123
        %v2875 = vpop.f32.mrb[0].mxu0
        %v2876 = vadd.f32 0.0, %v2875
        %v2877 = vpop.f32.mrb[0].mxu0
        %v2878 = vpop.f32.mrb[0].mxu0
        %v2879 = vadd.f32 0.0, %v2878
        %v2880 = vpop.f32.mrb[0].mxu0
        %2881 = vmatprep.mubr.bf16.mxu0 %v2138
        %2882 = vmatmul.mubr.bf16.gmra.mrb[0].mxu0 %v2135
        %v2883 = vpop.f32.mrb[0].mxu0
        %v2884 = vadd.f32 0.0, %v2883
        %v2885 = vpop.f32.mrb[0].mxu0
        %v2886 = vpop.f32.mrb[0].mxu0
        %v2887 = vadd.f32 0.0, %v2886
        %v2888 = vpop.f32.mrb[0].mxu0
        %2889 = vmatprep.mubr.bf16.mxu0 %v2150
        %2890 = vmatmul.mubr.bf16.gmra.mrb[0].mxu0 %v2147
        %v2891 = vpop.f32.mrb[0].mxu0
        %v2892 = vadd.f32 0.0, %v2891
        %v2893 = vpop.f32.mrb[0].mxu0
        %v2894 = vpop.f32.mrb[0].mxu0
        %v2895 = vadd.f32 0.0, %v2894
        %v2896 = vpop.f32.mrb[0].mxu0
        %2897 = vmatprep.mubr.bf16.mxu0 %v2162
        %2898 = vmatmul.mubr.bf16.gmra.mrb[0].mxu0 %v2159
        %v2899 = vpop.f32.mrb[0].mxu0
        %v2900 = vadd.f32 0.0, %v2899
        %v2901 = vpop.f32.mrb[0].mxu0
        %v2902 = vpop.f32.mrb[0].mxu0
        %v2903 = vadd.f32 0.0, %v2902
        %v2904 = vpop.f32.mrb[0].mxu0
        %2905 = vmatprep.mubr.bf16.mxu0 %v2174
        %2906 = vmatmul.mubr.bf16.gmra.mrb[0].mxu0 %v2171
        %v2907 = vpop.f32.mrb[0].mxu0
        %v2908 = vadd.f32 0.0, %v2907
        %v2909 = vpop.f32.mrb[0].mxu0
        %v2910 = vpop.f32.mrb[0].mxu0
        %v2911 = vadd.f32 0.0, %v2910
        %v2912 = vpop.f32.mrb[0].mxu0
        %2913 = vmatprep.mubr.bf16.mxu0 %v2186
        %2914 = vmatmul.mubr.bf16.gmra.mrb[0].mxu0 %v2183
        %v2915 = vpop.f32.mrb[0].mxu0
        %v2916 = vadd.f32 0.0, %v2915
        %v2917 = vpop.f32.mrb[0].mxu0
        %v2918 = vpop.f32.mrb[0].mxu0
        %v2919 = vadd.f32 0.0, %v2918
        %v2920 = vpop.f32.mrb[0].mxu0
        %2921 = vmatprep.mubr.bf16.mxu0 %v2198
        %2922 = vmatmul.mubr.bf16.gmra.mrb[0].mxu0 %v2195
        %v2923 = vpop.f32.mrb[0].mxu0
        %v2924 = vadd.f32 0.0, %v2923
        %v2925 = vpop.f32.mrb[0].mxu0
        %v2926 = vpop.f32.mrb[0].mxu0
        %v2927 = vadd.f32 0.0, %v2926
        %v2928 = vpop.f32.mrb[0].mxu0
        %2929 = vmatprep.mubr.bf16.mxu0 %v2210
        %2930 = vmatmul.mubr.bf16.gmra.mrb[0].mxu0 %v2207
        %v2931 = vpop.f32.mrb[0].mxu0
        %v2932 = vadd.f32 0.0, %v2931
        %v2933 = vpop.f32.mrb[0].mxu0
        %v2934 = vpop.f32.mrb[0].mxu0
        %v2935 = vadd.f32 0.0, %v2934
        %v2936 = vpop.f32.mrb[0].mxu0
        %2937 = vmatprep.mubr.bf16.mxu0 %v2222
        %2938 = vmatmul.mubr.bf16.gmra.mrb[0].mxu0 %v2219
        %v2939 = vpop.f32.mrb[0].mxu0
        %v2940 = vadd.f32 0.0, %v2939
        %v2941 = vpop.f32.mrb[0].mxu0
        %v2942 = vpop.f32.mrb[0].mxu0
        %v2943 = vadd.f32 0.0, %v2942
        %v2944 = vpop.f32.mrb[0].mxu0
        %2945 = vmatprep.mubr.bf16.mxu0 %v2234
        %2946 = vmatmul.mubr.bf16.gmra.mrb[0].mxu0 %v2231
        %v2947 = vpop.f32.mrb[0].mxu0
        %v2948 = vadd.f32 0.0, %v2947
        %v2949 = vpop.f32.mrb[0].mxu0
        %v2950 = vpop.f32.mrb[0].mxu0
        %v2951 = vadd.f32 0.0, %v2950
        %v2952 = vpop.f32.mrb[0].mxu0
        %2953 = vmatprep.mubr.bf16.mxu0 %v2246
        %2954 = vmatmul.mubr.bf16.gmra.mrb[0].mxu0 %v2243
        %v2955 = vpop.f32.mrb[0].mxu0
        %v2956 = vadd.f32 0.0, %v2955
        %v2957 = vpop.f32.mrb[0].mxu0
        %v2958 = vpop.f32.mrb[0].mxu0
        %v2959 = vadd.f32 0.0, %v2958
        %v2960 = vpop.f32.mrb[0].mxu0
        %2961 = vmatprep.mubr.bf16.mxu0 %v2258
        %2962 = vmatmul.mubr.bf16.gmra.mrb[0].mxu0 %v2255
        %v2963 = vpop.f32.mrb[0].mxu0
        %v2964 = vadd.f32 0.0, %v2963
        %v2965 = vpop.f32.mrb[0].mxu0
        %v2966 = vpop.f32.mrb[0].mxu0
        %v2967 = vadd.f32 0.0, %v2966
        %v2968 = vpop.f32.mrb[0].mxu0
        %2969 = vdwg.mxu0
        %2970 = vmatprep.subr.bf16.mxu0 0
        %2971 = vmatpush1.bf16.msra.mxu0 %v2761
        %2972 = vmatprep.subr.bf16.mxu0 0
        %2973 = vmatpush1.bf16.msra.mxu0 %v2762
        %2974 = vmatprep.subr.bf16.mxu0 0
        %2975 = vmatpush1.bf16.msra.mxu0 %v2763
        %2976 = vmatprep.subr.bf16.mxu0 0
        %2977 = vmatpush1.bf16.msra.mxu0 %v2764
        %2978 = vmatprep.subr.bf16.mxu0 0
        %2979 = vmatpush1.bf16.msra.mxu0 %v2765
        %2980 = vmatprep.subr.bf16.mxu0 0
        %2981 = vmatpush1.bf16.msra.mxu0 %v2766
        %2982 = vmatprep.subr.bf16.mxu0 0
        %2983 = vmatpush1.bf16.msra.mxu0 %v2767
        %2984 = vmatprep.subr.bf16.mxu0 0
        %2985 = vmatpush1.bf16.msra.mxu0 %v2768
        %2986 = vmatprep.subr.bf16.mxu0 0
        %2987 = vmatpush1.bf16.msra.mxu0 %v2769
        %2988 = vmatprep.subr.bf16.mxu0 0
        %2989 = vmatpush1.bf16.msra.mxu0 %v2770
        %2990 = vmatprep.subr.bf16.mxu0 0
        %2991 = vmatpush1.bf16.msra.mxu0 %v2771
        %2992 = vmatprep.subr.bf16.mxu0 0
        %2993 = vmatpush1.bf16.msra.mxu0 %v2772
        %2994 = vmatprep.subr.bf16.mxu0 0
        %2995 = vmatpush1.bf16.msra.mxu0 %v2773
        %2996 = vmatprep.subr.bf16.mxu0 0
        %2997 = vmatpush1.bf16.msra.mxu0 %v2774
        %2998 = vmatprep.subr.bf16.mxu0 0
        %2999 = vmatpush1.bf16.msra.mxu0 %v2775
        %3000 = vmatprep.subr.bf16.mxu0 0
        %3001 = vmatpush1.bf16.msra.mxu0 %v2776
        %3002 = vmatprep.mubr.bf16.mxu0 %v2084
        %3003 = vmatmul.mubr.bf16.gmra.mrb[0].mxu0 %v2081
        %v3004 = vpop.f32.mrb[0].mxu0
        %v3005 = vadd.f32 %v2844, %v3004
        %v3006 = vpop.f32.mrb[0].mxu0
        %v3007 = vpop.f32.mrb[0].mxu0
        %v3008 = vadd.f32 %v2847, %v3007
        %v3009 = vpop.f32.mrb[0].mxu0
        %3010 = vmatprep.mubr.bf16.mxu0 %v2096
        %3011 = vmatmul.mubr.bf16.gmra.mrb[0].mxu0 %v2093
        %v3012 = vpop.f32.mrb[0].mxu0
        %v3013 = vadd.f32 %v2852, %v3012
        %v3014 = vpop.f32.mrb[0].mxu0
        %v3015 = vpop.f32.mrb[0].mxu0
        %v3016 = vadd.f32 %v2855, %v3015
        %v3017 = vpop.f32.mrb[0].mxu0
        %3018 = vmatprep.mubr.bf16.mxu0 %v2108
        %3019 = vmatmul.mubr.bf16.gmra.mrb[0].mxu0 %v2105
        %v3020 = vpop.f32.mrb[0].mxu0
        %v3021 = vadd.f32 %v2860, %v3020
        %v3022 = vpop.f32.mrb[0].mxu0
        %v3023 = vpop.f32.mrb[0].mxu0
        %v3024 = vadd.f32 %v2863, %v3023
        %v3025 = vpop.f32.mrb[0].mxu0
        %3026 = vmatprep.mubr.bf16.mxu0 %v2120
        %3027 = vmatmul.mubr.bf16.gmra.mrb[0].mxu0 %v2117
        %v3028 = vpop.f32.mrb[0].mxu0
        %v3029 = vadd.f32 %v2868, %v3028
        %v3030 = vpop.f32.mrb[0].mxu0
        %v3031 = vpop.f32.mrb[0].mxu0
        %v3032 = vadd.f32 %v2871, %v3031
        %v3033 = vpop.f32.mrb[0].mxu0
        %3034 = vmatprep.mubr.bf16.mxu0 %v2132
        %3035 = vmatmul.mubr.bf16.gmra.mrb[0].mxu0 %v2129
        %v3036 = vpop.f32.mrb[0].mxu0
        %v3037 = vadd.f32 %v2876, %v3036
        %v3038 = vpop.f32.mrb[0].mxu0
        %v3039 = vpop.f32.mrb[0].mxu0
        %v3040 = vadd.f32 %v2879, %v3039
        %v3041 = vpop.f32.mrb[0].mxu0
        %3042 = vmatprep.mubr.bf16.mxu0 %v2144
        %3043 = vmatmul.mubr.bf16.gmra.mrb[0].mxu0 %v2141
        %v3044 = vpop.f32.mrb[0].mxu0
        %v3045 = vadd.f32 %v2884, %v3044
        %v3046 = vpop.f32.mrb[0].mxu0
        %v3047 = vpop.f32.mrb[0].mxu0
        %v3048 = vadd.f32 %v2887, %v3047
        %v3049 = vpop.f32.mrb[0].mxu0
        %3050 = vmatprep.mubr.bf16.mxu0 %v2156
        %3051 = vmatmul.mubr.bf16.gmra.mrb[0].mxu0 %v2153
        %v3052 = vpop.f32.mrb[0].mxu0
        %v3053 = vadd.f32 %v2892, %v3052
        %v3054 = vpop.f32.mrb[0].mxu0
        %v3055 = vpop.f32.mrb[0].mxu0
        %v3056 = vadd.f32 %v2895, %v3055
        %v3057 = vpop.f32.mrb[0].mxu0
        %3058 = vmatprep.mubr.bf16.mxu0 %v2168
        %3059 = vmatmul.mubr.bf16.gmra.mrb[0].mxu0 %v2165
        %v3060 = vpop.f32.mrb[0].mxu0
        %v3061 = vadd.f32 %v2900, %v3060
        %v3062 = vpop.f32.mrb[0].mxu0
        %v3063 = vpop.f32.mrb[0].mxu0
        %v3064 = vadd.f32 %v2903, %v3063
        %v3065 = vpop.f32.mrb[0].mxu0
        %3066 = vmatprep.mubr.bf16.mxu0 %v2180
        %3067 = vmatmul.mubr.bf16.gmra.mrb[0].mxu0 %v2177
        %v3068 = vpop.f32.mrb[0].mxu0
        %v3069 = vadd.f32 %v2908, %v3068
        %v3070 = vpop.f32.mrb[0].mxu0
        %v3071 = vpop.f32.mrb[0].mxu0
        %v3072 = vadd.f32 %v2911, %v3071
        %v3073 = vpop.f32.mrb[0].mxu0
        %3074 = vmatprep.mubr.bf16.mxu0 %v2192
        %3075 = vmatmul.mubr.bf16.gmra.mrb[0].mxu0 %v2189
        %v3076 = vpop.f32.mrb[0].mxu0
        %v3077 = vadd.f32 %v2916, %v3076
        %v3078 = vpop.f32.mrb[0].mxu0
        %v3079 = vpop.f32.mrb[0].mxu0
        %v3080 = vadd.f32 %v2919, %v3079
        %v3081 = vpop.f32.mrb[0].mxu0
        %3082 = vmatprep.mubr.bf16.mxu0 %v2204
        %3083 = vmatmul.mubr.bf16.gmra.mrb[0].mxu0 %v2201
        %v3084 = vpop.f32.mrb[0].mxu0
        %v3085 = vadd.f32 %v2924, %v3084
        %v3086 = vpop.f32.mrb[0].mxu0
        %v3087 = vpop.f32.mrb[0].mxu0
        %v3088 = vadd.f32 %v2927, %v3087
        %v3089 = vpop.f32.mrb[0].mxu0
        %3090 = vmatprep.mubr.bf16.mxu0 %v2216
        %3091 = vmatmul.mubr.bf16.gmra.mrb[0].mxu0 %v2213
        %v3092 = vpop.f32.mrb[0].mxu0
        %v3093 = vadd.f32 %v2932, %v3092
        %v3094 = vpop.f32.mrb[0].mxu0
        %v3095 = vpop.f32.mrb[0].mxu0
        %v3096 = vadd.f32 %v2935, %v3095
        %v3097 = vpop.f32.mrb[0].mxu0
        %3098 = vmatprep.mubr.bf16.mxu0 %v2228
        %3099 = vmatmul.mubr.bf16.gmra.mrb[0].mxu0 %v2225
        %v3100 = vpop.f32.mrb[0].mxu0
        %v3101 = vadd.f32 %v2940, %v3100
        %v3102 = vpop.f32.mrb[0].mxu0
        %v3103 = vpop.f32.mrb[0].mxu0
        %v3104 = vadd.f32 %v2943, %v3103
        %v3105 = vpop.f32.mrb[0].mxu0
        %3106 = vmatprep.mubr.bf16.mxu0 %v2240
        %3107 = vmatmul.mubr.bf16.gmra.mrb[0].mxu0 %v2237
        %v3108 = vpop.f32.mrb[0].mxu0
        %v3109 = vadd.f32 %v2948, %v3108
        %v3110 = vpop.f32.mrb[0].mxu0
        %v3111 = vpop.f32.mrb[0].mxu0
        %v3112 = vadd.f32 %v2951, %v3111
        %v3113 = vpop.f32.mrb[0].mxu0
        %3114 = vmatprep.mubr.bf16.mxu0 %v2252
        %3115 = vmatmul.mubr.bf16.gmra.mrb[0].mxu0 %v2249
        %v3116 = vpop.f32.mrb[0].mxu0
        %v3117 = vadd.f32 %v2956, %v3116
        %v3118 = vpop.f32.mrb[0].mxu0
        %v3119 = vpop.f32.mrb[0].mxu0
        %v3120 = vadd.f32 %v2959, %v3119
        %v3121 = vpop.f32.mrb[0].mxu0
        %3122 = vmatprep.mubr.bf16.mxu0 %v2264
        %3123 = vmatmul.mubr.bf16.gmra.mrb[0].mxu0 %v2261
        %v3124 = vpop.f32.mrb[0].mxu0
        %v3125 = vadd.f32 %v2964, %v3124
        %v3126 = vpop.f32.mrb[0].mxu0
        %v3127 = vpop.f32.mrb[0].mxu0
        %v3128 = vadd.f32 %v2967, %v3127
        %v3129 = vpop.f32.mrb[0].mxu0
        %3130 = vdwg.mxu0
        %v3131 = vrcp.pop %v2397
        %v3132 = vrcp.pop %v2402
        %v3133 = vrcp.pop %v2407
        %v3134 = vrcp.pop %v2412
        %v3135 = vrcp.pop %v2417
        %v3136 = vrcp.pop %v2422
        %v3137 = vrcp.pop %v2427
        %v3138 = vrcp.pop %v2432
        %v3139 = vrcp.pop %v2437
        %v3140 = vrcp.pop %v2442
        %v3141 = vrcp.pop %v2447
        %v3142 = vrcp.pop %v2452
        %v3143 = vrcp.pop %v2457
        %v3144 = vrcp.pop %v2462
        %v3145 = vrcp.pop %v2467
        %v3146 = vrcp.pop %v2472
        %v3147 = vrcp.pop %v2477
        %v3148 = vrcp.pop %v2482
        %v3149 = vrcp.pop %v2487
        %v3150 = vrcp.pop %v2492
        %v3151 = vrcp.pop %v2497
        %v3152 = vrcp.pop %v2502
        %v3153 = vrcp.pop %v2507
        %v3154 = vrcp.pop %v2512
        %v3155 = vrcp.pop %v2517
        %v3156 = vrcp.pop %v2522
        %v3157 = vrcp.pop %v2527
        %v3158 = vrcp.pop %v2532
        %v3159 = vrcp.pop %v2537
        %v3160 = vrcp.pop %v2542
        %v3161 = vrcp.pop %v2547
        %v3162 = vrcp.pop %v2552
        %v3163 = vmul.f32 %v3005, %v3131
        %v3164 = vmul.f32 %v3008, %v3132
        %v3165 = vmul.f32 %v3013, %v3133
        %v3166 = vmul.f32 %v3016, %v3134
        %v3167 = vmul.f32 %v3021, %v3135
        %v3168 = vmul.f32 %v3024, %v3136
        %v3169 = vmul.f32 %v3029, %v3137
        %v3170 = vmul.f32 %v3032, %v3138
        %v3171 = vmul.f32 %v3037, %v3139
        %v3172 = vmul.f32 %v3040, %v3140
        %v3173 = vmul.f32 %v3045, %v3141
        %v3174 = vmul.f32 %v3048, %v3142
        %v3175 = vmul.f32 %v3053, %v3143
        %v3176 = vmul.f32 %v3056, %v3144
        %v3177 = vmul.f32 %v3061, %v3145
        %v3178 = vmul.f32 %v3064, %v3146
        %v3179 = vmul.f32 %v3069, %v3147
        %v3180 = vmul.f32 %v3072, %v3148
        %v3181 = vmul.f32 %v3077, %v3149
        %v3182 = vmul.f32 %v3080, %v3150
        %v3183 = vmul.f32 %v3085, %v3151
        %v3184 = vmul.f32 %v3088, %v3152
        %v3185 = vmul.f32 %v3093, %v3153
        %v3186 = vmul.f32 %v3096, %v3154
        %v3187 = vmul.f32 %v3101, %v3155
        %v3188 = vmul.f32 %v3104, %v3156
        %v3189 = vmul.f32 %v3109, %v3157
        %v3190 = vmul.f32 %v3112, %v3158
        %v3191 = vmul.f32 %v3117, %v3159
        %v3192 = vmul.f32 %v3120, %v3160
        %v3193 = vmul.f32 %v3125, %v3161
        %v3194 = vmul.f32 %v3128, %v3162
        %vm3195 = vcmp.gt.f32.partialorder %v3163, 0.0
        %vm3196 = vcmp.gt.f32.partialorder %v3164, 0.0
        %vm3197 = vcmp.gt.f32.partialorder %v3165, 0.0
        %vm3198 = vcmp.gt.f32.partialorder %v3166, 0.0
        %vm3199 = vcmp.gt.f32.partialorder %v3167, 0.0
        %vm3200 = vcmp.gt.f32.partialorder %v3168, 0.0
        %vm3201 = vcmp.gt.f32.partialorder %v3169, 0.0
        %vm3202 = vcmp.gt.f32.partialorder %v3170, 0.0
        %vm3203 = vcmp.gt.f32.partialorder %v3171, 0.0
        %vm3204 = vcmp.gt.f32.partialorder %v3172, 0.0
        %vm3205 = vcmp.gt.f32.partialorder %v3173, 0.0
        %vm3206 = vcmp.gt.f32.partialorder %v3174, 0.0
        %vm3207 = vcmp.gt.f32.partialorder %v3175, 0.0
        %vm3208 = vcmp.gt.f32.partialorder %v3176, 0.0
        %vm3209 = vcmp.gt.f32.partialorder %v3177, 0.0
        %vm3210 = vcmp.gt.f32.partialorder %v3178, 0.0
        %vm3211 = vcmp.gt.f32.partialorder %v3179, 0.0
        %vm3212 = vcmp.gt.f32.partialorder %v3180, 0.0
        %vm3213 = vcmp.gt.f32.partialorder %v3181, 0.0
        %vm3214 = vcmp.gt.f32.partialorder %v3182, 0.0
        %vm3215 = vcmp.gt.f32.partialorder %v3183, 0.0
        %vm3216 = vcmp.gt.f32.partialorder %v3184, 0.0
        %vm3217 = vcmp.gt.f32.partialorder %v3185, 0.0
        %vm3218 = vcmp.gt.f32.partialorder %v3186, 0.0
        %vm3219 = vcmp.gt.f32.partialorder %v3187, 0.0
        %vm3220 = vcmp.gt.f32.partialorder %v3188, 0.0
        %vm3221 = vcmp.gt.f32.partialorder %v3189, 0.0
        %vm3222 = vcmp.gt.f32.partialorder %v3190, 0.0
        %vm3223 = vcmp.gt.f32.partialorder %v3191, 0.0
        %vm3224 = vcmp.gt.f32.partialorder %v3192, 0.0
        %vm3225 = vcmp.gt.f32.partialorder %v3193, 0.0
        %vm3226 = vcmp.gt.f32.partialorder %v3194, 0.0
        %v3227 = vmul.f32 %v3163, 1.442695
        %v3228 = vpow.pop %v3227
        %v3229 = vmul.f32 %v3164, 1.442695
        %v3230 = vpow.pop %v3229
        %v3231 = vmul.f32 %v3165, 1.442695
        %v3232 = vpow.pop %v3231
        %v3233 = vmul.f32 %v3166, 1.442695
        %v3234 = vpow.pop %v3233
        %v3235 = vmul.f32 %v3167, 1.442695
        %v3236 = vpow.pop %v3235
        %v3237 = vmul.f32 %v3168, 1.442695
        %v3238 = vpow.pop %v3237
        %v3239 = vmul.f32 %v3169, 1.442695
        %v3240 = vpow.pop %v3239
        %v3241 = vmul.f32 %v3170, 1.442695
        %v3242 = vpow.pop %v3241
        %v3243 = vmul.f32 %v3171, 1.442695
        %v3244 = vpow.pop %v3243
        %v3245 = vmul.f32 %v3172, 1.442695
        %v3246 = vpow.pop %v3245
        %v3247 = vmul.f32 %v3173, 1.442695
        %v3248 = vpow.pop %v3247
        %v3249 = vmul.f32 %v3174, 1.442695
        %v3250 = vpow.pop %v3249
        %v3251 = vmul.f32 %v3175, 1.442695
        %v3252 = vpow.pop %v3251
        %v3253 = vmul.f32 %v3176, 1.442695
        %v3254 = vpow.pop %v3253
        %v3255 = vmul.f32 %v3177, 1.442695
        %v3256 = vpow.pop %v3255
        %v3257 = vmul.f32 %v3178, 1.442695
        %v3258 = vpow.pop %v3257
        %v3259 = vmul.f32 %v3179, 1.442695
        %v3260 = vpow.pop %v3259
        %v3261 = vmul.f32 %v3180, 1.442695
        %v3262 = vpow.pop %v3261
        %v3263 = vmul.f32 %v3181, 1.442695
        %v3264 = vpow.pop %v3263
        %v3265 = vmul.f32 %v3182, 1.442695
        %v3266 = vpow.pop %v3265
        %v3267 = vmul.f32 %v3183, 1.442695
        %v3268 = vpow.pop %v3267
        %v3269 = vmul.f32 %v3184, 1.442695
        %v3270 = vpow.pop %v3269
        %v3271 = vmul.f32 %v3185, 1.442695
        %v3272 = vpow.pop %v3271
        %v3273 = vmul.f32 %v3186, 1.442695
        %v3274 = vpow.pop %v3273
        %v3275 = vmul.f32 %v3187, 1.442695
        %v3276 = vpow.pop %v3275
        %v3277 = vmul.f32 %v3188, 1.442695
        %v3278 = vpow.pop %v3277
        %v3279 = vmul.f32 %v3189, 1.442695
        %v3280 = vpow.pop %v3279
        %v3281 = vmul.f32 %v3190, 1.442695
        %v3282 = vpow.pop %v3281
        %v3283 = vmul.f32 %v3191, 1.442695
        %v3284 = vpow.pop %v3283
        %v3285 = vmul.f32 %v3192, 1.442695
        %v3286 = vpow.pop %v3285
        %v3287 = vmul.f32 %v3193, 1.442695
        %v3288 = vpow.pop %v3287
        %v3289 = vmul.f32 %v3194, 1.442695
        %v3290 = vpow.pop %v3289
        %v3291 = vsub.f32 %v3228, 1.0
        %v3292 = vsub.f32 %v3230, 1.0
        %v3293 = vsub.f32 %v3232, 1.0
        %v3294 = vsub.f32 %v3234, 1.0
        %v3295 = vsub.f32 %v3236, 1.0
        %v3296 = vsub.f32 %v3238, 1.0
        %v3297 = vsub.f32 %v3240, 1.0
        %v3298 = vsub.f32 %v3242, 1.0
        %v3299 = vsub.f32 %v3244, 1.0
        %v3300 = vsub.f32 %v3246, 1.0
        %v3301 = vsub.f32 %v3248, 1.0
        %v3302 = vsub.f32 %v3250, 1.0
        %v3303 = vsub.f32 %v3252, 1.0
        %v3304 = vsub.f32 %v3254, 1.0
        %v3305 = vsub.f32 %v3256, 1.0
        %v3306 = vsub.f32 %v3258, 1.0
        %v3307 = vsub.f32 %v3260, 1.0
        %v3308 = vsub.f32 %v3262, 1.0
        %v3309 = vsub.f32 %v3264, 1.0
        %v3310 = vsub.f32 %v3266, 1.0
        %v3311 = vsub.f32 %v3268, 1.0
        %v3312 = vsub.f32 %v3270, 1.0
        %v3313 = vsub.f32 %v3272, 1.0
        %v3314 = vsub.f32 %v3274, 1.0
        %v3315 = vsub.f32 %v3276, 1.0
        %v3316 = vsub.f32 %v3278, 1.0
        %v3317 = vsub.f32 %v3280, 1.0
        %v3318 = vsub.f32 %v3282, 1.0
        %v3319 = vsub.f32 %v3284, 1.0
        %v3320 = vsub.f32 %v3286, 1.0
        %v3321 = vsub.f32 %v3288, 1.0
        %v3322 = vsub.f32 %v3290, 1.0
        %v3323 = vsel %vm3195, %v3163, %v3291
        %v3324 = vsel %vm3196, %v3164, %v3292
        %v3325 = vsel %vm3197, %v3165, %v3293
        %v3326 = vsel %vm3198, %v3166, %v3294
        %v3327 = vsel %vm3199, %v3167, %v3295
        %v3328 = vsel %vm3200, %v3168, %v3296
        %v3329 = vsel %vm3201, %v3169, %v3297
        %v3330 = vsel %vm3202, %v3170, %v3298
        %v3331 = vsel %vm3203, %v3171, %v3299
        %v3332 = vsel %vm3204, %v3172, %v3300
        %v3333 = vsel %vm3205, %v3173, %v3301
        %v3334 = vsel %vm3206, %v3174, %v3302
        %v3335 = vsel %vm3207, %v3175, %v3303
        %v3336 = vsel %vm3208, %v3176, %v3304
        %v3337 = vsel %vm3209, %v3177, %v3305
        %v3338 = vsel %vm3210, %v3178, %v3306
        %v3339 = vsel %vm3211, %v3179, %v3307
        %v3340 = vsel %vm3212, %v3180, %v3308
        %v3341 = vsel %vm3213, %v3181, %v3309
        %v3342 = vsel %vm3214, %v3182, %v3310
        %v3343 = vsel %vm3215, %v3183, %v3311
        %v3344 = vsel %vm3216, %v3184, %v3312
        %v3345 = vsel %vm3217, %v3185, %v3313
        %v3346 = vsel %vm3218, %v3186, %v3314
        %v3347 = vsel %vm3219, %v3187, %v3315
        %v3348 = vsel %vm3220, %v3188, %v3316
        %v3349 = vsel %vm3221, %v3189, %v3317
        %v3350 = vsel %vm3222, %v3190, %v3318
        %v3351 = vsel %vm3223, %v3191, %v3319
        %v3352 = vsel %vm3224, %v3192, %v3320
        %v3353 = vsel %vm3225, %v3193, %v3321
        %v3354 = vsel %vm3226, %v3194, %v3322
        %v3355 = vpack.c.bf16 %v3324, %v3323
        %v3356 = vpack.c.bf16 %v3326, %v3325
        %v3357 = vpack.c.bf16 %v3328, %v3327
        %v3358 = vpack.c.bf16 %v3330, %v3329
        %v3359 = vpack.c.bf16 %v3332, %v3331
        %v3360 = vpack.c.bf16 %v3334, %v3333
        %v3361 = vpack.c.bf16 %v3336, %v3335
        %v3362 = vpack.c.bf16 %v3338, %v3337
        %v3363 = vpack.c.bf16 %v3340, %v3339
        %v3364 = vpack.c.bf16 %v3342, %v3341
        %v3365 = vpack.c.bf16 %v3344, %v3343
        %v3366 = vpack.c.bf16 %v3346, %v3345
        %v3367 = vpack.c.bf16 %v3348, %v3347
        %v3368 = vpack.c.bf16 %v3350, %v3349
        %v3369 = vpack.c.bf16 %v3352, %v3351
        %v3370 = vpack.c.bf16 %v3354, %v3353
        %v3387 = vunpack.c.l.b16 %v3355
        %v3388 = vunpack.c.h.b16 %v3355
        %v3389 = vunpack.c.l.b16 %v3356
        %v3390 = vunpack.c.h.b16 %v3356
        %v3391 = vunpack.c.l.b16 %v3357
        %v3392 = vunpack.c.h.b16 %v3357
        %v3393 = vunpack.c.l.b16 %v3358
        %v3394 = vunpack.c.h.b16 %v3358
        %v3395 = vunpack.c.l.b16 %v3359
        %v3396 = vunpack.c.h.b16 %v3359
        %v3397 = vunpack.c.l.b16 %v3360
        %v3398 = vunpack.c.h.b16 %v3360
        %v3399 = vunpack.c.l.b16 %v3361
        %v3400 = vunpack.c.h.b16 %v3361
        %v3401 = vunpack.c.l.b16 %v3362
        %v3402 = vunpack.c.h.b16 %v3362
        %v3403 = vunpack.c.l.b16 %v3363
        %v3404 = vunpack.c.h.b16 %v3363
        %v3405 = vunpack.c.l.b16 %v3364
        %v3406 = vunpack.c.h.b16 %v3364
        %v3407 = vunpack.c.l.b16 %v3365
        %v3408 = vunpack.c.h.b16 %v3365
        %v3409 = vunpack.c.l.b16 %v3366
        %v3410 = vunpack.c.h.b16 %v3366
        %v3411 = vunpack.c.l.b16 %v3367
        %v3412 = vunpack.c.h.b16 %v3367
        %v3413 = vunpack.c.l.b16 %v3368
        %v3414 = vunpack.c.h.b16 %v3368
        %v3415 = vunpack.c.l.b16 %v3369
        %v3416 = vunpack.c.h.b16 %v3369
        %v3417 = vunpack.c.l.b16 %v3370
        %v3418 = vunpack.c.h.b16 %v3370
        %v3419 = vpack.c.b16 %v3387, %v3387
        %v3420 = vpack.c.b16 %v3388, %v3388
        %v3421 = vpack.c.b16 %v3389, %v3389
        %v3422 = vpack.c.b16 %v3390, %v3390
        %v3423 = vpack.c.b16 %v3391, %v3391
        %v3424 = vpack.c.b16 %v3392, %v3392
        %v3425 = vpack.c.b16 %v3393, %v3393
        %v3426 = vpack.c.b16 %v3394, %v3394
        %v3427 = vpack.c.b16 %v3395, %v3395
        %v3428 = vpack.c.b16 %v3396, %v3396
        %v3429 = vpack.c.b16 %v3397, %v3397
        %v3430 = vpack.c.b16 %v3398, %v3398
        %v3431 = vpack.c.b16 %v3399, %v3399
        %v3432 = vpack.c.b16 %v3400, %v3400
        %v3433 = vpack.c.b16 %v3401, %v3401
        %v3434 = vpack.c.b16 %v3402, %v3402
        %v3435 = vpack.c.b16 %v3403, %v3403
        %v3436 = vpack.c.b16 %v3404, %v3404
        %v3437 = vpack.c.b16 %v3405, %v3405
        %v3438 = vpack.c.b16 %v3406, %v3406
        %v3439 = vpack.c.b16 %v3407, %v3407
        %v3440 = vpack.c.b16 %v3408, %v3408
        %v3441 = vpack.c.b16 %v3409, %v3409
        %v3442 = vpack.c.b16 %v3410, %v3410
        %v3443 = vpack.c.b16 %v3411, %v3411
        %v3444 = vpack.c.b16 %v3412, %v3412
        %v3445 = vpack.c.b16 %v3413, %v3413
        %v3446 = vpack.c.b16 %v3414, %v3414
        %v3447 = vpack.c.b16 %v3415, %v3415
        %v3448 = vpack.c.b16 %v3416, %v3416
        %v3449 = vpack.c.b16 %v3417, %v3417
        %v3450 = vpack.c.b16 %v3418, %v3418
        %3483 = vst [vmem:[%s295] sm:$0xf] %v3419
        %3484 = vst [vmem:[%s295 + $0x4] sm:$0xf] %v3420
        %3485 = vst [vmem:[%s295 + $0x8] sm:$0xf] %v3421
        %3486 = vst [vmem:[%s295 + $0xc] sm:$0xf] %v3422
        %3487 = vst [vmem:[%s295 + $0x10] sm:$0xf] %v3423
        %3488 = vst [vmem:[%s295 + $0x14] sm:$0xf] %v3424
        %3489 = vst [vmem:[%s295 + $0x18] sm:$0xf] %v3425
        %3490 = vst [vmem:[%s295 + $0x1c] sm:$0xf] %v3426
        %3491 = vst [vmem:[%s295 + $0x20] sm:$0xf] %v3427
        %3492 = vst [vmem:[%s295 + $0x24] sm:$0xf] %v3428
        %3493 = vst [vmem:[%s295 + $0x28] sm:$0xf] %v3429
        %3494 = vst [vmem:[%s295 + $0x2c] sm:$0xf] %v3430
        %3495 = vst [vmem:[%s295 + $0x30] sm:$0xf] %v3431
        %3496 = vst [vmem:[%s295 + $0x34] sm:$0xf] %v3432
        %3497 = vst [vmem:[%s295 + $0x38] sm:$0xf] %v3433
        %3498 = vst [vmem:[%s295 + $0x3c] sm:$0xf] %v3434
        %3499 = vst [vmem:[%s295 + $0x40] sm:$0xf] %v3435
        %3500 = vst [vmem:[%s295 + $0x44] sm:$0xf] %v3436
        %3501 = vst [vmem:[%s295 + $0x48] sm:$0xf] %v3437
        %3502 = vst [vmem:[%s295 + $0x4c] sm:$0xf] %v3438
        %3503 = vst [vmem:[%s295 + $0x50] sm:$0xf] %v3439
        %3504 = vst [vmem:[%s295 + $0x54] sm:$0xf] %v3440
        %3505 = vst [vmem:[%s295 + $0x58] sm:$0xf] %v3441
        %3506 = vst [vmem:[%s295 + $0x5c] sm:$0xf] %v3442
        %3507 = vst [vmem:[%s295 + $0x60] sm:$0xf] %v3443
        %3508 = vst [vmem:[%s295 + $0x64] sm:$0xf] %v3444
        %3509 = vst [vmem:[%s295 + $0x68] sm:$0xf] %v3445
        %3510 = vst [vmem:[%s295 + $0x6c] sm:$0xf] %v3446
        %3511 = vst [vmem:[%s295 + $0x70] sm:$0xf] %v3447
        %3512 = vst [vmem:[%s295 + $0x74] sm:$0xf] %v3448
        %3513 = vst [vmem:[%s295 + $0x78] sm:$0xf] %v3449
        %3514 = vst [vmem:[%s295 + $0x7c] sm:$0xf] %v3450
        %s3515 = sand.u32 %s170, 1
        %s3516 = scalar_lea.sflag [#allocation3], %s3515
        %s3517 = sand.u32 %s170, 1
        %s3518 = smul.addr %s3517, 128
        %s3519 = scalar_lea.vmem [#allocation2], %s3518
        // Predicated region
        $region41: #{tpu_custom_call.1} parent=39 // pred_check
          %p3520 = pneg %p180
        $region42: #{tpu_custom_call.1} parent=39 // pred_check_branch
          %3522 = sbr.rel (%p3520) target = $region44
        $region43: #{tpu_custom_call.1} parent=39 // pred_region
          %s3523 = smul.u32 32, %s24
          %s3525 = ssub.s32 2048, 2048
          %3526 = vsyncadd %s3516, %s3525
          %s3527 = smul.addr %s23, 64
          %s3528 = sadd.s32 %s3523, %s3527
          %s3529 = smul.addr %s3528, 64
          %s3530 = scalar_lea.hbm %s5, %s3529
          %s3531 = sshll.u32 %s3519, 4
          %s3532 = int_to_ptr.vmem [resolvable:$true] %s3531
          %3537 = dma.vmem_to_hbm [thread:$0]  %s3532, 2048, %s3530, %s3516, 64, 64, 4
        $region44: #{tpu_custom_call.1} parent=39 // pred_fallthru
          _
      $region40: #{tpu_custom_call.1} parent=5 // pred_fallthru
        _
      %p3538 = scmp.le.s32.totalorder 2, %s14
      // Predicated region
      $region45: #{tpu_custom_call.1} parent=5 // pred_check
        %p3539 = pneg %p3538
      $region46: #{tpu_custom_call.1} parent=5 // pred_check_branch
        %3541 = sbr.rel (%p3539) target = $region48
      $region47: #{tpu_custom_call.1} parent=5 // pred_region
        %s3542 = ssub.s32 %s14, 2
        // Predicated region
        $region49: #{tpu_custom_call.1} parent=47 // pred_check
          %p3543 = pneg %p186
        $region50: #{tpu_custom_call.1} parent=47 // pred_check_branch
          %3545 = sbr.rel (%p3543) target = $region52
        $region51: #{tpu_custom_call.1} parent=47 // pred_region
          %s3546 = sand.u32 %s171, 1
          %s3547 = scalar_lea.sflag [#allocation3], %s3546
          %s3548 = sand.u32 %s171, 1
          %s3549 = smul.addr %s3548, 128
          %s3550 = scalar_lea.vmem [#allocation2], %s3549
          %3551 = dma.done %s3547, 2048
        $region52: #{tpu_custom_call.1} parent=47 // pred_fallthru
          _
      $region48: #{tpu_custom_call.1} parent=5 // pred_fallthru
        _
    $region6: #{tpu_custom_call.1} parent=1 // loop_footer
      %s18 = sadd.s32 1, %s14
    $region7: #{tpu_custom_call.1} parent=1 // loop_footer_branch
      %13 = sbr.rel target = $region3
    $region8: #{tpu_custom_call.1} parent=1 // loop_exit
      _
    %3552 = vsyncpa [#allocation3], 1
    %s3553 = scalar_lea.sflag [#allocation3], 1
    %3554 = vsyncpa %s3553, 1

</llo_original>
